<compile_context>
chip_gen: v6e
topology: v6e:2x2x1
jax: 0.10.0
libtpu: 0.0.40
codegen_flags: <defaults>
</compile_context>

<pallas_src>
import functools

import jax
import jax.numpy as jnp
from jax.experimental import pallas as pl
from jax.experimental.pallas import tpu as pltpu

_VMEM_LIMIT = 32 * 1024 * 1024  # comfortable on v5e/v6e/v7x scoped VMEM


def _round_up(x, m):
    return (x + m - 1) // m * m


def _pick_tile(total, cap, quantum):
    """Largest multiple of `quantum` that divides `total` and is <= cap."""
    t = min(cap, total)
    t = max(quantum, (t // quantum) * quantum)
    while total % t:
        t -= quantum
    return t


def _pick_tn(Np):
    """Lane-dense N tile, as wide as possible (v6e/v7x MXU is 256x256)."""
    if Np <= 512:
        return Np
    for t in (512, 256, 128):
        if Np % t == 0:
            return t
    return 128


def _select_m_tile(M, Kp, tn, qm, *, other_parallel=1, cap=1024):
    """Pick tm (multiple of qm) minimizing padded-M work + weight re-reads."""
    upper = max(qm, min(cap, _round_up(M, qm)))
    best_tm, best_cost = qm, None
    tm = upper
    while tm >= qm:
        Mp = _round_up(M, tm)
        nm = Mp // tm
        # heuristic bytes: LHS read + writeback (prop. to Mp) + nm-fold RHS re-reads
        cost = Mp * (2 * Kp + 4) + nm * Kp * tn * 2
        if best_cost is None or cost < best_cost:
            best_cost, best_tm = cost, tm
        tm -= qm
    tm = best_tm
    Mp = _round_up(M, tm)
    # v7x has 2 TensorCores: expose >=2 blocks on the parallel axes when it
    # costs no extra padding (v5e/v6e are indifferent).
    if (Mp // tm) * other_parallel < 2 and tm > qm:
        half = _round_up(tm // 2, qm)
        if half < tm and _round_up(M, half) == Mp:
            tm = half
    return tm, _round_up(M, tm)


# ----------------------------------------------------------------------------
# JAX glue: im2col (pure layout work, bf16 activations).
# TODO(synk): replace the XLA im2col with an in-kernel direct-conv gather
# (K grid axis over (di, dj, C-chunk) with strided loads from the padded NHWC
# activation) to remove the k*k HBM expansion -- the remaining dominant
# memory traffic of the network.
# ----------------------------------------------------------------------------
def _im2col(x_nhwc, k, stride, pad):
    N, H, W, C = x_nhwc.shape
    xp = jnp.pad(x_nhwc, ((0, 0), (pad, pad), (pad, pad), (0, 0)))
    Hp, Wp = H + 2 * pad, W + 2 * pad
    Ho = (Hp - k) // stride + 1
    Wo = (Wp - k) // stride + 1
    cols = []
    for di in range(k):
        for dj in range(k):
            cols.append(xp[:, di:di + stride * Ho:stride,
                           dj:dj + stride * Wo:stride, :])
    patches = jnp.stack(cols, axis=3)                    # (N, Ho, Wo, k*k, C)
    patches = patches.reshape(N * Ho * Wo, k * k * C)    # (M, K)
    return patches, Ho, Wo


# ----------------------------------------------------------------------------
# Pallas kernels
# ----------------------------------------------------------------------------
def _mm_bias_act_kernel(x_ref, w_ref, b_ref, o_ref, acc_ref, *, nk, do_act):
    """Tiled matmul + bias [+ LeakyReLU(0.2)].  Used for the first conv."""
    k = pl.program_id(2)

    @pl.when(k == 0)
    def _():
        acc_ref[...] = jnp.zeros_like(acc_ref)

    acc_ref[...] += jnp.dot(x_ref[...], w_ref[...],
                            preferred_element_type=jnp.float32)

    @pl.when(k == nk - 1)
    def _():
        out = acc_ref[...] + b_ref[...]
        if do_act:
            out = jnp.where(out > 0, out, 0.2 * out)
        o_ref[...] = out.astype(o_ref.dtype)


def _mm_stats_kernel(x_ref, w_ref, o_ref, stats_ref, acc_ref, *, nk):
    """Tiled matmul (no bias) + per-channel sum / sum-of-squares for BatchNorm.

    Output y is written in bf16; the statistics are computed from the f32
    accumulator so mean/var stay exact.  stats block (8, tn): row 0 = column
    sums, row 1 = column sums of squares for this M tile, rows 2..7 zero.
    """
    k = pl.program_id(2)

    @pl.when(k == 0)
    def _():
        acc_ref[...] = jnp.zeros_like(acc_ref)

    acc_ref[...] += jnp.dot(x_ref[...], w_ref[...],
                            preferred_element_type=jnp.float32)

    @pl.when(k == nk - 1)
    def _():
        acc = acc_ref[...]
        o_ref[...] = acc.astype(o_ref.dtype)
        csum = jnp.sum(acc, axis=0, keepdims=True)             # (1, tn) f32
        csq = jnp.sum(acc * acc, axis=0, keepdims=True)        # (1, tn) f32
        rows = jax.lax.broadcasted_iota(jnp.int32, stats_ref.shape, 0)
        stats_ref[...] = jnp.where(rows == 0, csum,
                                   jnp.where(rows == 1, csq, 0.0))


def _mv_kernel(x_ref, w_ref, o_ref, acc_ref, *, nk):
    """cout==1 conv: VPU multiply + lane-reduce, (M, 1) f32 output.

    Avoids the 128-column padded MXU pass + the Mp x 128 writeback of the
    previous version for the final PatchGAN conv.
    """
    k = pl.program_id(1)

    @pl.when(k == 0)
    def _():
        acc_ref[...] = jnp.zeros_like(acc_ref)

    prod = x_ref[...].astype(jnp.float32) * w_ref[...].astype(jnp.float32)
    acc_ref[...] += jnp.sum(prod, axis=1, keepdims=True)

    @pl.when(k == nk - 1)
    def _():
        o_ref[...] = acc_ref[...].astype(o_ref.dtype)


# ----------------------------------------------------------------------------
# Per-layer forward
# ----------------------------------------------------------------------------
def conv_layer_forward(x_nhwc, layer, *, eps=1e-5):
    cin, cin_pad = layer['cin'], layer['cin_pad']
    assert x_nhwc.shape[-1] == cin
    if cin_pad != cin:
        x_nhwc = jnp.pad(x_nhwc, ((0, 0), (0, 0), (0, 0), (0, cin_pad - cin)))

    N = x_nhwc.shape[0]
    patches, Ho, Wo = _im2col(x_nhwc, layer['k'], layer['stride'], layer['pad'])
    M, K = patches.shape
    Cout = layer['cout']

    # ---------------- final conv (cout == 1): VPU dot-product kernel --------
    if layer['final']:
        w_row = layer['w_row']                          # (1, Kp) bf16
        Kp = w_row.shape[1]
        assert K == Kp and Cout == 1
        tk = _pick_tile(Kp, 512, 128)
        tm, Mp = _select_m_tile(M, Kp, 1, 8)
        nm, nk = Mp // tm, Kp // tk

        xpad = patches.astype(jnp.bfloat16)
        if Mp != M:
            xpad = jnp.pad(xpad, ((0, Mp - M), (0, 0)))

        y = pl.pallas_call(
            functools.partial(_mv_kernel, nk=nk),
            out_shape=jax.ShapeDtypeStruct((Mp, 1), jnp.float32),
            grid_spec=pltpu.PrefetchScalarGridSpec(
                num_scalar_prefetch=0,
                grid=(nm, nk),
                in_specs=[pl.BlockSpec((tm, tk), lambda i, k: (i, k)),
                          pl.BlockSpec((1, tk), lambda i, k: (0, k))],
                out_specs=pl.BlockSpec((tm, 1), lambda i, k: (i, 0)),
                scratch_shapes=[pltpu.VMEM((tm, 1), jnp.float32)]),
            compiler_params=pltpu.CompilerParams(
                dimension_semantics=("parallel", "arbitrary"),
                vmem_limit_bytes=_VMEM_LIMIT),
            cost_estimate=pl.CostEstimate(
                flops=2 * Mp * Kp, transcendentals=0,
                bytes_accessed=Mp * Kp * 2 + Kp * 2 + Mp * 4),
        )(xpad, w_row)
        out = y[:M, :] + layer['bias']                  # scalar bias (XLA fuses)
        return out.reshape(N, Ho, Wo, 1)

    # ---------------- MXU path (first conv / BN convs) -----------------------
    wpad = layer['w']                                    # (Kp, Np) bf16, pre-padded
    Kp, Np = wpad.shape
    assert K == Kp, (K, Kp)

    tn = _pick_tn(Np)
    tk = _pick_tile(Kp, 512, 128)
    tm, Mp = _select_m_tile(M, Kp, tn, 16, other_parallel=Np // tn)
    nm, nn, nk = Mp // tm, Np // tn, Kp // tk

    xpad = patches.astype(jnp.bfloat16)
    if Mp != M:
        xpad = jnp.pad(xpad, ((0, Mp - M), (0, 0)))

    x_spec = pl.BlockSpec((tm, tk), lambda i, j, kk: (i, kk))
    w_spec = pl.BlockSpec((tk, tn), lambda i, j, kk: (kk, j))
    o_spec = pl.BlockSpec((tm, tn), lambda i, j, kk: (i, j))

    flops = 2 * Mp * Kp * Np
    bytes_accessed = (Mp * Kp + Kp * Np + Mp * Np) * 2
    cparams3 = pltpu.CompilerParams(
        dimension_semantics=("parallel", "parallel", "arbitrary"),
        vmem_limit_bytes=_VMEM_LIMIT)

    if layer['bn']:
        # Single Pallas pass: conv (bf16 writeback) + per-M-tile channel
        # sufficient statistics from the f32 accumulator.  Zero-padded M rows
        # contribute exactly zero (BN convs have no bias), so mean/var over
        # the true M rows are exact.
        y, stats = pl.pallas_call(
            functools.partial(_mm_stats_kernel, nk=nk),
            out_shape=(jax.ShapeDtypeStruct((Mp, Np), jnp.bfloat16),
                       jax.ShapeDtypeStruct((nm * 8, Np), jnp.float32)),
            grid_spec=pltpu.PrefetchScalarGridSpec(
                num_scalar_prefetch=0,
                grid=(nm, nn, nk),
                in_specs=[x_spec, w_spec],
                out_specs=(o_spec,
                           pl.BlockSpec((8, tn), lambda i, j, kk: (i, j))),
                scratch_shapes=[pltpu.VMEM((tm, tn), jnp.float32)]),
            compiler_params=cparams3,
            cost_estimate=pl.CostEstimate(
                flops=flops, transcendentals=0,
                bytes_accessed=bytes_accessed + nm * 8 * Np * 4),
        )(xpad, wpad)

        stats = stats.reshape(nm, 8, Np)
        s1 = jnp.sum(stats[:, 0, :Cout], axis=0)
        s2 = jnp.sum(stats[:, 1, :Cout], axis=0)
        mean = s1 / M
        var = jnp.maximum(s2 / M - mean * mean, 0.0)     # clamp f32 cancellation
        scale = layer['gamma'] * jax.lax.rsqrt(var + eps)
        shift = layer['beta'] - mean * scale

        # BatchNorm apply + LeakyReLU(0.2) as plain jnp ops: XLA fuses this
        # elementwise epilogue with the consumer's pad/im2col gather, so no
        # dedicated apply kernel and no extra activation round trip.  The
        # next conv's spatial padding happens AFTER this (pads with 0, same
        # as the PyTorch sequence).
        yv = y[:M, :Cout].astype(jnp.float32) * scale[None, :] + shift[None, :]
        yv = jnp.where(yv > 0, yv, 0.2 * yv).astype(jnp.bfloat16)
        return yv.reshape(N, Ho, Wo, Cout)

    # First conv: bias + LeakyReLU fused in the matmul epilogue (f32 math).
    out = pl.pallas_call(
        functools.partial(_mm_bias_act_kernel, nk=nk, do_act=layer['act']),
        out_shape=jax.ShapeDtypeStruct((Mp, Np), jnp.bfloat16),
        grid_spec=pltpu.PrefetchScalarGridSpec(
            num_scalar_prefetch=0,
            grid=(nm, nn, nk),
            in_specs=[x_spec, w_spec,
                      pl.BlockSpec((1, tn), lambda i, j, kk: (0, j))],
            out_specs=o_spec,
            scratch_shapes=[pltpu.VMEM((tm, tn), jnp.float32)]),
        compiler_params=cparams3,
        cost_estimate=pl.CostEstimate(flops=flops, transcendentals=0,
                                      bytes_accessed=bytes_accessed),
    )(xpad, wpad, layer['bias_pad'])
    return out[:M, :Cout].reshape(N, Ho, Wo, Cout)


# ----------------------------------------------------------------------------
# The discriminator: parameter construction mirrors the PyTorch __init__
# (norm_layer == nn.BatchNorm2d  =>  use_bias = False for normed convs).
# Weights are transposed / padded / cast to bf16 once here.
# ----------------------------------------------------------------------------
class NLayerDiscriminatorPallas:
    def __init__(self, input_nc, ndf=64, n_layers=3, key=None):
        key = jax.random.PRNGKey(0) if key is None else key
        kw, padw = 4, 1
        keys = list(jax.random.split(key, 4 * (n_layers + 2)))

        def make_layer(cin, cout, stride, *, use_bias, bn, act, final=False):
            cin_pad = _round_up(cin, 8)
            K = kw * kw * cin_pad
            w = 0.02 * jax.random.normal(keys.pop(0), (cout, cin, kw, kw),
                                         jnp.float32)
            # (Cout, Cin, kh, kw) -> (kh, kw, Cin, Cout), pad Cin, flatten once.
            w_t = jnp.transpose(w, (2, 3, 1, 0))
            w_t = jnp.pad(w_t, ((0, 0), (0, 0), (0, cin_pad - cin), (0, 0)))
            layer = dict(k=kw, stride=stride, pad=padw,
                         cin=cin, cin_pad=cin_pad, cout=cout,
                         bn=bn, act=act, final=final)
            if final:
                assert cout == 1
                layer['w_row'] = w_t.reshape(K, 1).T.astype(jnp.bfloat16)
                b = 0.02 * jax.random.normal(keys.pop(0), (cout,), jnp.float32)
                layer['bias'] = b[0]
            else:
                Np = _round_up(cout, 128)
                w_t = jnp.pad(w_t, ((0, 0), (0, 0), (0, 0), (0, Np - cout)))
                layer['w'] = w_t.reshape(K, Np).astype(jnp.bfloat16)
                if use_bias:
                    b = 0.02 * jax.random.normal(keys.pop(0), (cout,),
                                                 jnp.float32)
                    layer['bias_pad'] = (jnp.zeros((1, Np), jnp.float32)
                                         .at[0, :cout].set(b))
                if bn:
                    g = 1.0 + 0.1 * jax.random.normal(keys.pop(0), (cout,),
                                                      jnp.float32)
                    be = 0.1 * jax.random.normal(keys.pop(0), (cout,),
                                                 jnp.float32)
                    layer['gamma'] = g
                    layer['beta'] = be
            return layer

        layers = [make_layer(input_nc, ndf, 2, use_bias=True, bn=False,
                             act=True)]
        nf_mult = 1
        for n in range(1, n_layers):
            nf_mult_prev = nf_mult
            nf_mult = min(2 ** n, 8)
            layers.append(make_layer(ndf * nf_mult_prev, ndf * nf_mult, 2,
                                     use_bias=False, bn=True, act=True))
        nf_mult_prev = nf_mult
        nf_mult = min(2 ** n_layers, 8)
        layers.append(make_layer(ndf * nf_mult_prev, ndf * nf_mult, 1,
                                 use_bias=False, bn=True, act=True))
        layers.append(make_layer(ndf * nf_mult, 1, 1, use_bias=True, bn=False,
                                 act=False, final=True))
        self.layers = layers

    def __call__(self, x_nchw):
        # NCHW -> NHWC, bf16 for the MXU-facing im2col/matmul path.
        x = jnp.transpose(x_nchw, (0, 2, 3, 1)).astype(jnp.bfloat16)
        for L in self.layers:
            x = conv_layer_forward(x, L)
        return jnp.transpose(x, (0, 3, 1, 2)).astype(jnp.float32)


if __name__ == "__main__":
    key = jax.random.PRNGKey(0)
    k_in, k_par = jax.random.split(key)

    # Small shapes consistent with the module: NCHW input, kw=4, n_layers=3.
    # Spatial chain: 32 -> 16 -> 8 -> 4 -> 3 -> 2  => output (2, 1, 2, 2).
    input_nc, ndf, n_layers = 3, 8, 3
    x = jax.random.normal(k_in, (2, input_nc, 32, 32), jnp.float32)

    model = NLayerDiscriminatorPallas(input_nc, ndf=ndf, n_layers=n_layers,
                                      key=k_par)
    fwd = jax.jit(lambda inp: model(inp))
    out = jax.block_until_ready(fwd(x))

    assert out.shape == (2, 1, 2, 2), out.shape
    assert out.dtype == jnp.float32
    assert bool(jnp.all(jnp.isfinite(out)))
    print("KERNEL_OK")
</pallas_src>

<mosaic_0001>
module attributes {stable_mosaic.version = 11 : i64} {
  func.func @_mm_bias_act_kernel(%arg0: i32, %arg1: i32, %arg2: i32, %arg3: memref<256x128xbf16, #tpu.memory_space<vmem>>, %arg4: memref<128x128xbf16, #tpu.memory_space<vmem>>, %arg5: memref<1x128xf32, #tpu.memory_space<vmem>>, %arg6: memref<256x128xbf16, #tpu.memory_space<vmem>>, %arg7: memref<256x128xf32, #tpu.memory_space<vmem>>) attributes {dimension_semantics = [#tpu.dimension_semantics<parallel>, #tpu.dimension_semantics<parallel>, #tpu.dimension_semantics<arbitrary>], iteration_bounds = array<i64: 2, 1, 1>, scalar_prefetch = 0 : i64, scratch_operands = 1 : i64, tpu.core_type = #tpu.core_type<tc>, window_params = [{transform_indices = @transform_0, window_bounds = array<i64: 256, 128>}, {transform_indices = @transform_1, window_bounds = array<i64: 128, 128>}, {transform_indices = @transform_2, window_bounds = array<i64: 1, 128>}, {transform_indices = @transform_3, window_bounds = array<i64: 256, 128>}]} {
    %c0_i32 = arith.constant 0 : i32
    %0 = arith.cmpi eq, %arg2, %c0_i32 : i32
    %1 = arith.extui %0 : i1 to i32
    %c0_i32_0 = arith.constant 0 : i32
    %2 = arith.cmpi ne, %1, %c0_i32_0 : i32
    scf.if %2 {
      %cst_10 = arith.constant 0.000000e+00 : f32
      %12 = vector.broadcast %cst_10 : f32 to vector<256x128xf32>
      %c0_11 = arith.constant 0 : index
      %c0_12 = arith.constant 0 : index
      %13 = vector.load %arg7[%c0_11, %c0_12] : memref<256x128xf32, #tpu.memory_space<vmem>>, vector<256x128xf32>
      tpu.vector_store %arg7[%c0_11, %c0_12], %12 {strides = array<i32>} : memref<256x128xf32, #tpu.memory_space<vmem>>, vector<256x128xf32>,
    } else {
    }
    %c0 = arith.constant 0 : index
    %c0_1 = arith.constant 0 : index
    %3 = vector.load %arg7[%c0, %c0_1] : memref<256x128xf32, #tpu.memory_space<vmem>>, vector<256x128xf32>
    %c0_2 = arith.constant 0 : index
    %c0_3 = arith.constant 0 : index
    %4 = vector.load %arg3[%c0_2, %c0_3] : memref<256x128xbf16, #tpu.memory_space<vmem>>, vector<256x128xbf16>
    %c0_4 = arith.constant 0 : index
    %c0_5 = arith.constant 0 : index
    %5 = vector.load %arg4[%c0_4, %c0_5] : memref<128x128xbf16, #tpu.memory_space<vmem>>, vector<128x128xbf16>
    %cst = arith.constant dense<0.000000e+00> : vector<256x128xf32>
    %6 = tpu.matmul %4, %5, %cst {dimension_numbers = #tpu.dot_dimension_numbers<[1], [0], [0], [1], [0, 0, 1, 1], [], []>} : vector<256x128xbf16>, vector<128x128xbf16>, vector<256x128xf32> -> vector<256x128xf32>
    %7 = arith.addf %3, %6 : vector<256x128xf32>
    %c0_6 = arith.constant 0 : index
    %c0_7 = arith.constant 0 : index
    %8 = vector.load %arg7[%c0_6, %c0_7] : memref<256x128xf32, #tpu.memory_space<vmem>>, vector<256x128xf32>
    tpu.vector_store %arg7[%c0_6, %c0_7], %7 {strides = array<i32>} : memref<256x128xf32, #tpu.memory_space<vmem>>, vector<256x128xf32>,
    %c0_i32_8 = arith.constant 0 : i32
    %9 = arith.cmpi eq, %arg2, %c0_i32_8 : i32
    %10 = arith.extui %9 : i1 to i32
    %c0_i32_9 = arith.constant 0 : i32
    %11 = arith.cmpi ne, %10, %c0_i32_9 : i32
    scf.if %11 {
      %c0_10 = arith.constant 0 : index
      %c0_11 = arith.constant 0 : index
      %12 = vector.load %arg7[%c0_10, %c0_11] : memref<256x128xf32, #tpu.memory_space<vmem>>, vector<256x128xf32>
      %c0_12 = arith.constant 0 : index
      %c0_13 = arith.constant 0 : index
      %13 = vector.load %arg5[%c0_12, %c0_13] : memref<1x128xf32, #tpu.memory_space<vmem>>, vector<1x128xf32>
      %14 = vector.broadcast %13 : vector<1x128xf32> to vector<256x128xf32>
      %15 = arith.addf %12, %14 : vector<256x128xf32>
      %cst_14 = arith.constant 0.000000e+00 : f32
      %16 = vector.broadcast %cst_14 : f32 to vector<256x128xf32>
      %17 = arith.cmpf ogt, %15, %16 : vector<256x128xf32>
      %cst_15 = arith.constant 2.000000e-01 : f32
      %18 = vector.broadcast %cst_15 : f32 to vector<256x128xf32>
      %19 = arith.mulf %18, %15 : vector<256x128xf32>
      %20 = arith.select %17, %15, %19 : vector<256x128xi1>, vector<256x128xf32>
      %21 = arith.truncf %20 : vector<256x128xf32> to vector<256x128xbf16>
      %c0_16 = arith.constant 0 : index
      %c0_17 = arith.constant 0 : index
      %22 = vector.load %arg6[%c0_16, %c0_17] : memref<256x128xbf16, #tpu.memory_space<vmem>>, vector<256x128xbf16>
      tpu.vector_store %arg6[%c0_16, %c0_17], %21 {strides = array<i32>} : memref<256x128xbf16, #tpu.memory_space<vmem>>, vector<256x128xbf16>,
    } else {
    }
    return
  }
  func.func @transform_0(%arg0: i32, %arg1: i32, %arg2: i32) -> (i32, i32) {
    %c0_i32 = arith.constant 0 : i32
    return %arg0, %arg2 : i32, i32
  }
  func.func @transform_1(%arg0: i32, %arg1: i32, %arg2: i32) -> (i32, i32) {
    %c0_i32 = arith.constant 0 : i32
    return %arg2, %arg1 : i32, i32
  }
  func.func @transform_2(%arg0: i32, %arg1: i32, %arg2: i32) -> (i32, i32) {
    %c0_i32 = arith.constant 0 : i32
    %c0_i32_0 = arith.constant 0 : i32
    return %c0_i32, %arg1 : i32, i32
  }
  func.func @transform_3(%arg0: i32, %arg1: i32, %arg2: i32) -> (i32, i32) {
    %c0_i32 = arith.constant 0 : i32
    return %arg0, %arg1 : i32, i32
  }
}

module attributes {stable_mosaic.version = 11 : i64} {
  func.func @_mm_stats_kernel(%arg0: i32, %arg1: i32, %arg2: i32, %arg3: memref<64x128xbf16, #tpu.memory_space<vmem>>, %arg4: memref<128x128xbf16, #tpu.memory_space<vmem>>, %arg5: memref<64x128xbf16, #tpu.memory_space<vmem>>, %arg6: memref<8x128xf32, #tpu.memory_space<vmem>>, %arg7: memref<64x128xf32, #tpu.memory_space<vmem>>) attributes {dimension_semantics = [#tpu.dimension_semantics<parallel>, #tpu.dimension_semantics<parallel>, #tpu.dimension_semantics<arbitrary>], iteration_bounds = array<i64: 2, 1, 1>, scalar_prefetch = 0 : i64, scratch_operands = 1 : i64, tpu.core_type = #tpu.core_type<tc>, window_params = [{transform_indices = @transform_0, window_bounds = array<i64: 64, 128>}, {transform_indices = @transform_1, window_bounds = array<i64: 128, 128>}, {transform_indices = @transform_2, window_bounds = array<i64: 64, 128>}, {transform_indices = @transform_3, window_bounds = array<i64: 8, 128>}]} {
    %c0_i32 = arith.constant 0 : i32
    %0 = arith.cmpi eq, %arg2, %c0_i32 : i32
    %1 = arith.extui %0 : i1 to i32
    %c0_i32_0 = arith.constant 0 : i32
    %2 = arith.cmpi ne, %1, %c0_i32_0 : i32
    scf.if %2 {
      %cst_10 = arith.constant 0.000000e+00 : f32
      %12 = vector.broadcast %cst_10 : f32 to vector<64x128xf32>
      %c0_11 = arith.constant 0 : index
      %c0_12 = arith.constant 0 : index
      %13 = vector.load %arg7[%c0_11, %c0_12] : memref<64x128xf32, #tpu.memory_space<vmem>>, vector<64x128xf32>
      tpu.vector_store %arg7[%c0_11, %c0_12], %12 {strides = array<i32>} : memref<64x128xf32, #tpu.memory_space<vmem>>, vector<64x128xf32>,
    } else {
    }
    %c0 = arith.constant 0 : index
    %c0_1 = arith.constant 0 : index
    %3 = vector.load %arg7[%c0, %c0_1] : memref<64x128xf32, #tpu.memory_space<vmem>>, vector<64x128xf32>
    %c0_2 = arith.constant 0 : index
    %c0_3 = arith.constant 0 : index
    %4 = vector.load %arg3[%c0_2, %c0_3] : memref<64x128xbf16, #tpu.memory_space<vmem>>, vector<64x128xbf16>
    %c0_4 = arith.constant 0 : index
    %c0_5 = arith.constant 0 : index
    %5 = vector.load %arg4[%c0_4, %c0_5] : memref<128x128xbf16, #tpu.memory_space<vmem>>, vector<128x128xbf16>
    %cst = arith.constant dense<0.000000e+00> : vector<64x128xf32>
    %6 = tpu.matmul %4, %5, %cst {dimension_numbers = #tpu.dot_dimension_numbers<[1], [0], [0], [1], [0, 0, 1, 1], [], []>} : vector<64x128xbf16>, vector<128x128xbf16>, vector<64x128xf32> -> vector<64x128xf32>
    %7 = arith.addf %3, %6 : vector<64x128xf32>
    %c0_6 = arith.constant 0 : index
    %c0_7 = arith.constant 0 : index
    %8 = vector.load %arg7[%c0_6, %c0_7] : memref<64x128xf32, #tpu.memory_space<vmem>>, vector<64x128xf32>
    tpu.vector_store %arg7[%c0_6, %c0_7], %7 {strides = array<i32>} : memref<64x128xf32, #tpu.memory_space<vmem>>, vector<64x128xf32>,
    %c0_i32_8 = arith.constant 0 : i32
    %9 = arith.cmpi eq, %arg2, %c0_i32_8 : i32
    %10 = arith.extui %9 : i1 to i32
    %c0_i32_9 = arith.constant 0 : i32
    %11 = arith.cmpi ne, %10, %c0_i32_9 : i32
    scf.if %11 {
      %c0_10 = arith.constant 0 : index
      %c0_11 = arith.constant 0 : index
      %12 = vector.load %arg7[%c0_10, %c0_11] : memref<64x128xf32, #tpu.memory_space<vmem>>, vector<64x128xf32>
      %13 = arith.truncf %12 : vector<64x128xf32> to vector<64x128xbf16>
      %c0_12 = arith.constant 0 : index
      %c0_13 = arith.constant 0 : index
      %14 = vector.load %arg5[%c0_12, %c0_13] : memref<64x128xbf16, #tpu.memory_space<vmem>>, vector<64x128xbf16>
      tpu.vector_store %arg5[%c0_12, %c0_13], %13 {strides = array<i32>} : memref<64x128xbf16, #tpu.memory_space<vmem>>, vector<64x128xbf16>,
      %cst_14 = arith.constant dense<0.000000e+00> : vector<128xf32>
      %15 = vector.multi_reduction <add>, %12, %cst_14 [0] : vector<64x128xf32> to vector<128xf32>
      %16 = vector.shape_cast %15 : vector<128xf32> to vector<1x128xf32>
      %17 = arith.mulf %12, %12 : vector<64x128xf32>
      %cst_15 = arith.constant dense<0.000000e+00> : vector<128xf32>
      %18 = vector.multi_reduction <add>, %17, %cst_15 [0] : vector<64x128xf32> to vector<128xf32>
      %19 = vector.shape_cast %18 : vector<128xf32> to vector<1x128xf32>
      %20 = tpu.iota {dimensions = array<i32: 0>} : vector<8x128xi32>
      %c0_i32_16 = arith.constant 0 : i32
      %21 = vector.broadcast %c0_i32_16 : i32 to vector<8x128xi32>
      %22 = arith.cmpi eq, %20, %21 : vector<8x128xi32>
      %c1_i32 = arith.constant 1 : i32
      %23 = vector.broadcast %c1_i32 : i32 to vector<8x128xi32>
      %24 = arith.cmpi eq, %20, %23 : vector<8x128xi32>
      %cst_17 = arith.constant 0.000000e+00 : f32
      %25 = vector.shape_cast %19 : vector<1x128xf32> to vector<1x128xf32>
      %26 = vector.broadcast %25 : vector<1x128xf32> to vector<8x128xf32>
      %27 = vector.broadcast %cst_17 : f32 to vector<8x128xf32>
      %28 = arith.select %24, %26, %27 : vector<8x128xi1>, vector<8x128xf32>
      %29 = vector.shape_cast %16 : vector<1x128xf32> to vector<1x128xf32>
      %30 = vector.broadcast %29 : vector<1x128xf32> to vector<8x128xf32>
      %31 = arith.select %22, %30, %28 : vector<8x128xi1>, vector<8x128xf32>
      %c0_18 = arith.constant 0 : index
      %c0_19 = arith.constant 0 : index
      %32 = vector.load %arg6[%c0_18, %c0_19] : memref<8x128xf32, #tpu.memory_space<vmem>>, vector<8x128xf32>
      tpu.vector_store %arg6[%c0_18, %c0_19], %31 {strides = array<i32>} : memref<8x128xf32, #tpu.memory_space<vmem>>, vector<8x128xf32>,
    } else {
    }
    return
  }
  func.func @transform_0(%arg0: i32, %arg1: i32, %arg2: i32) -> (i32, i32) {
    %c0_i32 = arith.constant 0 : i32
    return %arg0, %arg2 : i32, i32
  }
  func.func @transform_1(%arg0: i32, %arg1: i32, %arg2: i32) -> (i32, i32) {
    %c0_i32 = arith.constant 0 : i32
    return %arg2, %arg1 : i32, i32
  }
  func.func @transform_2(%arg0: i32, %arg1: i32, %arg2: i32) -> (i32, i32) {
    %c0_i32 = arith.constant 0 : i32
    return %arg0, %arg1 : i32, i32
  }
  func.func @transform_3(%arg0: i32, %arg1: i32, %arg2: i32) -> (i32, i32) {
    %c0_i32 = arith.constant 0 : i32
    return %arg0, %arg1 : i32, i32
  }
}

module attributes {stable_mosaic.version = 11 : i64} {
  func.func @_mm_stats_kernel(%arg0: i32, %arg1: i32, %arg2: i32, %arg3: memref<16x256xbf16, #tpu.memory_space<vmem>>, %arg4: memref<256x128xbf16, #tpu.memory_space<vmem>>, %arg5: memref<16x128xbf16, #tpu.memory_space<vmem>>, %arg6: memref<8x128xf32, #tpu.memory_space<vmem>>, %arg7: memref<16x128xf32, #tpu.memory_space<vmem>>) attributes {dimension_semantics = [#tpu.dimension_semantics<parallel>, #tpu.dimension_semantics<parallel>, #tpu.dimension_semantics<arbitrary>], iteration_bounds = array<i64: 2, 1, 1>, scalar_prefetch = 0 : i64, scratch_operands = 1 : i64, tpu.core_type = #tpu.core_type<tc>, window_params = [{transform_indices = @transform_0, window_bounds = array<i64: 16, 256>}, {transform_indices = @transform_1, window_bounds = array<i64: 256, 128>}, {transform_indices = @transform_2, window_bounds = array<i64: 16, 128>}, {transform_indices = @transform_3, window_bounds = array<i64: 8, 128>}]} {
    %c0_i32 = arith.constant 0 : i32
    %0 = arith.cmpi eq, %arg2, %c0_i32 : i32
    %1 = arith.extui %0 : i1 to i32
    %c0_i32_0 = arith.constant 0 : i32
    %2 = arith.cmpi ne, %1, %c0_i32_0 : i32
    scf.if %2 {
      %cst_10 = arith.constant 0.000000e+00 : f32
      %12 = vector.broadcast %cst_10 : f32 to vector<16x128xf32>
      %c0_11 = arith.constant 0 : index
      %c0_12 = arith.constant 0 : index
      %13 = vector.load %arg7[%c0_11, %c0_12] : memref<16x128xf32, #tpu.memory_space<vmem>>, vector<16x128xf32>
      tpu.vector_store %arg7[%c0_11, %c0_12], %12 {strides = array<i32>} : memref<16x128xf32, #tpu.memory_space<vmem>>, vector<16x128xf32>,
    } else {
    }
    %c0 = arith.constant 0 : index
    %c0_1 = arith.constant 0 : index
    %3 = vector.load %arg7[%c0, %c0_1] : memref<16x128xf32, #tpu.memory_space<vmem>>, vector<16x128xf32>
    %c0_2 = arith.constant 0 : index
    %c0_3 = arith.constant 0 : index
    %4 = vector.load %arg3[%c0_2, %c0_3] : memref<16x256xbf16, #tpu.memory_space<vmem>>, vector<16x256xbf16>
    %c0_4 = arith.constant 0 : index
    %c0_5 = arith.constant 0 : index
    %5 = vector.load %arg4[%c0_4, %c0_5] : memref<256x128xbf16, #tpu.memory_space<vmem>>, vector<256x128xbf16>
    %cst = arith.constant dense<0.000000e+00> : vector<16x128xf32>
    %6 = tpu.matmul %4, %5, %cst {dimension_numbers = #tpu.dot_dimension_numbers<[1], [0], [0], [1], [0, 0, 1, 1], [], []>} : vector<16x256xbf16>, vector<256x128xbf16>, vector<16x128xf32> -> vector<16x128xf32>
    %7 = arith.addf %3, %6 : vector<16x128xf32>
    %c0_6 = arith.constant 0 : index
    %c0_7 = arith.constant 0 : index
    %8 = vector.load %arg7[%c0_6, %c0_7] : memref<16x128xf32, #tpu.memory_space<vmem>>, vector<16x128xf32>
    tpu.vector_store %arg7[%c0_6, %c0_7], %7 {strides = array<i32>} : memref<16x128xf32, #tpu.memory_space<vmem>>, vector<16x128xf32>,
    %c0_i32_8 = arith.constant 0 : i32
    %9 = arith.cmpi eq, %arg2, %c0_i32_8 : i32
    %10 = arith.extui %9 : i1 to i32
    %c0_i32_9 = arith.constant 0 : i32
    %11 = arith.cmpi ne, %10, %c0_i32_9 : i32
    scf.if %11 {
      %c0_10 = arith.constant 0 : index
      %c0_11 = arith.constant 0 : index
      %12 = vector.load %arg7[%c0_10, %c0_11] : memref<16x128xf32, #tpu.memory_space<vmem>>, vector<16x128xf32>
      %13 = arith.truncf %12 : vector<16x128xf32> to vector<16x128xbf16>
      %c0_12 = arith.constant 0 : index
      %c0_13 = arith.constant 0 : index
      %14 = vector.load %arg5[%c0_12, %c0_13] : memref<16x128xbf16, #tpu.memory_space<vmem>>, vector<16x128xbf16>
      tpu.vector_store %arg5[%c0_12, %c0_13], %13 {strides = array<i32>} : memref<16x128xbf16, #tpu.memory_space<vmem>>, vector<16x128xbf16>,
      %cst_14 = arith.constant dense<0.000000e+00> : vector<128xf32>
      %15 = vector.multi_reduction <add>, %12, %cst_14 [0] : vector<16x128xf32> to vector<128xf32>
      %16 = vector.shape_cast %15 : vector<128xf32> to vector<1x128xf32>
      %17 = arith.mulf %12, %12 : vector<16x128xf32>
      %cst_15 = arith.constant dense<0.000000e+00> : vector<128xf32>
      %18 = vector.multi_reduction <add>, %17, %cst_15 [0] : vector<16x128xf32> to vector<128xf32>
      %19 = vector.shape_cast %18 : vector<128xf32> to vector<1x128xf32>
      %20 = tpu.iota {dimensions = array<i32: 0>} : vector<8x128xi32>
      %c0_i32_16 = arith.constant 0 : i32
      %21 = vector.broadcast %c0_i32_16 : i32 to vector<8x128xi32>
      %22 = arith.cmpi eq, %20, %21 : vector<8x128xi32>
      %c1_i32 = arith.constant 1 : i32
      %23 = vector.broadcast %c1_i32 : i32 to vector<8x128xi32>
      %24 = arith.cmpi eq, %20, %23 : vector<8x128xi32>
      %cst_17 = arith.constant 0.000000e+00 : f32
      %25 = vector.shape_cast %19 : vector<1x128xf32> to vector<1x128xf32>
      %26 = vector.broadcast %25 : vector<1x128xf32> to vector<8x128xf32>
      %27 = vector.broadcast %cst_17 : f32 to vector<8x128xf32>
      %28 = arith.select %24, %26, %27 : vector<8x128xi1>, vector<8x128xf32>
      %29 = vector.shape_cast %16 : vector<1x128xf32> to vector<1x128xf32>
      %30 = vector.broadcast %29 : vector<1x128xf32> to vector<8x128xf32>
      %31 = arith.select %22, %30, %28 : vector<8x128xi1>, vector<8x128xf32>
      %c0_18 = arith.constant 0 : index
      %c0_19 = arith.constant 0 : index
      %32 = vector.load %arg6[%c0_18, %c0_19] : memref<8x128xf32, #tpu.memory_space<vmem>>, vector<8x128xf32>
      tpu.vector_store %arg6[%c0_18, %c0_19], %31 {strides = array<i32>} : memref<8x128xf32, #tpu.memory_space<vmem>>, vector<8x128xf32>,
    } else {
    }
    return
  }
  func.func @transform_0(%arg0: i32, %arg1: i32, %arg2: i32) -> (i32, i32) {
    %c0_i32 = arith.constant 0 : i32
    return %arg0, %arg2 : i32, i32
  }
  func.func @transform_1(%arg0: i32, %arg1: i32, %arg2: i32) -> (i32, i32) {
    %c0_i32 = arith.constant 0 : i32
    return %arg2, %arg1 : i32, i32
  }
  func.func @transform_2(%arg0: i32, %arg1: i32, %arg2: i32) -> (i32, i32) {
    %c0_i32 = arith.constant 0 : i32
    return %arg0, %arg1 : i32, i32
  }
  func.func @transform_3(%arg0: i32, %arg1: i32, %arg2: i32) -> (i32, i32) {
    %c0_i32 = arith.constant 0 : i32
    return %arg0, %arg1 : i32, i32
  }
}

module attributes {stable_mosaic.version = 11 : i64} {
  func.func @_mm_stats_kernel(%arg0: i32, %arg1: i32, %arg2: i32, %arg3: memref<16x512xbf16, #tpu.memory_space<vmem>>, %arg4: memref<512x128xbf16, #tpu.memory_space<vmem>>, %arg5: memref<16x128xbf16, #tpu.memory_space<vmem>>, %arg6: memref<8x128xf32, #tpu.memory_space<vmem>>, %arg7: memref<16x128xf32, #tpu.memory_space<vmem>>) attributes {dimension_semantics = [#tpu.dimension_semantics<parallel>, #tpu.dimension_semantics<parallel>, #tpu.dimension_semantics<arbitrary>], iteration_bounds = array<i64: 2, 1, 1>, scalar_prefetch = 0 : i64, scratch_operands = 1 : i64, tpu.core_type = #tpu.core_type<tc>, window_params = [{transform_indices = @transform_0, window_bounds = array<i64: 16, 512>}, {transform_indices = @transform_1, window_bounds = array<i64: 512, 128>}, {transform_indices = @transform_2, window_bounds = array<i64: 16, 128>}, {transform_indices = @transform_3, window_bounds = array<i64: 8, 128>}]} {
    %c0_i32 = arith.constant 0 : i32
    %0 = arith.cmpi eq, %arg2, %c0_i32 : i32
    %1 = arith.extui %0 : i1 to i32
    %c0_i32_0 = arith.constant 0 : i32
    %2 = arith.cmpi ne, %1, %c0_i32_0 : i32
    scf.if %2 {
      %cst_10 = arith.constant 0.000000e+00 : f32
      %12 = vector.broadcast %cst_10 : f32 to vector<16x128xf32>
      %c0_11 = arith.constant 0 : index
      %c0_12 = arith.constant 0 : index
      %13 = vector.load %arg7[%c0_11, %c0_12] : memref<16x128xf32, #tpu.memory_space<vmem>>, vector<16x128xf32>
      tpu.vector_store %arg7[%c0_11, %c0_12], %12 {strides = array<i32>} : memref<16x128xf32, #tpu.memory_space<vmem>>, vector<16x128xf32>,
    } else {
    }
    %c0 = arith.constant 0 : index
    %c0_1 = arith.constant 0 : index
    %3 = vector.load %arg7[%c0, %c0_1] : memref<16x128xf32, #tpu.memory_space<vmem>>, vector<16x128xf32>
    %c0_2 = arith.constant 0 : index
    %c0_3 = arith.constant 0 : index
    %4 = vector.load %arg3[%c0_2, %c0_3] : memref<16x512xbf16, #tpu.memory_space<vmem>>, vector<16x512xbf16>
    %c0_4 = arith.constant 0 : index
    %c0_5 = arith.constant 0 : index
    %5 = vector.load %arg4[%c0_4, %c0_5] : memref<512x128xbf16, #tpu.memory_space<vmem>>, vector<512x128xbf16>
    %cst = arith.constant dense<0.000000e+00> : vector<16x128xf32>
    %6 = tpu.matmul %4, %5, %cst {dimension_numbers = #tpu.dot_dimension_numbers<[1], [0], [0], [1], [0, 0, 1, 1], [], []>} : vector<16x512xbf16>, vector<512x128xbf16>, vector<16x128xf32> -> vector<16x128xf32>
    %7 = arith.addf %3, %6 : vector<16x128xf32>
    %c0_6 = arith.constant 0 : index
    %c0_7 = arith.constant 0 : index
    %8 = vector.load %arg7[%c0_6, %c0_7] : memref<16x128xf32, #tpu.memory_space<vmem>>, vector<16x128xf32>
    tpu.vector_store %arg7[%c0_6, %c0_7], %7 {strides = array<i32>} : memref<16x128xf32, #tpu.memory_space<vmem>>, vector<16x128xf32>,
    %c0_i32_8 = arith.constant 0 : i32
    %9 = arith.cmpi eq, %arg2, %c0_i32_8 : i32
    %10 = arith.extui %9 : i1 to i32
    %c0_i32_9 = arith.constant 0 : i32
    %11 = arith.cmpi ne, %10, %c0_i32_9 : i32
    scf.if %11 {
      %c0_10 = arith.constant 0 : index
      %c0_11 = arith.constant 0 : index
      %12 = vector.load %arg7[%c0_10, %c0_11] : memref<16x128xf32, #tpu.memory_space<vmem>>, vector<16x128xf32>
      %13 = arith.truncf %12 : vector<16x128xf32> to vector<16x128xbf16>
      %c0_12 = arith.constant 0 : index
      %c0_13 = arith.constant 0 : index
      %14 = vector.load %arg5[%c0_12, %c0_13] : memref<16x128xbf16, #tpu.memory_space<vmem>>, vector<16x128xbf16>
      tpu.vector_store %arg5[%c0_12, %c0_13], %13 {strides = array<i32>} : memref<16x128xbf16, #tpu.memory_space<vmem>>, vector<16x128xbf16>,
      %cst_14 = arith.constant dense<0.000000e+00> : vector<128xf32>
      %15 = vector.multi_reduction <add>, %12, %cst_14 [0] : vector<16x128xf32> to vector<128xf32>
      %16 = vector.shape_cast %15 : vector<128xf32> to vector<1x128xf32>
      %17 = arith.mulf %12, %12 : vector<16x128xf32>
      %cst_15 = arith.constant dense<0.000000e+00> : vector<128xf32>
      %18 = vector.multi_reduction <add>, %17, %cst_15 [0] : vector<16x128xf32> to vector<128xf32>
      %19 = vector.shape_cast %18 : vector<128xf32> to vector<1x128xf32>
      %20 = tpu.iota {dimensions = array<i32: 0>} : vector<8x128xi32>
      %c0_i32_16 = arith.constant 0 : i32
      %21 = vector.broadcast %c0_i32_16 : i32 to vector<8x128xi32>
      %22 = arith.cmpi eq, %20, %21 : vector<8x128xi32>
      %c1_i32 = arith.constant 1 : i32
      %23 = vector.broadcast %c1_i32 : i32 to vector<8x128xi32>
      %24 = arith.cmpi eq, %20, %23 : vector<8x128xi32>
      %cst_17 = arith.constant 0.000000e+00 : f32
      %25 = vector.shape_cast %19 : vector<1x128xf32> to vector<1x128xf32>
      %26 = vector.broadcast %25 : vector<1x128xf32> to vector<8x128xf32>
      %27 = vector.broadcast %cst_17 : f32 to vector<8x128xf32>
      %28 = arith.select %24, %26, %27 : vector<8x128xi1>, vector<8x128xf32>
      %29 = vector.shape_cast %16 : vector<1x128xf32> to vector<1x128xf32>
      %30 = vector.broadcast %29 : vector<1x128xf32> to vector<8x128xf32>
      %31 = arith.select %22, %30, %28 : vector<8x128xi1>, vector<8x128xf32>
      %c0_18 = arith.constant 0 : index
      %c0_19 = arith.constant 0 : index
      %32 = vector.load %arg6[%c0_18, %c0_19] : memref<8x128xf32, #tpu.memory_space<vmem>>, vector<8x128xf32>
      tpu.vector_store %arg6[%c0_18, %c0_19], %31 {strides = array<i32>} : memref<8x128xf32, #tpu.memory_space<vmem>>, vector<8x128xf32>,
    } else {
    }
    return
  }
  func.func @transform_0(%arg0: i32, %arg1: i32, %arg2: i32) -> (i32, i32) {
    %c0_i32 = arith.constant 0 : i32
    return %arg0, %arg2 : i32, i32
  }
  func.func @transform_1(%arg0: i32, %arg1: i32, %arg2: i32) -> (i32, i32) {
    %c0_i32 = arith.constant 0 : i32
    return %arg2, %arg1 : i32, i32
  }
  func.func @transform_2(%arg0: i32, %arg1: i32, %arg2: i32) -> (i32, i32) {
    %c0_i32 = arith.constant 0 : i32
    return %arg0, %arg1 : i32, i32
  }
  func.func @transform_3(%arg0: i32, %arg1: i32, %arg2: i32) -> (i32, i32) {
    %c0_i32 = arith.constant 0 : i32
    return %arg0, %arg1 : i32, i32
  }
}

module attributes {stable_mosaic.version = 11 : i64} {
  func.func @_mv_kernel(%arg0: i32, %arg1: i32, %arg2: memref<8x512xbf16, #tpu.memory_space<vmem>>, %arg3: memref<1x512xbf16, #tpu.memory_space<vmem>>, %arg4: memref<8x1xf32, #tpu.memory_space<vmem>>, %arg5: memref<8x1xf32, #tpu.memory_space<vmem>>) attributes {dimension_semantics = [#tpu.dimension_semantics<parallel>, #tpu.dimension_semantics<arbitrary>], iteration_bounds = array<i64: 1, 2>, scalar_prefetch = 0 : i64, scratch_operands = 1 : i64, tpu.core_type = #tpu.core_type<tc>, window_params = [{transform_indices = @transform_0, window_bounds = array<i64: 8, 512>}, {transform_indices = @transform_1, window_bounds = array<i64: 1, 512>}, {transform_indices = @transform_2, window_bounds = array<i64: 8, 1>}]} {
    %c0_i32 = arith.constant 0 : i32
    %0 = arith.cmpi eq, %arg1, %c0_i32 : i32
    %1 = arith.extui %0 : i1 to i32
    %c0_i32_0 = arith.constant 0 : i32
    %2 = arith.cmpi ne, %1, %c0_i32_0 : i32
    scf.if %2 {
      %cst_9 = arith.constant 0.000000e+00 : f32
      %17 = vector.broadcast %cst_9 : f32 to vector<8x1xf32>
      %c0_10 = arith.constant 0 : index
      %c0_11 = arith.constant 0 : index
      %18 = vector.load %arg5[%c0_10, %c0_11] : memref<8x1xf32, #tpu.memory_space<vmem>>, vector<8x1xf32>
      tpu.vector_store %arg5[%c0_10, %c0_11], %17 {strides = array<i32>} : memref<8x1xf32, #tpu.memory_space<vmem>>, vector<8x1xf32>,
    } else {
    }
    %c0 = arith.constant 0 : index
    %c0_1 = arith.constant 0 : index
    %3 = vector.load %arg2[%c0, %c0_1] : memref<8x512xbf16, #tpu.memory_space<vmem>>, vector<8x512xbf16>
    %4 = arith.extf %3 : vector<8x512xbf16> to vector<8x512xf32>
    %c0_2 = arith.constant 0 : index
    %c0_3 = arith.constant 0 : index
    %5 = vector.load %arg3[%c0_2, %c0_3] : memref<1x512xbf16, #tpu.memory_space<vmem>>, vector<1x512xbf16>
    %6 = arith.extf %5 : vector<1x512xbf16> to vector<1x512xf32>
    %7 = vector.broadcast %6 : vector<1x512xf32> to vector<8x512xf32>
    %8 = arith.mulf %4, %7 : vector<8x512xf32>
    %c0_4 = arith.constant 0 : index
    %c0_5 = arith.constant 0 : index
    %9 = vector.load %arg5[%c0_4, %c0_5] : memref<8x1xf32, #tpu.memory_space<vmem>>, vector<8x1xf32>
    %cst = arith.constant dense<0.000000e+00> : vector<8xf32>
    %10 = vector.multi_reduction <add>, %8, %cst [1] : vector<8x512xf32> to vector<8xf32>
    %11 = vector.shape_cast %10 : vector<8xf32> to vector<8x1xf32>
    %12 = arith.addf %9, %11 : vector<8x1xf32>
    %c0_6 = arith.constant 0 : index
    %c0_7 = arith.constant 0 : index
    %13 = vector.load %arg5[%c0_6, %c0_7] : memref<8x1xf32, #tpu.memory_space<vmem>>, vector<8x1xf32>
    tpu.vector_store %arg5[%c0_6, %c0_7], %12 {strides = array<i32>} : memref<8x1xf32, #tpu.memory_space<vmem>>, vector<8x1xf32>,
    %c1_i32 = arith.constant 1 : i32
    %14 = arith.cmpi eq, %arg1, %c1_i32 : i32
    %15 = arith.extui %14 : i1 to i32
    %c0_i32_8 = arith.constant 0 : i32
    %16 = arith.cmpi ne, %15, %c0_i32_8 : i32
    scf.if %16 {
      %c0_9 = arith.constant 0 : index
      %c0_10 = arith.constant 0 : index
      %17 = vector.load %arg5[%c0_9, %c0_10] : memref<8x1xf32, #tpu.memory_space<vmem>>, vector<8x1xf32>
      %c0_11 = arith.constant 0 : index
      %c0_12 = arith.constant 0 : index
      %18 = vector.load %arg4[%c0_11, %c0_12] : memref<8x1xf32, #tpu.memory_space<vmem>>, vector<8x1xf32>
      tpu.vector_store %arg4[%c0_11, %c0_12], %17 {strides = array<i32>} : memref<8x1xf32, #tpu.memory_space<vmem>>, vector<8x1xf32>,
    } else {
    }
    return
  }
  func.func @transform_0(%arg0: i32, %arg1: i32) -> (i32, i32) {
    %c0_i32 = arith.constant 0 : i32
    return %arg0, %arg1 : i32, i32
  }
  func.func @transform_1(%arg0: i32, %arg1: i32) -> (i32, i32) {
    %c0_i32 = arith.constant 0 : i32
    %c0_i32_0 = arith.constant 0 : i32
    return %c0_i32, %arg1 : i32, i32
  }
  func.func @transform_2(%arg0: i32, %arg1: i32) -> (i32, i32) {
    %c0_i32 = arith.constant 0 : i32
    %c0_i32_0 = arith.constant 0 : i32
    return %arg0, %c0_i32 : i32, i32
  }
}

</mosaic_0001>

<llo_original>
// kernel: _lambda_.5
$region0: #{_lambda_.5}
  #allocation0 [shape = 'u32[]', space=smem, size = 0x4, offset = 0x4, fixed_abs, tag = 'smem constant byte address 0x4 - core index']
  #allocation1 [shape = 'u32[144,128]{1,0:T(1,128)}', space=vmem, size = 0x12000, scoped, tag = 'internal scratch']
  #allocation2 [shape = 'f32[256,128]{1,0:T(8,128)}', space=vmem, size = 0x20000, scoped, tag = 'scratch operand']
  %s0 = inlined_call_operand.vmem [shape: bf16[512,128], index: 0, kind: input, shape index: {}]
  %s1 = inlined_call_operand.vmem [shape: bf16[128,128], index: 1, kind: input, shape index: {}]
  %s2 = inlined_call_operand.vmem [shape: f32[1,128], index: 2, kind: input, shape index: {}]
  %s3 = inlined_call_operand.vmem [shape: bf16[512,128], index: 3, kind: output, shape index: {}]
  %s4 = sld [smem:[#allocation0]]
  $region53: #{_lambda_.5} parent=0
    _
  %s6 = ssub.s32 1, %s4
  %s7 = scalar_select 0, %s6, %s4
  loop: start=0, step=1, limit=4
  $region2: #{_lambda_.5} parent=0 // loop_pre_header
    _
  $region3: #{_lambda_.5} parent=0 // loop_header
    %s9 = sphi 0, %s13
    %p10 = scmp.ge.s32.totalorder %s9, 4
    %s16 = sphi 0, %s35
    %s17 = sphi 0, %s31
    %s18 = sphi 0, %s27
    %s19 = sphi 0, %s16
    %s20 = sphi 0, %s17
    %s21 = sphi 0, %s18
    %s22 = sphi 0, %s19
    %s23 = sphi 0, %s20
    %s24 = sphi 0, %s21
    %s40 = sphi 0, %s42
    %s43 = sphi 0, %s40
    %s44 = sphi 0, %s43
    %s60 = sphi 0, %s44
    %s68 = sphi 0, %s70
    %s71 = sphi 0, %s68
    %s72 = sphi 0, %s71
    %s88 = sphi 0, %s72
    %s94 = sphi 0, %s96
    %s97 = sphi 0, %s94
    %s98 = sphi 0, %s97
    %s114 = sphi 0, %s98
    %s122 = sphi 0, %s124
    %s125 = sphi 0, %s122
    %s126 = sphi 0, %s125
    %s142 = sphi 0, %s126
  $region4: #{_lambda_.5} parent=0 // loop_header_branch
    %12 = sbr.rel (%p10) target = $region8
  $region5: #{_lambda_.5} parent=0 // loop_body
    %s14 = ssub.s32 %s9, 1
    %s15 = ssub.s32 %s9, 2
    %s25 = sadd.s32 1, %s18
    %p26 = scmp.ge.s32.totalorder %s25, 1
    %s27 = scalar_select %p26, 0, %s25
    %s28 = sadd.s32 1, %s17
    %s29 = scalar_select %p26, %s28, %s17
    %p30 = scmp.ge.s32.totalorder %s29, 1
    %s31 = scalar_select %p30, 0, %s29
    %s32 = sadd.s32 1, %s16
    %s33 = scalar_select %p30, %s32, %s16
    %p34 = scmp.ge.s32.totalorder %s33, 2
    %s35 = scalar_select %p34, 0, %s33
    %s36 = ssub.s32 %s16, %s35
    %s37 = ssub.s32 %s18, %s27
    %s38 = sor.u32 %s36, %s37
    %p39 = scmp.eq.s32.totalorder %s38, 0
    %s41 = sadd.s32 %s40, 1
    %s42 = scalar_select %p39, %s40, %s41
    %p45 = pneg %p39
    %p46 = scmp.eq.s32.totalorder %s9, 1
    %p47 = por %p45, %p46
    %p48 = scmp.ne.s32.totalorder %s40, %s43
    %p49 = scmp.eq.s32.totalorder %s9, 0
    %p50 = por %p48, %p49
    %p51 = scmp.ne.s32.totalorder %s40, %s43
    %p52 = scmp.eq.s32.totalorder %s14, 1
    %p53 = por %p51, %p52
    %p54 = scmp.ne.s32.totalorder %s43, %s44
    %p55 = scmp.eq.s32.totalorder %s14, 0
    %p56 = por %p54, %p55
    %p57 = scmp.ne.s32.totalorder %s43, %s44
    %p58 = scmp.eq.s32.totalorder %s15, 1
    %p59 = por %p57, %p58
    %p61 = scmp.ne.s32.totalorder %s44, %s60
    %p62 = scmp.eq.s32.totalorder %s15, 0
    %p63 = por %p61, %p62
    %s64 = ssub.s32 %s18, %s27
    %s65 = ssub.s32 %s17, %s31
    %s66 = sor.u32 %s64, %s65
    %p67 = scmp.eq.s32.totalorder %s66, 0
    %s69 = sadd.s32 %s68, 1
    %s70 = scalar_select %p67, %s68, %s69
    %p73 = pneg %p67
    %p74 = scmp.eq.s32.totalorder %s9, 1
    %p75 = por %p73, %p74
    %p76 = scmp.ne.s32.totalorder %s68, %s71
    %p77 = scmp.eq.s32.totalorder %s9, 0
    %p78 = por %p76, %p77
    %p79 = scmp.ne.s32.totalorder %s68, %s71
    %p80 = scmp.eq.s32.totalorder %s14, 1
    %p81 = por %p79, %p80
    %p82 = scmp.ne.s32.totalorder %s71, %s72
    %p83 = scmp.eq.s32.totalorder %s14, 0
    %p84 = por %p82, %p83
    %p85 = scmp.ne.s32.totalorder %s71, %s72
    %p86 = scmp.eq.s32.totalorder %s15, 1
    %p87 = por %p85, %p86
    %p89 = scmp.ne.s32.totalorder %s72, %s88
    %p90 = scmp.eq.s32.totalorder %s15, 0
    %p91 = por %p89, %p90
    %s92 = ssub.s32 %s17, %s31
    %p93 = scmp.eq.s32.totalorder %s92, 0
    %s95 = sadd.s32 %s94, 1
    %s96 = scalar_select %p93, %s94, %s95
    %p99 = pneg %p93
    %p100 = scmp.eq.s32.totalorder %s9, 1
    %p101 = por %p99, %p100
    %p102 = scmp.ne.s32.totalorder %s94, %s97
    %p103 = scmp.eq.s32.totalorder %s9, 0
    %p104 = por %p102, %p103
    %p105 = scmp.ne.s32.totalorder %s94, %s97
    %p106 = scmp.eq.s32.totalorder %s14, 1
    %p107 = por %p105, %p106
    %p108 = scmp.ne.s32.totalorder %s97, %s98
    %p109 = scmp.eq.s32.totalorder %s14, 0
    %p110 = por %p108, %p109
    %p111 = scmp.ne.s32.totalorder %s97, %s98
    %p112 = scmp.eq.s32.totalorder %s15, 1
    %p113 = por %p111, %p112
    %p115 = scmp.ne.s32.totalorder %s98, %s114
    %p116 = scmp.eq.s32.totalorder %s15, 0
    %p117 = por %p115, %p116
    %s118 = ssub.s32 %s16, %s35
    %s119 = ssub.s32 %s17, %s31
    %s120 = sor.u32 %s118, %s119
    %p121 = scmp.eq.s32.totalorder %s120, 0
    %s123 = sadd.s32 %s122, 1
    %s124 = scalar_select %p121, %s122, %s123
    %p127 = pneg %p121
    %p128 = scmp.eq.s32.totalorder %s9, 1
    %p129 = por %p127, %p128
    %p130 = scmp.ne.s32.totalorder %s122, %s125
    %p131 = scmp.eq.s32.totalorder %s9, 0
    %p132 = por %p130, %p131
    %p133 = scmp.ne.s32.totalorder %s122, %s125
    %p134 = scmp.eq.s32.totalorder %s14, 1
    %p135 = por %p133, %p134
    %p136 = scmp.ne.s32.totalorder %s125, %s126
    %p137 = scmp.eq.s32.totalorder %s14, 0
    %p138 = por %p136, %p137
    %p139 = scmp.ne.s32.totalorder %s125, %s126
    %p140 = scmp.eq.s32.totalorder %s15, 1
    %p141 = por %p139, %p140
    %p143 = scmp.ne.s32.totalorder %s126, %s142
    %p144 = scmp.eq.s32.totalorder %s15, 0
    %p145 = por %p143, %p144
    %p146 = scmp.le.s32.totalorder 1, %s9
    %p147 = scmp.lt.s32.totalorder %s9, 3
    %p148 = pnand %p146, %p147
    %p149 = pneg %p148
    // Predicated region
    $region9: #{_lambda_.5} parent=5 // pred_check
      _
    $region10: #{_lambda_.5} parent=5 // pred_check_branch
      %151 = sbr.rel (%p148) target = $region12
    $region11: #{_lambda_.5} parent=5 // pred_region
      %s152 = ssub.s32 %s9, 1
      // Predicated region
      $region13: #{_lambda_.5} parent=11 // pred_check
        %p153 = pneg %p84
      $region14: #{_lambda_.5} parent=11 // pred_check_branch
        %155 = sbr.rel (%p153) target = $region16
      $region15: #{_lambda_.5} parent=11 // pred_region
        %s156 = smul.u32 16, %s21
        %p157 = scmp.lt.s32.totalorder %s156, 15
        %s158 = scalar_select %p157, %s156, 15
        %p159 = scmp.lt.s32.totalorder %s20, 0
        %s160 = scalar_select %p159, %s20, 0
        %s161 = sadd.s32 %s160, %s158
        %s162 = smul.addr %s161, 4
        %s163 = scalar_lea.vmem %s1, %s162
        %s164 = smul.u32 16, %s21
      $region16: #{_lambda_.5} parent=11 // pred_fallthru
        _
      // Predicated region
      $region17: #{_lambda_.5} parent=11 // pred_check
        %p165 = pneg %p110
      $region18: #{_lambda_.5} parent=11 // pred_check_branch
        %167 = sbr.rel (%p165) target = $region20
      $region19: #{_lambda_.5} parent=11 // pred_region
        %p168 = scmp.lt.s32.totalorder %s20, 0
        %s169 = scalar_select %p168, %s20, 0
        %s170 = scalar_lea.vmem %s2, %s169
      $region20: #{_lambda_.5} parent=11 // pred_fallthru
        _
    $region12: #{_lambda_.5} parent=5 // pred_fallthru
      _
    %p171 = scmp.lt.s32.totalorder %s9, 2
    // Predicated region
    $region21: #{_lambda_.5} parent=5 // pred_check
      %p172 = pneg %p171
    $region22: #{_lambda_.5} parent=5 // pred_check_branch
      %174 = sbr.rel (%p172) target = $region24
    $region23: #{_lambda_.5} parent=5 // pred_region
      // Predicated region
      $region25: #{_lambda_.5} parent=23 // pred_check
        %p175 = pneg %p50
      $region26: #{_lambda_.5} parent=23 // pred_check_branch
        %177 = sbr.rel (%p175) target = $region28
      $region27: #{_lambda_.5} parent=23 // pred_region
        %s178 = smul.u32 32, %s16
        %p179 = scmp.lt.s32.totalorder %s178, 63
        %s180 = scalar_select %p179, %s178, 63
        %p181 = scmp.lt.s32.totalorder %s18, 0
        %s182 = scalar_select %p181, %s18, 0
        %s183 = sadd.s32 %s182, %s180
        %s184 = smul.addr %s183, 4
        %s185 = scalar_lea.vmem %s0, %s184
        %s186 = smul.u32 32, %s16
      $region28: #{_lambda_.5} parent=23 // pred_fallthru
        _
    $region24: #{_lambda_.5} parent=5 // pred_fallthru
      _
    %p187 = scmp.le.s32.totalorder 1, %s9
    %p188 = scmp.lt.s32.totalorder %s9, 3
    %p189 = pnand %p187, %p188
    %p190 = pneg %p189
    // Predicated region
    $region29: #{_lambda_.5} parent=5 // pred_check
      _
    $region30: #{_lambda_.5} parent=5 // pred_check_branch
      %192 = sbr.rel (%p189) target = $region32
    $region31: #{_lambda_.5} parent=5 // pred_region
      %s193 = ssub.s32 %s9, 1
      %s194 = smul.u32 32, %s19
      %p195 = scmp.lt.s32.totalorder %s194, 63
      %s196 = scalar_select %p195, %s194, 63
      %p197 = scmp.lt.s32.totalorder %s21, 0
      %s198 = scalar_select %p197, %s21, 0
      %s199 = sadd.s32 %s198, %s196
      %s200 = smul.addr %s199, 4
      %s201 = scalar_lea.vmem %s0, %s200
      %p202 = pneg %p56
      %p203 = pneg %p53
      %s204 = smul.u32 16, %s21
      %p205 = scmp.lt.s32.totalorder %s204, 15
      %s206 = scalar_select %p205, %s204, 15
      %p207 = scmp.lt.s32.totalorder %s20, 0
      %s208 = scalar_select %p207, %s20, 0
      %s209 = sadd.s32 %s208, %s206
      %s210 = smul.addr %s209, 4
      %s211 = scalar_lea.vmem %s1, %s210
      %p212 = pneg %p84
      %p213 = pneg %p81
      %p214 = scmp.lt.s32.totalorder %s20, 0
      %s215 = scalar_select %p214, %s20, 0
      %s216 = scalar_lea.vmem %s2, %s215
      %p217 = pneg %p110
      %p218 = pneg %p107
      %p219 = pneg %p138
      %p220 = pneg %p135
      %s221 = smul.u32 32, %s19
      %p222 = scmp.lt.s32.totalorder %s221, 63
      %s223 = scalar_select %p222, %s221, 63
      %p224 = scmp.lt.s32.totalorder %s20, 0
      %s225 = scalar_select %p224, %s20, 0
      %s226 = sadd.s32 %s225, %s223
      %s227 = smul.addr %s226, 4
      %s228 = scalar_lea.vmem %s3, %s227
      %s229 = smul.u32 32, %s19
      %p230 = scmp.lt.s32.totalorder %s229, 63
      %s231 = scalar_select %p230, %s229, 63
      %p232 = scmp.lt.s32.totalorder %s21, 0
      %s233 = scalar_select %p232, %s21, 0
      %s234 = sadd.s32 %s233, %s231
      %s235 = smul.addr %s234, 4
      %s236 = scalar_lea.vmem %s0, %s235
      %s237 = smul.u32 32, %s19
      %s238 = smul.u32 16, %s21
      %p239 = scmp.lt.s32.totalorder %s238, 15
      %s240 = scalar_select %p239, %s238, 15
      %p241 = scmp.lt.s32.totalorder %s20, 0
      %s242 = scalar_select %p241, %s20, 0
      %s243 = sadd.s32 %s242, %s240
      %s244 = smul.addr %s243, 4
      %s245 = scalar_lea.vmem %s1, %s244
      %s246 = smul.u32 16, %s21
      %p247 = scmp.lt.s32.totalorder %s20, 0
      %s248 = scalar_select %p247, %s20, 0
      %s249 = scalar_lea.vmem %s2, %s248
      %s250 = smul.u32 32, %s19
      %p251 = scmp.lt.s32.totalorder %s250, 63
      %s252 = scalar_select %p251, %s250, 63
      %p253 = scmp.lt.s32.totalorder %s20, 0
      %s254 = scalar_select %p253, %s20, 0
      %s255 = sadd.s32 %s254, %s252
      %s256 = smul.addr %s255, 4
      %s257 = scalar_lea.vmem %s3, %s256
      %s258 = smul.u32 32, %s19
      %p260 = scmp.eq.s32.totalorder %s21, 0
      // Predicated region
      $region33: #{_lambda_.5} parent=31 // pred_check
        %p261 = pneg %p260
      $region34: #{_lambda_.5} parent=31 // pred_check_branch
        %263 = sbr.rel (%p261) target = $region36
      $region35: #{_lambda_.5} parent=31 // pred_region
        %264 = vst [vmem:[#allocation2] sm:$0xff] 0.0
        %265 = vst [vmem:[#allocation2 + $0x8] sm:$0xff] 0.0
        %266 = vst [vmem:[#allocation2 + $0x10] sm:$0xff] 0.0
        %267 = vst [vmem:[#allocation2 + $0x18] sm:$0xff] 0.0
        %268 = vst [vmem:[#allocation2 + $0x20] sm:$0xff] 0.0
        %269 = vst [vmem:[#allocation2 + $0x28] sm:$0xff] 0.0
        %270 = vst [vmem:[#allocation2 + $0x30] sm:$0xff] 0.0
        %271 = vst [vmem:[#allocation2 + $0x38] sm:$0xff] 0.0
        %272 = vst [vmem:[#allocation2 + $0x40] sm:$0xff] 0.0
        %273 = vst [vmem:[#allocation2 + $0x48] sm:$0xff] 0.0
        %274 = vst [vmem:[#allocation2 + $0x50] sm:$0xff] 0.0
        %275 = vst [vmem:[#allocation2 + $0x58] sm:$0xff] 0.0
        %276 = vst [vmem:[#allocation2 + $0x60] sm:$0xff] 0.0
        %277 = vst [vmem:[#allocation2 + $0x68] sm:$0xff] 0.0
        %278 = vst [vmem:[#allocation2 + $0x70] sm:$0xff] 0.0
        %279 = vst [vmem:[#allocation2 + $0x78] sm:$0xff] 0.0
        %280 = vst [vmem:[#allocation2 + $0x80] sm:$0xff] 0.0
        %281 = vst [vmem:[#allocation2 + $0x88] sm:$0xff] 0.0
        %282 = vst [vmem:[#allocation2 + $0x90] sm:$0xff] 0.0
        %283 = vst [vmem:[#allocation2 + $0x98] sm:$0xff] 0.0
        %284 = vst [vmem:[#allocation2 + $0xa0] sm:$0xff] 0.0
        %285 = vst [vmem:[#allocation2 + $0xa8] sm:$0xff] 0.0
        %286 = vst [vmem:[#allocation2 + $0xb0] sm:$0xff] 0.0
        %287 = vst [vmem:[#allocation2 + $0xb8] sm:$0xff] 0.0
        %288 = vst [vmem:[#allocation2 + $0xc0] sm:$0xff] 0.0
        %289 = vst [vmem:[#allocation2 + $0xc8] sm:$0xff] 0.0
        %290 = vst [vmem:[#allocation2 + $0xd0] sm:$0xff] 0.0
        %291 = vst [vmem:[#allocation2 + $0xd8] sm:$0xff] 0.0
        %292 = vst [vmem:[#allocation2 + $0xe0] sm:$0xff] 0.0
        %293 = vst [vmem:[#allocation2 + $0xe8] sm:$0xff] 0.0
        %294 = vst [vmem:[#allocation2 + $0xf0] sm:$0xff] 0.0
        %295 = vst [vmem:[#allocation2 + $0xf8] sm:$0xff] 0.0
      $region36: #{_lambda_.5} parent=31 // pred_fallthru
        _
      %v296 = vld [vmem:[#allocation2] sm:$0xff]
      %v297 = vld [vmem:[#allocation2 + $0x8] sm:$0xff]
      %v298 = vld [vmem:[#allocation2 + $0x10] sm:$0xff]
      %v299 = vld [vmem:[#allocation2 + $0x18] sm:$0xff]
      %v300 = vld [vmem:[#allocation2 + $0x20] sm:$0xff]
      %v301 = vld [vmem:[#allocation2 + $0x28] sm:$0xff]
      %v302 = vld [vmem:[#allocation2 + $0x30] sm:$0xff]
      %v303 = vld [vmem:[#allocation2 + $0x38] sm:$0xff]
      %v304 = vld [vmem:[#allocation2 + $0x40] sm:$0xff]
      %v305 = vld [vmem:[#allocation2 + $0x48] sm:$0xff]
      %v306 = vld [vmem:[#allocation2 + $0x50] sm:$0xff]
      %v307 = vld [vmem:[#allocation2 + $0x58] sm:$0xff]
      %v308 = vld [vmem:[#allocation2 + $0x60] sm:$0xff]
      %v309 = vld [vmem:[#allocation2 + $0x68] sm:$0xff]
      %v310 = vld [vmem:[#allocation2 + $0x70] sm:$0xff]
      %v311 = vld [vmem:[#allocation2 + $0x78] sm:$0xff]
      %v312 = vld [vmem:[#allocation2 + $0x80] sm:$0xff]
      %v313 = vld [vmem:[#allocation2 + $0x88] sm:$0xff]
      %v314 = vld [vmem:[#allocation2 + $0x90] sm:$0xff]
      %v315 = vld [vmem:[#allocation2 + $0x98] sm:$0xff]
      %v316 = vld [vmem:[#allocation2 + $0xa0] sm:$0xff]
      %v317 = vld [vmem:[#allocation2 + $0xa8] sm:$0xff]
      %v318 = vld [vmem:[#allocation2 + $0xb0] sm:$0xff]
      %v319 = vld [vmem:[#allocation2 + $0xb8] sm:$0xff]
      %v320 = vld [vmem:[#allocation2 + $0xc0] sm:$0xff]
      %v321 = vld [vmem:[#allocation2 + $0xc8] sm:$0xff]
      %v322 = vld [vmem:[#allocation2 + $0xd0] sm:$0xff]
      %v323 = vld [vmem:[#allocation2 + $0xd8] sm:$0xff]
      %v324 = vld [vmem:[#allocation2 + $0xe0] sm:$0xff]
      %v325 = vld [vmem:[#allocation2 + $0xe8] sm:$0xff]
      %v326 = vld [vmem:[#allocation2 + $0xf0] sm:$0xff]
      %v327 = vld [vmem:[#allocation2 + $0xf8] sm:$0xff]
      %v328 = vld [vmem:[%s236] sm:$0xf]
      %v329 = vld [vmem:[%s236 + $0x4] sm:$0xf]
      %v330 = vld [vmem:[%s236 + $0x8] sm:$0xf]
      %v331 = vld [vmem:[%s236 + $0xc] sm:$0xf]
      %v332 = vld [vmem:[%s236 + $0x10] sm:$0xf]
      %v333 = vld [vmem:[%s236 + $0x14] sm:$0xf]
      %v334 = vld [vmem:[%s236 + $0x18] sm:$0xf]
      %v335 = vld [vmem:[%s236 + $0x1c] sm:$0xf]
      %v336 = vld [vmem:[%s236 + $0x20] sm:$0xf]
      %v337 = vld [vmem:[%s236 + $0x24] sm:$0xf]
      %v338 = vld [vmem:[%s236 + $0x28] sm:$0xf]
      %v339 = vld [vmem:[%s236 + $0x2c] sm:$0xf]
      %v340 = vld [vmem:[%s236 + $0x30] sm:$0xf]
      %v341 = vld [vmem:[%s236 + $0x34] sm:$0xf]
      %v342 = vld [vmem:[%s236 + $0x38] sm:$0xf]
      %v343 = vld [vmem:[%s236 + $0x3c] sm:$0xf]
      %v344 = vld [vmem:[%s236 + $0x40] sm:$0xf]
      %v345 = vld [vmem:[%s236 + $0x44] sm:$0xf]
      %v346 = vld [vmem:[%s236 + $0x48] sm:$0xf]
      %v347 = vld [vmem:[%s236 + $0x4c] sm:$0xf]
      %v348 = vld [vmem:[%s236 + $0x50] sm:$0xf]
      %v349 = vld [vmem:[%s236 + $0x54] sm:$0xf]
      %v350 = vld [vmem:[%s236 + $0x58] sm:$0xf]
      %v351 = vld [vmem:[%s236 + $0x5c] sm:$0xf]
      %v352 = vld [vmem:[%s236 + $0x60] sm:$0xf]
      %v353 = vld [vmem:[%s236 + $0x64] sm:$0xf]
      %v354 = vld [vmem:[%s236 + $0x68] sm:$0xf]
      %v355 = vld [vmem:[%s236 + $0x6c] sm:$0xf]
      %v356 = vld [vmem:[%s236 + $0x70] sm:$0xf]
      %v357 = vld [vmem:[%s236 + $0x74] sm:$0xf]
      %v358 = vld [vmem:[%s236 + $0x78] sm:$0xf]
      %v359 = vld [vmem:[%s236 + $0x7c] sm:$0xf]
      %v360 = vld [vmem:[%s245] sm:$0xf]
      %v361 = vld [vmem:[%s245 + $0x4] sm:$0xf]
      %v362 = vld [vmem:[%s245 + $0x8] sm:$0xf]
      %v363 = vld [vmem:[%s245 + $0xc] sm:$0xf]
      %v364 = vld [vmem:[%s245 + $0x10] sm:$0xf]
      %v365 = vld [vmem:[%s245 + $0x14] sm:$0xf]
      %v366 = vld [vmem:[%s245 + $0x18] sm:$0xf]
      %v367 = vld [vmem:[%s245 + $0x1c] sm:$0xf]
      %v368 = vld [vmem:[%s245 + $0x20] sm:$0xf]
      %v369 = vld [vmem:[%s245 + $0x24] sm:$0xf]
      %v370 = vld [vmem:[%s245 + $0x28] sm:$0xf]
      %v371 = vld [vmem:[%s245 + $0x2c] sm:$0xf]
      %v372 = vld [vmem:[%s245 + $0x30] sm:$0xf]
      %v373 = vld [vmem:[%s245 + $0x34] sm:$0xf]
      %v374 = vld [vmem:[%s245 + $0x38] sm:$0xf]
      %v375 = vld [vmem:[%s245 + $0x3c] sm:$0xf]
      %v408 = vunpack.c.l.b16 %v328
      %v409 = vunpack.c.l.b16 %v329
      %v410 = vunpack.c.l.b16 %v330
      %v411 = vunpack.c.l.b16 %v331
      %v412 = vunpack.c.l.b16 %v332
      %v413 = vunpack.c.l.b16 %v333
      %v414 = vunpack.c.l.b16 %v334
      %v415 = vunpack.c.l.b16 %v335
      %v416 = vunpack.c.l.b16 %v336
      %v417 = vunpack.c.l.b16 %v337
      %v418 = vunpack.c.l.b16 %v338
      %v419 = vunpack.c.l.b16 %v339
      %v420 = vunpack.c.l.b16 %v340
      %v421 = vunpack.c.l.b16 %v341
      %v422 = vunpack.c.l.b16 %v342
      %v423 = vunpack.c.l.b16 %v343
      %v424 = vunpack.c.l.b16 %v344
      %v425 = vunpack.c.l.b16 %v345
      %v426 = vunpack.c.l.b16 %v346
      %v427 = vunpack.c.l.b16 %v347
      %v428 = vunpack.c.l.b16 %v348
      %v429 = vunpack.c.l.b16 %v349
      %v430 = vunpack.c.l.b16 %v350
      %v431 = vunpack.c.l.b16 %v351
      %v432 = vunpack.c.l.b16 %v352
      %v433 = vunpack.c.l.b16 %v353
      %v434 = vunpack.c.l.b16 %v354
      %v435 = vunpack.c.l.b16 %v355
      %v436 = vunpack.c.l.b16 %v356
      %v437 = vunpack.c.l.b16 %v357
      %v438 = vunpack.c.l.b16 %v358
      %v439 = vunpack.c.l.b16 %v359
      %v440 = vpack.c.b16 %v409, %v408
      %v441 = vpack.c.b16 %v411, %v410
      %v442 = vpack.c.b16 %v413, %v412
      %v443 = vpack.c.b16 %v415, %v414
      %v444 = vpack.c.b16 %v417, %v416
      %v445 = vpack.c.b16 %v419, %v418
      %v446 = vpack.c.b16 %v421, %v420
      %v447 = vpack.c.b16 %v423, %v422
      %v448 = vpack.c.b16 %v425, %v424
      %v449 = vpack.c.b16 %v427, %v426
      %v450 = vpack.c.b16 %v429, %v428
      %v451 = vpack.c.b16 %v431, %v430
      %v452 = vpack.c.b16 %v433, %v432
      %v453 = vpack.c.b16 %v435, %v434
      %v454 = vpack.c.b16 %v437, %v436
      %v455 = vpack.c.b16 %v439, %v438
      %v488 = vunpack.c.l.b16 %v360
      %v489 = vunpack.c.l.b16 %v361
      %v490 = vunpack.c.l.b16 %v362
      %v491 = vunpack.c.l.b16 %v363
      %v492 = vunpack.c.l.b16 %v364
      %v493 = vunpack.c.l.b16 %v365
      %v494 = vunpack.c.l.b16 %v366
      %v495 = vunpack.c.l.b16 %v367
      %v496 = vunpack.c.l.b16 %v368
      %v497 = vunpack.c.l.b16 %v369
      %v498 = vunpack.c.l.b16 %v370
      %v499 = vunpack.c.l.b16 %v371
      %v500 = vunpack.c.l.b16 %v372
      %v501 = vunpack.c.l.b16 %v373
      %v502 = vunpack.c.l.b16 %v374
      %v503 = vunpack.c.l.b16 %v375
      %v504 = vpack.c.b16 %v489, %v488
      %v505 = vpack.c.b16 %v491, %v490
      %v506 = vpack.c.b16 %v493, %v492
      %v507 = vpack.c.b16 %v495, %v494
      %v508 = vpack.c.b16 %v497, %v496
      %v509 = vpack.c.b16 %v499, %v498
      %v510 = vpack.c.b16 %v501, %v500
      %v511 = vpack.c.b16 %v503, %v502
      %520 = vmatprep.subr.bf16.mxu0 0
      %521 = vmatpush1.bf16.msra.mxu0 %v511
      %522 = vmatprep.subr.bf16.mxu0 0
      %523 = vmatpush1.bf16.msra.mxu0 %v510
      %524 = vmatprep.subr.bf16.mxu0 0
      %525 = vmatpush1.bf16.msra.mxu0 %v509
      %526 = vmatprep.subr.bf16.mxu0 0
      %527 = vmatpush1.bf16.msra.mxu0 %v508
      %528 = vmatprep.subr.bf16.mxu0 0
      %529 = vmatpush1.bf16.msra.mxu0 %v507
      %530 = vmatprep.subr.bf16.mxu0 0
      %531 = vmatpush1.bf16.msra.mxu0 %v506
      %532 = vmatprep.subr.bf16.mxu0 0
      %533 = vmatpush1.bf16.msra.mxu0 %v505
      %534 = vmatprep.subr.bf16.mxu0 0
      %535 = vmatpush1.bf16.msra.mxu0 %v504
      %536 = vmatprep.subr.bf16.mxu0 0
      %537 = vmatpush2.bf16.msra.mxu0 0
      %538 = vmatprep.subr.bf16.mxu0 0
      %539 = vmatpush2.bf16.msra.mxu0 0
      %540 = vmatprep.subr.bf16.mxu0 0
      %541 = vmatpush2.bf16.msra.mxu0 0
      %542 = vmatprep.subr.bf16.mxu0 0
      %543 = vmatpush2.bf16.msra.mxu0 0
      %544 = vmatprep.subr.bf16.mxu0 0
      %545 = vmatpush2.bf16.msra.mxu0 0
      %546 = vmatprep.subr.bf16.mxu0 0
      %547 = vmatpush2.bf16.msra.mxu0 0
      %548 = vmatprep.subr.bf16.mxu0 0
      %549 = vmatpush2.bf16.msra.mxu0 0
      %550 = vmatprep.subr.bf16.mxu0 0
      %551 = vmatpush2.bf16.msra.mxu0 0
      %552 = vmatprep.mubr.bf16.mxu0 0
      %553 = vmatmul.mubr.bf16.gmra.mxu0 %v440
      %v554 = vpop.f32.mrf.mxu0
      %v555 = vadd.f32 0.0, %v554
      %v556 = vpop.f32.mrf.mxu0
      %v557 = vpop.f32.mrf.mxu0
      %v558 = vadd.f32 0.0, %v557
      %v559 = vpop.f32.mrf.mxu0
      %560 = vmatprep.mubr.bf16.mxu0 0
      %561 = vmatmul.mubr.bf16.gmra.mxu0 %v441
      %v562 = vpop.f32.mrf.mxu0
      %v563 = vadd.f32 0.0, %v562
      %v564 = vpop.f32.mrf.mxu0
      %v565 = vpop.f32.mrf.mxu0
      %v566 = vadd.f32 0.0, %v565
      %v567 = vpop.f32.mrf.mxu0
      %568 = vmatprep.mubr.bf16.mxu0 0
      %569 = vmatmul.mubr.bf16.gmra.mxu0 %v442
      %v570 = vpop.f32.mrf.mxu0
      %v571 = vadd.f32 0.0, %v570
      %v572 = vpop.f32.mrf.mxu0
      %v573 = vpop.f32.mrf.mxu0
      %v574 = vadd.f32 0.0, %v573
      %v575 = vpop.f32.mrf.mxu0
      %576 = vmatprep.mubr.bf16.mxu0 0
      %577 = vmatmul.mubr.bf16.gmra.mxu0 %v443
      %v578 = vpop.f32.mrf.mxu0
      %v579 = vadd.f32 0.0, %v578
      %v580 = vpop.f32.mrf.mxu0
      %v581 = vpop.f32.mrf.mxu0
      %v582 = vadd.f32 0.0, %v581
      %v583 = vpop.f32.mrf.mxu0
      %584 = vmatprep.mubr.bf16.mxu0 0
      %585 = vmatmul.mubr.bf16.gmra.mxu0 %v444
      %v586 = vpop.f32.mrf.mxu0
      %v587 = vadd.f32 0.0, %v586
      %v588 = vpop.f32.mrf.mxu0
      %v589 = vpop.f32.mrf.mxu0
      %v590 = vadd.f32 0.0, %v589
      %v591 = vpop.f32.mrf.mxu0
      %592 = vmatprep.mubr.bf16.mxu0 0
      %593 = vmatmul.mubr.bf16.gmra.mxu0 %v445
      %v594 = vpop.f32.mrf.mxu0
      %v595 = vadd.f32 0.0, %v594
      %v596 = vpop.f32.mrf.mxu0
      %v597 = vpop.f32.mrf.mxu0
      %v598 = vadd.f32 0.0, %v597
      %v599 = vpop.f32.mrf.mxu0
      %600 = vmatprep.mubr.bf16.mxu0 0
      %601 = vmatmul.mubr.bf16.gmra.mxu0 %v446
      %v602 = vpop.f32.mrf.mxu0
      %v603 = vadd.f32 0.0, %v602
      %v604 = vpop.f32.mrf.mxu0
      %v605 = vpop.f32.mrf.mxu0
      %v606 = vadd.f32 0.0, %v605
      %v607 = vpop.f32.mrf.mxu0
      %608 = vmatprep.mubr.bf16.mxu0 0
      %609 = vmatmul.mubr.bf16.gmra.mxu0 %v447
      %v610 = vpop.f32.mrf.mxu0
      %v611 = vadd.f32 0.0, %v610
      %v612 = vpop.f32.mrf.mxu0
      %v613 = vpop.f32.mrf.mxu0
      %v614 = vadd.f32 0.0, %v613
      %v615 = vpop.f32.mrf.mxu0
      %616 = vmatprep.mubr.bf16.mxu0 0
      %617 = vmatmul.mubr.bf16.gmra.mxu0 %v448
      %v618 = vpop.f32.mrf.mxu0
      %v619 = vadd.f32 0.0, %v618
      %v620 = vpop.f32.mrf.mxu0
      %v621 = vpop.f32.mrf.mxu0
      %v622 = vadd.f32 0.0, %v621
      %v623 = vpop.f32.mrf.mxu0
      %624 = vmatprep.mubr.bf16.mxu0 0
      %625 = vmatmul.mubr.bf16.gmra.mxu0 %v449
      %v626 = vpop.f32.mrf.mxu0
      %v627 = vadd.f32 0.0, %v626
      %v628 = vpop.f32.mrf.mxu0
      %v629 = vpop.f32.mrf.mxu0
      %v630 = vadd.f32 0.0, %v629
      %v631 = vpop.f32.mrf.mxu0
      %632 = vmatprep.mubr.bf16.mxu0 0
      %633 = vmatmul.mubr.bf16.gmra.mxu0 %v450
      %v634 = vpop.f32.mrf.mxu0
      %v635 = vadd.f32 0.0, %v634
      %v636 = vpop.f32.mrf.mxu0
      %v637 = vpop.f32.mrf.mxu0
      %v638 = vadd.f32 0.0, %v637
      %v639 = vpop.f32.mrf.mxu0
      %640 = vmatprep.mubr.bf16.mxu0 0
      %641 = vmatmul.mubr.bf16.gmra.mxu0 %v451
      %v642 = vpop.f32.mrf.mxu0
      %v643 = vadd.f32 0.0, %v642
      %v644 = vpop.f32.mrf.mxu0
      %v645 = vpop.f32.mrf.mxu0
      %v646 = vadd.f32 0.0, %v645
      %v647 = vpop.f32.mrf.mxu0
      %648 = vmatprep.mubr.bf16.mxu0 0
      %649 = vmatmul.mubr.bf16.gmra.mxu0 %v452
      %v650 = vpop.f32.mrf.mxu0
      %v651 = vadd.f32 0.0, %v650
      %v652 = vpop.f32.mrf.mxu0
      %v653 = vpop.f32.mrf.mxu0
      %v654 = vadd.f32 0.0, %v653
      %v655 = vpop.f32.mrf.mxu0
      %656 = vmatprep.mubr.bf16.mxu0 0
      %657 = vmatmul.mubr.bf16.gmra.mxu0 %v453
      %v658 = vpop.f32.mrf.mxu0
      %v659 = vadd.f32 0.0, %v658
      %v660 = vpop.f32.mrf.mxu0
      %v661 = vpop.f32.mrf.mxu0
      %v662 = vadd.f32 0.0, %v661
      %v663 = vpop.f32.mrf.mxu0
      %664 = vmatprep.mubr.bf16.mxu0 0
      %665 = vmatmul.mubr.bf16.gmra.mxu0 %v454
      %v666 = vpop.f32.mrf.mxu0
      %v667 = vadd.f32 0.0, %v666
      %v668 = vpop.f32.mrf.mxu0
      %v669 = vpop.f32.mrf.mxu0
      %v670 = vadd.f32 0.0, %v669
      %v671 = vpop.f32.mrf.mxu0
      %672 = vmatprep.mubr.bf16.mxu0 0
      %673 = vmatmul.mubr.bf16.gmra.mxu0 %v455
      %v674 = vpop.f32.mrf.mxu0
      %v675 = vadd.f32 0.0, %v674
      %v676 = vpop.f32.mrf.mxu0
      %v677 = vpop.f32.mrf.mxu0
      %v678 = vadd.f32 0.0, %v677
      %v679 = vpop.f32.mrf.mxu0
      %680 = vdwg.mxu0
      %v681 = vadd.f32 %v296, %v555
      %v682 = vadd.f32 %v297, %v558
      %v683 = vadd.f32 %v298, %v563
      %v684 = vadd.f32 %v299, %v566
      %v685 = vadd.f32 %v300, %v571
      %v686 = vadd.f32 %v301, %v574
      %v687 = vadd.f32 %v302, %v579
      %v688 = vadd.f32 %v303, %v582
      %v689 = vadd.f32 %v304, %v587
      %v690 = vadd.f32 %v305, %v590
      %v691 = vadd.f32 %v306, %v595
      %v692 = vadd.f32 %v307, %v598
      %v693 = vadd.f32 %v308, %v603
      %v694 = vadd.f32 %v309, %v606
      %v695 = vadd.f32 %v310, %v611
      %v696 = vadd.f32 %v311, %v614
      %v697 = vadd.f32 %v312, %v619
      %v698 = vadd.f32 %v313, %v622
      %v699 = vadd.f32 %v314, %v627
      %v700 = vadd.f32 %v315, %v630
      %v701 = vadd.f32 %v316, %v635
      %v702 = vadd.f32 %v317, %v638
      %v703 = vadd.f32 %v318, %v643
      %v704 = vadd.f32 %v319, %v646
      %v705 = vadd.f32 %v320, %v651
      %v706 = vadd.f32 %v321, %v654
      %v707 = vadd.f32 %v322, %v659
      %v708 = vadd.f32 %v323, %v662
      %v709 = vadd.f32 %v324, %v667
      %v710 = vadd.f32 %v325, %v670
      %v711 = vadd.f32 %v326, %v675
      %v712 = vadd.f32 %v327, %v678
      %713 = vst [vmem:[#allocation2] sm:$0xff] %v681
      %714 = vst [vmem:[#allocation2 + $0x8] sm:$0xff] %v682
      %715 = vst [vmem:[#allocation2 + $0x10] sm:$0xff] %v683
      %716 = vst [vmem:[#allocation2 + $0x18] sm:$0xff] %v684
      %717 = vst [vmem:[#allocation2 + $0x20] sm:$0xff] %v685
      %718 = vst [vmem:[#allocation2 + $0x28] sm:$0xff] %v686
      %719 = vst [vmem:[#allocation2 + $0x30] sm:$0xff] %v687
      %720 = vst [vmem:[#allocation2 + $0x38] sm:$0xff] %v688
      %721 = vst [vmem:[#allocation2 + $0x40] sm:$0xff] %v689
      %722 = vst [vmem:[#allocation2 + $0x48] sm:$0xff] %v690
      %723 = vst [vmem:[#allocation2 + $0x50] sm:$0xff] %v691
      %724 = vst [vmem:[#allocation2 + $0x58] sm:$0xff] %v692
      %725 = vst [vmem:[#allocation2 + $0x60] sm:$0xff] %v693
      %726 = vst [vmem:[#allocation2 + $0x68] sm:$0xff] %v694
      %727 = vst [vmem:[#allocation2 + $0x70] sm:$0xff] %v695
      %728 = vst [vmem:[#allocation2 + $0x78] sm:$0xff] %v696
      %729 = vst [vmem:[#allocation2 + $0x80] sm:$0xff] %v697
      %730 = vst [vmem:[#allocation2 + $0x88] sm:$0xff] %v698
      %731 = vst [vmem:[#allocation2 + $0x90] sm:$0xff] %v699
      %732 = vst [vmem:[#allocation2 + $0x98] sm:$0xff] %v700
      %733 = vst [vmem:[#allocation2 + $0xa0] sm:$0xff] %v701
      %734 = vst [vmem:[#allocation2 + $0xa8] sm:$0xff] %v702
      %735 = vst [vmem:[#allocation2 + $0xb0] sm:$0xff] %v703
      %736 = vst [vmem:[#allocation2 + $0xb8] sm:$0xff] %v704
      %737 = vst [vmem:[#allocation2 + $0xc0] sm:$0xff] %v705
      %738 = vst [vmem:[#allocation2 + $0xc8] sm:$0xff] %v706
      %739 = vst [vmem:[#allocation2 + $0xd0] sm:$0xff] %v707
      %740 = vst [vmem:[#allocation2 + $0xd8] sm:$0xff] %v708
      %741 = vst [vmem:[#allocation2 + $0xe0] sm:$0xff] %v709
      %742 = vst [vmem:[#allocation2 + $0xe8] sm:$0xff] %v710
      %743 = vst [vmem:[#allocation2 + $0xf0] sm:$0xff] %v711
      %744 = vst [vmem:[#allocation2 + $0xf8] sm:$0xff] %v712
      // Predicated region
      $region37: #{_lambda_.5} parent=31 // pred_check
        %p745 = pneg %p260
      $region38: #{_lambda_.5} parent=31 // pred_check_branch
        %747 = sbr.rel (%p745) target = $region40
      $region39: #{_lambda_.5} parent=31 // pred_region
        %v748 = vld [vmem:[#allocation2] sm:$0xff]
        %v749 = vld [vmem:[#allocation2 + $0x8] sm:$0xff]
        %v750 = vld [vmem:[#allocation2 + $0x10] sm:$0xff]
        %v751 = vld [vmem:[#allocation2 + $0x18] sm:$0xff]
        %v752 = vld [vmem:[#allocation2 + $0x20] sm:$0xff]
        %v753 = vld [vmem:[#allocation2 + $0x28] sm:$0xff]
        %v754 = vld [vmem:[#allocation2 + $0x30] sm:$0xff]
        %v755 = vld [vmem:[#allocation2 + $0x38] sm:$0xff]
        %v756 = vld [vmem:[#allocation2 + $0x40] sm:$0xff]
        %v757 = vld [vmem:[#allocation2 + $0x48] sm:$0xff]
        %v758 = vld [vmem:[#allocation2 + $0x50] sm:$0xff]
        %v759 = vld [vmem:[#allocation2 + $0x58] sm:$0xff]
        %v760 = vld [vmem:[#allocation2 + $0x60] sm:$0xff]
        %v761 = vld [vmem:[#allocation2 + $0x68] sm:$0xff]
        %v762 = vld [vmem:[#allocation2 + $0x70] sm:$0xff]
        %v763 = vld [vmem:[#allocation2 + $0x78] sm:$0xff]
        %v764 = vld [vmem:[#allocation2 + $0x80] sm:$0xff]
        %v765 = vld [vmem:[#allocation2 + $0x88] sm:$0xff]
        %v766 = vld [vmem:[#allocation2 + $0x90] sm:$0xff]
        %v767 = vld [vmem:[#allocation2 + $0x98] sm:$0xff]
        %v768 = vld [vmem:[#allocation2 + $0xa0] sm:$0xff]
        %v769 = vld [vmem:[#allocation2 + $0xa8] sm:$0xff]
        %v770 = vld [vmem:[#allocation2 + $0xb0] sm:$0xff]
        %v771 = vld [vmem:[#allocation2 + $0xb8] sm:$0xff]
        %v772 = vld [vmem:[#allocation2 + $0xc0] sm:$0xff]
        %v773 = vld [vmem:[#allocation2 + $0xc8] sm:$0xff]
        %v774 = vld [vmem:[#allocation2 + $0xd0] sm:$0xff]
        %v775 = vld [vmem:[#allocation2 + $0xd8] sm:$0xff]
        %v776 = vld [vmem:[#allocation2 + $0xe0] sm:$0xff]
        %v777 = vld [vmem:[#allocation2 + $0xe8] sm:$0xff]
        %v778 = vld [vmem:[#allocation2 + $0xf0] sm:$0xff]
        %v779 = vld [vmem:[#allocation2 + $0xf8] sm:$0xff]
        %v780 = vld [vmem:[%s249] sm:$0x1]
        %v782 = vlaneseq
        %v783 = vshrl.u32 %v782, 7
        %v784 = vsub.s32 0, %v783
        %v785 = vrot.slane %v780, %v784
        %v787 = vadd.f32 %v748, %v785
        %v788 = vadd.f32 %v749, %v785
        %v789 = vadd.f32 %v750, %v785
        %v790 = vadd.f32 %v751, %v785
        %v791 = vadd.f32 %v752, %v785
        %v792 = vadd.f32 %v753, %v785
        %v793 = vadd.f32 %v754, %v785
        %v794 = vadd.f32 %v755, %v785
        %v795 = vadd.f32 %v756, %v785
        %v796 = vadd.f32 %v757, %v785
        %v797 = vadd.f32 %v758, %v785
        %v798 = vadd.f32 %v759, %v785
        %v799 = vadd.f32 %v760, %v785
        %v800 = vadd.f32 %v761, %v785
        %v801 = vadd.f32 %v762, %v785
        %v802 = vadd.f32 %v763, %v785
        %v803 = vadd.f32 %v764, %v785
        %v804 = vadd.f32 %v765, %v785
        %v805 = vadd.f32 %v766, %v785
        %v806 = vadd.f32 %v767, %v785
        %v807 = vadd.f32 %v768, %v785
        %v808 = vadd.f32 %v769, %v785
        %v809 = vadd.f32 %v770, %v785
        %v810 = vadd.f32 %v771, %v785
        %v811 = vadd.f32 %v772, %v785
        %v812 = vadd.f32 %v773, %v785
        %v813 = vadd.f32 %v774, %v785
        %v814 = vadd.f32 %v775, %v785
        %v815 = vadd.f32 %v776, %v785
        %v816 = vadd.f32 %v777, %v785
        %v817 = vadd.f32 %v778, %v785
        %v818 = vadd.f32 %v779, %v785
        %vm819 = vcmp.gt.f32.partialorder %v787, 0.0
        %vm820 = vcmp.gt.f32.partialorder %v788, 0.0
        %vm821 = vcmp.gt.f32.partialorder %v789, 0.0
        %vm822 = vcmp.gt.f32.partialorder %v790, 0.0
        %vm823 = vcmp.gt.f32.partialorder %v791, 0.0
        %vm824 = vcmp.gt.f32.partialorder %v792, 0.0
        %vm825 = vcmp.gt.f32.partialorder %v793, 0.0
        %vm826 = vcmp.gt.f32.partialorder %v794, 0.0
        %vm827 = vcmp.gt.f32.partialorder %v795, 0.0
        %vm828 = vcmp.gt.f32.partialorder %v796, 0.0
        %vm829 = vcmp.gt.f32.partialorder %v797, 0.0
        %vm830 = vcmp.gt.f32.partialorder %v798, 0.0
        %vm831 = vcmp.gt.f32.partialorder %v799, 0.0
        %vm832 = vcmp.gt.f32.partialorder %v800, 0.0
        %vm833 = vcmp.gt.f32.partialorder %v801, 0.0
        %vm834 = vcmp.gt.f32.partialorder %v802, 0.0
        %vm835 = vcmp.gt.f32.partialorder %v803, 0.0
        %vm836 = vcmp.gt.f32.partialorder %v804, 0.0
        %vm837 = vcmp.gt.f32.partialorder %v805, 0.0
        %vm838 = vcmp.gt.f32.partialorder %v806, 0.0
        %vm839 = vcmp.gt.f32.partialorder %v807, 0.0
        %vm840 = vcmp.gt.f32.partialorder %v808, 0.0
        %vm841 = vcmp.gt.f32.partialorder %v809, 0.0
        %vm842 = vcmp.gt.f32.partialorder %v810, 0.0
        %vm843 = vcmp.gt.f32.partialorder %v811, 0.0
        %vm844 = vcmp.gt.f32.partialorder %v812, 0.0
        %vm845 = vcmp.gt.f32.partialorder %v813, 0.0
        %vm846 = vcmp.gt.f32.partialorder %v814, 0.0
        %vm847 = vcmp.gt.f32.partialorder %v815, 0.0
        %vm848 = vcmp.gt.f32.partialorder %v816, 0.0
        %vm849 = vcmp.gt.f32.partialorder %v817, 0.0
        %vm850 = vcmp.gt.f32.partialorder %v818, 0.0
        %v851 = vmul.f32 %v787, 0.2
        %v852 = vmul.f32 %v788, 0.2
        %v853 = vmul.f32 %v789, 0.2
        %v854 = vmul.f32 %v790, 0.2
        %v855 = vmul.f32 %v791, 0.2
        %v856 = vmul.f32 %v792, 0.2
        %v857 = vmul.f32 %v793, 0.2
        %v858 = vmul.f32 %v794, 0.2
        %v859 = vmul.f32 %v795, 0.2
        %v860 = vmul.f32 %v796, 0.2
        %v861 = vmul.f32 %v797, 0.2
        %v862 = vmul.f32 %v798, 0.2
        %v863 = vmul.f32 %v799, 0.2
        %v864 = vmul.f32 %v800, 0.2
        %v865 = vmul.f32 %v801, 0.2
        %v866 = vmul.f32 %v802, 0.2
        %v867 = vmul.f32 %v803, 0.2
        %v868 = vmul.f32 %v804, 0.2
        %v869 = vmul.f32 %v805, 0.2
        %v870 = vmul.f32 %v806, 0.2
        %v871 = vmul.f32 %v807, 0.2
        %v872 = vmul.f32 %v808, 0.2
        %v873 = vmul.f32 %v809, 0.2
        %v874 = vmul.f32 %v810, 0.2
        %v875 = vmul.f32 %v811, 0.2
        %v876 = vmul.f32 %v812, 0.2
        %v877 = vmul.f32 %v813, 0.2
        %v878 = vmul.f32 %v814, 0.2
        %v879 = vmul.f32 %v815, 0.2
        %v880 = vmul.f32 %v816, 0.2
        %v881 = vmul.f32 %v817, 0.2
        %v882 = vmul.f32 %v818, 0.2
        %v883 = vsel %vm819, %v787, %v851
        %v884 = vsel %vm820, %v788, %v852
        %v885 = vsel %vm821, %v789, %v853
        %v886 = vsel %vm822, %v790, %v854
        %v887 = vsel %vm823, %v791, %v855
        %v888 = vsel %vm824, %v792, %v856
        %v889 = vsel %vm825, %v793, %v857
        %v890 = vsel %vm826, %v794, %v858
        %v891 = vsel %vm827, %v795, %v859
        %v892 = vsel %vm828, %v796, %v860
        %v893 = vsel %vm829, %v797, %v861
        %v894 = vsel %vm830, %v798, %v862
        %v895 = vsel %vm831, %v799, %v863
        %v896 = vsel %vm832, %v800, %v864
        %v897 = vsel %vm833, %v801, %v865
        %v898 = vsel %vm834, %v802, %v866
        %v899 = vsel %vm835, %v803, %v867
        %v900 = vsel %vm836, %v804, %v868
        %v901 = vsel %vm837, %v805, %v869
        %v902 = vsel %vm838, %v806, %v870
        %v903 = vsel %vm839, %v807, %v871
        %v904 = vsel %vm840, %v808, %v872
        %v905 = vsel %vm841, %v809, %v873
        %v906 = vsel %vm842, %v810, %v874
        %v907 = vsel %vm843, %v811, %v875
        %v908 = vsel %vm844, %v812, %v876
        %v909 = vsel %vm845, %v813, %v877
        %v910 = vsel %vm846, %v814, %v878
        %v911 = vsel %vm847, %v815, %v879
        %v912 = vsel %vm848, %v816, %v880
        %v913 = vsel %vm849, %v817, %v881
        %v914 = vsel %vm850, %v818, %v882
        %v915 = vpack.c.bf16 %v884, %v883
        %v916 = vpack.c.bf16 %v886, %v885
        %v917 = vpack.c.bf16 %v888, %v887
        %v918 = vpack.c.bf16 %v890, %v889
        %v919 = vpack.c.bf16 %v892, %v891
        %v920 = vpack.c.bf16 %v894, %v893
        %v921 = vpack.c.bf16 %v896, %v895
        %v922 = vpack.c.bf16 %v898, %v897
        %v923 = vpack.c.bf16 %v900, %v899
        %v924 = vpack.c.bf16 %v902, %v901
        %v925 = vpack.c.bf16 %v904, %v903
        %v926 = vpack.c.bf16 %v906, %v905
        %v927 = vpack.c.bf16 %v908, %v907
        %v928 = vpack.c.bf16 %v910, %v909
        %v929 = vpack.c.bf16 %v912, %v911
        %v930 = vpack.c.bf16 %v914, %v913
        %v947 = vunpack.c.l.b16 %v915
        %v948 = vunpack.c.h.b16 %v915
        %v949 = vunpack.c.l.b16 %v916
        %v950 = vunpack.c.h.b16 %v916
        %v951 = vunpack.c.l.b16 %v917
        %v952 = vunpack.c.h.b16 %v917
        %v953 = vunpack.c.l.b16 %v918
        %v954 = vunpack.c.h.b16 %v918
        %v955 = vunpack.c.l.b16 %v919
        %v956 = vunpack.c.h.b16 %v919
        %v957 = vunpack.c.l.b16 %v920
        %v958 = vunpack.c.h.b16 %v920
        %v959 = vunpack.c.l.b16 %v921
        %v960 = vunpack.c.h.b16 %v921
        %v961 = vunpack.c.l.b16 %v922
        %v962 = vunpack.c.h.b16 %v922
        %v963 = vunpack.c.l.b16 %v923
        %v964 = vunpack.c.h.b16 %v923
        %v965 = vunpack.c.l.b16 %v924
        %v966 = vunpack.c.h.b16 %v924
        %v967 = vunpack.c.l.b16 %v925
        %v968 = vunpack.c.h.b16 %v925
        %v969 = vunpack.c.l.b16 %v926
        %v970 = vunpack.c.h.b16 %v926
        %v971 = vunpack.c.l.b16 %v927
        %v972 = vunpack.c.h.b16 %v927
        %v973 = vunpack.c.l.b16 %v928
        %v974 = vunpack.c.h.b16 %v928
        %v975 = vunpack.c.l.b16 %v929
        %v976 = vunpack.c.h.b16 %v929
        %v977 = vunpack.c.l.b16 %v930
        %v978 = vunpack.c.h.b16 %v930
        %v979 = vpack.c.b16 %v947, %v947
        %v980 = vpack.c.b16 %v948, %v948
        %v981 = vpack.c.b16 %v949, %v949
        %v982 = vpack.c.b16 %v950, %v950
        %v983 = vpack.c.b16 %v951, %v951
        %v984 = vpack.c.b16 %v952, %v952
        %v985 = vpack.c.b16 %v953, %v953
        %v986 = vpack.c.b16 %v954, %v954
        %v987 = vpack.c.b16 %v955, %v955
        %v988 = vpack.c.b16 %v956, %v956
        %v989 = vpack.c.b16 %v957, %v957
        %v990 = vpack.c.b16 %v958, %v958
        %v991 = vpack.c.b16 %v959, %v959
        %v992 = vpack.c.b16 %v960, %v960
        %v993 = vpack.c.b16 %v961, %v961
        %v994 = vpack.c.b16 %v962, %v962
        %v995 = vpack.c.b16 %v963, %v963
        %v996 = vpack.c.b16 %v964, %v964
        %v997 = vpack.c.b16 %v965, %v965
        %v998 = vpack.c.b16 %v966, %v966
        %v999 = vpack.c.b16 %v967, %v967
        %v1000 = vpack.c.b16 %v968, %v968
        %v1001 = vpack.c.b16 %v969, %v969
        %v1002 = vpack.c.b16 %v970, %v970
        %v1003 = vpack.c.b16 %v971, %v971
        %v1004 = vpack.c.b16 %v972, %v972
        %v1005 = vpack.c.b16 %v973, %v973
        %v1006 = vpack.c.b16 %v974, %v974
        %v1007 = vpack.c.b16 %v975, %v975
        %v1008 = vpack.c.b16 %v976, %v976
        %v1009 = vpack.c.b16 %v977, %v977
        %v1010 = vpack.c.b16 %v978, %v978
        %1043 = vst [vmem:[%s257] sm:$0xf] %v979
        %1044 = vst [vmem:[%s257 + $0x4] sm:$0xf] %v980
        %1045 = vst [vmem:[%s257 + $0x8] sm:$0xf] %v981
        %1046 = vst [vmem:[%s257 + $0xc] sm:$0xf] %v982
        %1047 = vst [vmem:[%s257 + $0x10] sm:$0xf] %v983
        %1048 = vst [vmem:[%s257 + $0x14] sm:$0xf] %v984
        %1049 = vst [vmem:[%s257 + $0x18] sm:$0xf] %v985
        %1050 = vst [vmem:[%s257 + $0x1c] sm:$0xf] %v986
        %1051 = vst [vmem:[%s257 + $0x20] sm:$0xf] %v987
        %1052 = vst [vmem:[%s257 + $0x24] sm:$0xf] %v988
        %1053 = vst [vmem:[%s257 + $0x28] sm:$0xf] %v989
        %1054 = vst [vmem:[%s257 + $0x2c] sm:$0xf] %v990
        %1055 = vst [vmem:[%s257 + $0x30] sm:$0xf] %v991
        %1056 = vst [vmem:[%s257 + $0x34] sm:$0xf] %v992
        %1057 = vst [vmem:[%s257 + $0x38] sm:$0xf] %v993
        %1058 = vst [vmem:[%s257 + $0x3c] sm:$0xf] %v994
        %1059 = vst [vmem:[%s257 + $0x40] sm:$0xf] %v995
        %1060 = vst [vmem:[%s257 + $0x44] sm:$0xf] %v996
        %1061 = vst [vmem:[%s257 + $0x48] sm:$0xf] %v997
        %1062 = vst [vmem:[%s257 + $0x4c] sm:$0xf] %v998
        %1063 = vst [vmem:[%s257 + $0x50] sm:$0xf] %v999
        %1064 = vst [vmem:[%s257 + $0x54] sm:$0xf] %v1000
        %1065 = vst [vmem:[%s257 + $0x58] sm:$0xf] %v1001
        %1066 = vst [vmem:[%s257 + $0x5c] sm:$0xf] %v1002
        %1067 = vst [vmem:[%s257 + $0x60] sm:$0xf] %v1003
        %1068 = vst [vmem:[%s257 + $0x64] sm:$0xf] %v1004
        %1069 = vst [vmem:[%s257 + $0x68] sm:$0xf] %v1005
        %1070 = vst [vmem:[%s257 + $0x6c] sm:$0xf] %v1006
        %1071 = vst [vmem:[%s257 + $0x70] sm:$0xf] %v1007
        %1072 = vst [vmem:[%s257 + $0x74] sm:$0xf] %v1008
        %1073 = vst [vmem:[%s257 + $0x78] sm:$0xf] %v1009
        %1074 = vst [vmem:[%s257 + $0x7c] sm:$0xf] %v1010
      $region40: #{_lambda_.5} parent=31 // pred_fallthru
        _
      %s1075 = smul.u32 32, %s19
      %p1076 = scmp.lt.s32.totalorder %s1075, 63
      %s1077 = scalar_select %p1076, %s1075, 63
      %p1078 = scmp.lt.s32.totalorder %s20, 0
      %s1079 = scalar_select %p1078, %s20, 0
      %s1080 = sadd.s32 %s1079, %s1077
      %s1081 = smul.addr %s1080, 4
      %s1082 = scalar_lea.vmem %s3, %s1081
      // Predicated region
      $region41: #{_lambda_.5} parent=31 // pred_check
        %p1083 = pneg %p135
      $region42: #{_lambda_.5} parent=31 // pred_check_branch
        %1085 = sbr.rel (%p1083) target = $region44
      $region43: #{_lambda_.5} parent=31 // pred_region
        %s1086 = smul.u32 32, %s19
      $region44: #{_lambda_.5} parent=31 // pred_fallthru
        _
    $region32: #{_lambda_.5} parent=5 // pred_fallthru
      _
    %p1087 = scmp.le.s32.totalorder 2, %s9
    // Predicated region
    $region45: #{_lambda_.5} parent=5 // pred_check
      %p1088 = pneg %p1087
    $region46: #{_lambda_.5} parent=5 // pred_check_branch
      %1090 = sbr.rel (%p1088) target = $region48
    $region47: #{_lambda_.5} parent=5 // pred_region
      %s1091 = ssub.s32 %s9, 2
      // Predicated region
      $region49: #{_lambda_.5} parent=47 // pred_check
        %p1092 = pneg %p141
      $region50: #{_lambda_.5} parent=47 // pred_check_branch
        %1094 = sbr.rel (%p1092) target = $region52
      $region51: #{_lambda_.5} parent=47 // pred_region
        %s1095 = smul.u32 32, %s22
        %p1096 = scmp.lt.s32.totalorder %s1095, 63
        %s1097 = scalar_select %p1096, %s1095, 63
        %p1098 = scmp.lt.s32.totalorder %s23, 0
        %s1099 = scalar_select %p1098, %s23, 0
        %s1100 = sadd.s32 %s1099, %s1097
        %s1101 = smul.addr %s1100, 4
        %s1102 = scalar_lea.vmem %s3, %s1101
      $region52: #{_lambda_.5} parent=47 // pred_fallthru
        _
    $region48: #{_lambda_.5} parent=5 // pred_fallthru
      _
  $region6: #{_lambda_.5} parent=0 // loop_footer
    %s13 = sadd.s32 1, %s9
  $region7: #{_lambda_.5} parent=0 // loop_footer_branch
    %8 = sbr.rel target = $region3
  $region8: #{_lambda_.5} parent=0 // loop_exit
    _

// kernel: _lambda_.6
$region0: #{_lambda_.6}
  #allocation0 [shape = 'u32[]', space=smem, size = 0x4, offset = 0x4, fixed_abs, tag = 'smem constant byte address 0x4 - core index']
  #allocation1 [shape = 'u32[144,128]{1,0:T(1,128)}', space=vmem, size = 0x12000, scoped, tag = 'internal scratch']
  #allocation2 [shape = 'f32[64,128]{1,0:T(8,128)}', space=vmem, size = 0x8000, scoped, tag = 'scratch operand']
  %s0 = inlined_call_operand.vmem [shape: bf16[128,128], index: 0, kind: input, shape index: {}]
  %s1 = inlined_call_operand.vmem [shape: bf16[128,128], index: 1, kind: input, shape index: {}]
  %s2 = inlined_call_operand.vmem [shape: bf16[128,128], index: 2, kind: output, shape index: {0}]
  %s3 = inlined_call_operand.vmem [shape: f32[16,128], index: 3, kind: output, shape index: {1}]
  %4 = xla_tuple %s2, %s3
  %s5 = sld [smem:[#allocation0]]
  $region57: #{_lambda_.6} parent=0
    _
  %s7 = ssub.s32 1, %s5
  %s8 = scalar_select 0, %s7, %s5
  loop: start=0, step=1, limit=4
  $region2: #{_lambda_.6} parent=0 // loop_pre_header
    _
  $region3: #{_lambda_.6} parent=0 // loop_header
    %s10 = sphi 0, %s14
    %p11 = scmp.ge.s32.totalorder %s10, 4
    %s17 = sphi 0, %s36
    %s18 = sphi 0, %s32
    %s19 = sphi 0, %s28
    %s20 = sphi 0, %s17
    %s21 = sphi 0, %s18
    %s22 = sphi 0, %s19
    %s23 = sphi 0, %s20
    %s24 = sphi 0, %s21
    %s25 = sphi 0, %s22
    %s41 = sphi 0, %s43
    %s44 = sphi 0, %s41
    %s45 = sphi 0, %s44
    %s61 = sphi 0, %s45
    %s69 = sphi 0, %s71
    %s72 = sphi 0, %s69
    %s73 = sphi 0, %s72
    %s89 = sphi 0, %s73
    %s97 = sphi 0, %s99
    %s100 = sphi 0, %s97
    %s101 = sphi 0, %s100
    %s117 = sphi 0, %s101
    %s125 = sphi 0, %s127
    %s128 = sphi 0, %s125
    %s129 = sphi 0, %s128
    %s145 = sphi 0, %s129
  $region4: #{_lambda_.6} parent=0 // loop_header_branch
    %13 = sbr.rel (%p11) target = $region8
  $region5: #{_lambda_.6} parent=0 // loop_body
    %s15 = ssub.s32 %s10, 1
    %s16 = ssub.s32 %s10, 2
    %s26 = sadd.s32 1, %s19
    %p27 = scmp.ge.s32.totalorder %s26, 1
    %s28 = scalar_select %p27, 0, %s26
    %s29 = sadd.s32 1, %s18
    %s30 = scalar_select %p27, %s29, %s18
    %p31 = scmp.ge.s32.totalorder %s30, 1
    %s32 = scalar_select %p31, 0, %s30
    %s33 = sadd.s32 1, %s17
    %s34 = scalar_select %p31, %s33, %s17
    %p35 = scmp.ge.s32.totalorder %s34, 2
    %s36 = scalar_select %p35, 0, %s34
    %s37 = ssub.s32 %s17, %s36
    %s38 = ssub.s32 %s19, %s28
    %s39 = sor.u32 %s37, %s38
    %p40 = scmp.eq.s32.totalorder %s39, 0
    %s42 = sadd.s32 %s41, 1
    %s43 = scalar_select %p40, %s41, %s42
    %p46 = pneg %p40
    %p47 = scmp.eq.s32.totalorder %s10, 1
    %p48 = por %p46, %p47
    %p49 = scmp.ne.s32.totalorder %s41, %s44
    %p50 = scmp.eq.s32.totalorder %s10, 0
    %p51 = por %p49, %p50
    %p52 = scmp.ne.s32.totalorder %s41, %s44
    %p53 = scmp.eq.s32.totalorder %s15, 1
    %p54 = por %p52, %p53
    %p55 = scmp.ne.s32.totalorder %s44, %s45
    %p56 = scmp.eq.s32.totalorder %s15, 0
    %p57 = por %p55, %p56
    %p58 = scmp.ne.s32.totalorder %s44, %s45
    %p59 = scmp.eq.s32.totalorder %s16, 1
    %p60 = por %p58, %p59
    %p62 = scmp.ne.s32.totalorder %s45, %s61
    %p63 = scmp.eq.s32.totalorder %s16, 0
    %p64 = por %p62, %p63
    %s65 = ssub.s32 %s19, %s28
    %s66 = ssub.s32 %s18, %s32
    %s67 = sor.u32 %s65, %s66
    %p68 = scmp.eq.s32.totalorder %s67, 0
    %s70 = sadd.s32 %s69, 1
    %s71 = scalar_select %p68, %s69, %s70
    %p74 = pneg %p68
    %p75 = scmp.eq.s32.totalorder %s10, 1
    %p76 = por %p74, %p75
    %p77 = scmp.ne.s32.totalorder %s69, %s72
    %p78 = scmp.eq.s32.totalorder %s10, 0
    %p79 = por %p77, %p78
    %p80 = scmp.ne.s32.totalorder %s69, %s72
    %p81 = scmp.eq.s32.totalorder %s15, 1
    %p82 = por %p80, %p81
    %p83 = scmp.ne.s32.totalorder %s72, %s73
    %p84 = scmp.eq.s32.totalorder %s15, 0
    %p85 = por %p83, %p84
    %p86 = scmp.ne.s32.totalorder %s72, %s73
    %p87 = scmp.eq.s32.totalorder %s16, 1
    %p88 = por %p86, %p87
    %p90 = scmp.ne.s32.totalorder %s73, %s89
    %p91 = scmp.eq.s32.totalorder %s16, 0
    %p92 = por %p90, %p91
    %s93 = ssub.s32 %s17, %s36
    %s94 = ssub.s32 %s18, %s32
    %s95 = sor.u32 %s93, %s94
    %p96 = scmp.eq.s32.totalorder %s95, 0
    %s98 = sadd.s32 %s97, 1
    %s99 = scalar_select %p96, %s97, %s98
    %p102 = pneg %p96
    %p103 = scmp.eq.s32.totalorder %s10, 1
    %p104 = por %p102, %p103
    %p105 = scmp.ne.s32.totalorder %s97, %s100
    %p106 = scmp.eq.s32.totalorder %s10, 0
    %p107 = por %p105, %p106
    %p108 = scmp.ne.s32.totalorder %s97, %s100
    %p109 = scmp.eq.s32.totalorder %s15, 1
    %p110 = por %p108, %p109
    %p111 = scmp.ne.s32.totalorder %s100, %s101
    %p112 = scmp.eq.s32.totalorder %s15, 0
    %p113 = por %p111, %p112
    %p114 = scmp.ne.s32.totalorder %s100, %s101
    %p115 = scmp.eq.s32.totalorder %s16, 1
    %p116 = por %p114, %p115
    %p118 = scmp.ne.s32.totalorder %s101, %s117
    %p119 = scmp.eq.s32.totalorder %s16, 0
    %p120 = por %p118, %p119
    %s121 = ssub.s32 %s17, %s36
    %s122 = ssub.s32 %s18, %s32
    %s123 = sor.u32 %s121, %s122
    %p124 = scmp.eq.s32.totalorder %s123, 0
    %s126 = sadd.s32 %s125, 1
    %s127 = scalar_select %p124, %s125, %s126
    %p130 = pneg %p124
    %p131 = scmp.eq.s32.totalorder %s10, 1
    %p132 = por %p130, %p131
    %p133 = scmp.ne.s32.totalorder %s125, %s128
    %p134 = scmp.eq.s32.totalorder %s10, 0
    %p135 = por %p133, %p134
    %p136 = scmp.ne.s32.totalorder %s125, %s128
    %p137 = scmp.eq.s32.totalorder %s15, 1
    %p138 = por %p136, %p137
    %p139 = scmp.ne.s32.totalorder %s128, %s129
    %p140 = scmp.eq.s32.totalorder %s15, 0
    %p141 = por %p139, %p140
    %p142 = scmp.ne.s32.totalorder %s128, %s129
    %p143 = scmp.eq.s32.totalorder %s16, 1
    %p144 = por %p142, %p143
    %p146 = scmp.ne.s32.totalorder %s129, %s145
    %p147 = scmp.eq.s32.totalorder %s16, 0
    %p148 = por %p146, %p147
    %p149 = scmp.le.s32.totalorder 1, %s10
    %p150 = scmp.lt.s32.totalorder %s10, 3
    %p151 = pnand %p149, %p150
    %p152 = pneg %p151
    // Predicated region
    $region9: #{_lambda_.6} parent=5 // pred_check
      _
    $region10: #{_lambda_.6} parent=5 // pred_check_branch
      %154 = sbr.rel (%p151) target = $region12
    $region11: #{_lambda_.6} parent=5 // pred_region
      %s155 = ssub.s32 %s10, 1
      // Predicated region
      $region13: #{_lambda_.6} parent=11 // pred_check
        %p156 = pneg %p85
      $region14: #{_lambda_.6} parent=11 // pred_check_branch
        %158 = sbr.rel (%p156) target = $region16
      $region15: #{_lambda_.6} parent=11 // pred_region
        %s159 = smul.u32 16, %s22
        %p160 = scmp.lt.s32.totalorder %s159, 15
        %s161 = scalar_select %p160, %s159, 15
        %p162 = scmp.lt.s32.totalorder %s21, 0
        %s163 = scalar_select %p162, %s21, 0
        %s164 = sadd.s32 %s163, %s161
        %s165 = smul.addr %s164, 4
        %s166 = scalar_lea.vmem %s1, %s165
        %s167 = smul.u32 16, %s22
      $region16: #{_lambda_.6} parent=11 // pred_fallthru
        _
    $region12: #{_lambda_.6} parent=5 // pred_fallthru
      _
    %p168 = scmp.lt.s32.totalorder %s10, 2
    // Predicated region
    $region17: #{_lambda_.6} parent=5 // pred_check
      %p169 = pneg %p168
    $region18: #{_lambda_.6} parent=5 // pred_check_branch
      %171 = sbr.rel (%p169) target = $region20
    $region19: #{_lambda_.6} parent=5 // pred_region
      // Predicated region
      $region21: #{_lambda_.6} parent=19 // pred_check
        %p172 = pneg %p51
      $region22: #{_lambda_.6} parent=19 // pred_check_branch
        %174 = sbr.rel (%p172) target = $region24
      $region23: #{_lambda_.6} parent=19 // pred_region
        %s175 = smul.u32 8, %s17
        %p176 = scmp.lt.s32.totalorder %s175, 15
        %s177 = scalar_select %p176, %s175, 15
        %p178 = scmp.lt.s32.totalorder %s19, 0
        %s179 = scalar_select %p178, %s19, 0
        %s180 = sadd.s32 %s179, %s177
        %s181 = smul.addr %s180, 4
        %s182 = scalar_lea.vmem %s0, %s181
        %s183 = smul.u32 8, %s17
      $region24: #{_lambda_.6} parent=19 // pred_fallthru
        _
    $region20: #{_lambda_.6} parent=5 // pred_fallthru
      _
    %p184 = scmp.le.s32.totalorder 1, %s10
    %p185 = scmp.lt.s32.totalorder %s10, 3
    %p186 = pnand %p184, %p185
    %p187 = pneg %p186
    // Predicated region
    $region25: #{_lambda_.6} parent=5 // pred_check
      _
    $region26: #{_lambda_.6} parent=5 // pred_check_branch
      %189 = sbr.rel (%p186) target = $region28
    $region27: #{_lambda_.6} parent=5 // pred_region
      %s190 = ssub.s32 %s10, 1
      %s191 = smul.u32 8, %s20
      %p192 = scmp.lt.s32.totalorder %s191, 15
      %s193 = scalar_select %p192, %s191, 15
      %p194 = scmp.lt.s32.totalorder %s22, 0
      %s195 = scalar_select %p194, %s22, 0
      %s196 = sadd.s32 %s195, %s193
      %s197 = smul.addr %s196, 4
      %s198 = scalar_lea.vmem %s0, %s197
      %p199 = pneg %p57
      %p200 = pneg %p54
      %s201 = smul.u32 16, %s22
      %p202 = scmp.lt.s32.totalorder %s201, 15
      %s203 = scalar_select %p202, %s201, 15
      %p204 = scmp.lt.s32.totalorder %s21, 0
      %s205 = scalar_select %p204, %s21, 0
      %s206 = sadd.s32 %s205, %s203
      %s207 = smul.addr %s206, 4
      %s208 = scalar_lea.vmem %s1, %s207
      %p209 = pneg %p85
      %p210 = pneg %p82
      %p211 = pneg %p113
      %p212 = pneg %p110
      %s213 = smul.u32 8, %s20
      %p214 = scmp.lt.s32.totalorder %s213, 15
      %s215 = scalar_select %p214, %s213, 15
      %p216 = scmp.lt.s32.totalorder %s21, 0
      %s217 = scalar_select %p216, %s21, 0
      %s218 = sadd.s32 %s217, %s215
      %s219 = smul.addr %s218, 4
      %s220 = scalar_lea.vmem %s2, %s219
      %p221 = pneg %p141
      %p222 = pneg %p138
      %p223 = scmp.lt.s32.totalorder %s20, 1
      %s224 = scalar_select %p223, %s20, 1
      %p225 = scmp.lt.s32.totalorder %s21, 0
      %s226 = scalar_select %p225, %s21, 0
      %s227 = sadd.s32 %s226, %s224
      %s228 = smul.addr %s227, 8
      %s229 = scalar_lea.vmem %s3, %s228
      %s230 = smul.u32 8, %s20
      %p231 = scmp.lt.s32.totalorder %s230, 15
      %s232 = scalar_select %p231, %s230, 15
      %p233 = scmp.lt.s32.totalorder %s22, 0
      %s234 = scalar_select %p233, %s22, 0
      %s235 = sadd.s32 %s234, %s232
      %s236 = smul.addr %s235, 4
      %s237 = scalar_lea.vmem %s0, %s236
      %s238 = smul.u32 8, %s20
      %s239 = smul.u32 16, %s22
      %p240 = scmp.lt.s32.totalorder %s239, 15
      %s241 = scalar_select %p240, %s239, 15
      %p242 = scmp.lt.s32.totalorder %s21, 0
      %s243 = scalar_select %p242, %s21, 0
      %s244 = sadd.s32 %s243, %s241
      %s245 = smul.addr %s244, 4
      %s246 = scalar_lea.vmem %s1, %s245
      %s247 = smul.u32 16, %s22
      %s248 = smul.u32 8, %s20
      %p249 = scmp.lt.s32.totalorder %s248, 15
      %s250 = scalar_select %p249, %s248, 15
      %p251 = scmp.lt.s32.totalorder %s21, 0
      %s252 = scalar_select %p251, %s21, 0
      %s253 = sadd.s32 %s252, %s250
      %s254 = smul.addr %s253, 4
      %s255 = scalar_lea.vmem %s2, %s254
      %s256 = smul.u32 8, %s20
      %p257 = scmp.lt.s32.totalorder %s20, 1
      %s258 = scalar_select %p257, %s20, 1
      %p259 = scmp.lt.s32.totalorder %s21, 0
      %s260 = scalar_select %p259, %s21, 0
      %s261 = sadd.s32 %s260, %s258
      %s262 = smul.addr %s261, 8
      %s263 = scalar_lea.vmem %s3, %s262
      %p265 = scmp.eq.s32.totalorder %s22, 0
      // Predicated region
      $region29: #{_lambda_.6} parent=27 // pred_check
        %p266 = pneg %p265
      $region30: #{_lambda_.6} parent=27 // pred_check_branch
        %268 = sbr.rel (%p266) target = $region32
      $region31: #{_lambda_.6} parent=27 // pred_region
        %269 = vst [vmem:[#allocation2] sm:$0xff] 0.0
        %270 = vst [vmem:[#allocation2 + $0x8] sm:$0xff] 0.0
        %271 = vst [vmem:[#allocation2 + $0x10] sm:$0xff] 0.0
        %272 = vst [vmem:[#allocation2 + $0x18] sm:$0xff] 0.0
        %273 = vst [vmem:[#allocation2 + $0x20] sm:$0xff] 0.0
        %274 = vst [vmem:[#allocation2 + $0x28] sm:$0xff] 0.0
        %275 = vst [vmem:[#allocation2 + $0x30] sm:$0xff] 0.0
        %276 = vst [vmem:[#allocation2 + $0x38] sm:$0xff] 0.0
      $region32: #{_lambda_.6} parent=27 // pred_fallthru
        _
      %v277 = vld [vmem:[#allocation2] sm:$0xff]
      %v278 = vld [vmem:[#allocation2 + $0x8] sm:$0xff]
      %v279 = vld [vmem:[#allocation2 + $0x10] sm:$0xff]
      %v280 = vld [vmem:[#allocation2 + $0x18] sm:$0xff]
      %v281 = vld [vmem:[#allocation2 + $0x20] sm:$0xff]
      %v282 = vld [vmem:[#allocation2 + $0x28] sm:$0xff]
      %v283 = vld [vmem:[#allocation2 + $0x30] sm:$0xff]
      %v284 = vld [vmem:[#allocation2 + $0x38] sm:$0xff]
      %v285 = vld [vmem:[%s237] sm:$0xf]
      %v286 = vld [vmem:[%s237 + $0x4] sm:$0xf]
      %v287 = vld [vmem:[%s237 + $0x8] sm:$0xf]
      %v288 = vld [vmem:[%s237 + $0xc] sm:$0xf]
      %v289 = vld [vmem:[%s237 + $0x10] sm:$0xf]
      %v290 = vld [vmem:[%s237 + $0x14] sm:$0xf]
      %v291 = vld [vmem:[%s237 + $0x18] sm:$0xf]
      %v292 = vld [vmem:[%s237 + $0x1c] sm:$0xf]
      %v293 = vld [vmem:[%s246] sm:$0xf]
      %v294 = vld [vmem:[%s246 + $0x4] sm:$0xf]
      %v295 = vld [vmem:[%s246 + $0x8] sm:$0xf]
      %v296 = vld [vmem:[%s246 + $0xc] sm:$0xf]
      %v297 = vld [vmem:[%s246 + $0x10] sm:$0xf]
      %v298 = vld [vmem:[%s246 + $0x14] sm:$0xf]
      %v299 = vld [vmem:[%s246 + $0x18] sm:$0xf]
      %v300 = vld [vmem:[%s246 + $0x1c] sm:$0xf]
      %v301 = vld [vmem:[%s246 + $0x20] sm:$0xf]
      %v302 = vld [vmem:[%s246 + $0x24] sm:$0xf]
      %v303 = vld [vmem:[%s246 + $0x28] sm:$0xf]
      %v304 = vld [vmem:[%s246 + $0x2c] sm:$0xf]
      %v305 = vld [vmem:[%s246 + $0x30] sm:$0xf]
      %v306 = vld [vmem:[%s246 + $0x34] sm:$0xf]
      %v307 = vld [vmem:[%s246 + $0x38] sm:$0xf]
      %v308 = vld [vmem:[%s246 + $0x3c] sm:$0xf]
      %v317 = vunpack.c.l.b16 %v285
      %v318 = vunpack.c.l.b16 %v286
      %v319 = vunpack.c.l.b16 %v287
      %v320 = vunpack.c.l.b16 %v288
      %v321 = vunpack.c.l.b16 %v289
      %v322 = vunpack.c.l.b16 %v290
      %v323 = vunpack.c.l.b16 %v291
      %v324 = vunpack.c.l.b16 %v292
      %v325 = vpack.c.b16 %v318, %v317
      %v326 = vpack.c.b16 %v320, %v319
      %v327 = vpack.c.b16 %v322, %v321
      %v328 = vpack.c.b16 %v324, %v323
      %v349 = vunpack.c.l.b16 %v293
      %v350 = vunpack.c.l.b16 %v294
      %v351 = vunpack.c.l.b16 %v295
      %v352 = vunpack.c.l.b16 %v296
      %v353 = vunpack.c.l.b16 %v297
      %v354 = vunpack.c.l.b16 %v298
      %v355 = vunpack.c.l.b16 %v299
      %v356 = vunpack.c.l.b16 %v300
      %v357 = vunpack.c.l.b16 %v301
      %v358 = vunpack.c.l.b16 %v302
      %v359 = vunpack.c.l.b16 %v303
      %v360 = vunpack.c.l.b16 %v304
      %v361 = vunpack.c.l.b16 %v305
      %v362 = vunpack.c.l.b16 %v306
      %v363 = vunpack.c.l.b16 %v307
      %v364 = vunpack.c.l.b16 %v308
      %v365 = vpack.c.b16 %v350, %v349
      %v366 = vpack.c.b16 %v352, %v351
      %v367 = vpack.c.b16 %v354, %v353
      %v368 = vpack.c.b16 %v356, %v355
      %v369 = vpack.c.b16 %v358, %v357
      %v370 = vpack.c.b16 %v360, %v359
      %v371 = vpack.c.b16 %v362, %v361
      %v372 = vpack.c.b16 %v364, %v363
      %381 = vmatprep.subr.bf16.mxu0 0
      %382 = vmatpush1.bf16.msra.mxu0 %v372
      %383 = vmatprep.subr.bf16.mxu0 0
      %384 = vmatpush1.bf16.msra.mxu0 %v371
      %385 = vmatprep.subr.bf16.mxu0 0
      %386 = vmatpush1.bf16.msra.mxu0 %v370
      %387 = vmatprep.subr.bf16.mxu0 0
      %388 = vmatpush1.bf16.msra.mxu0 %v369
      %389 = vmatprep.subr.bf16.mxu0 0
      %390 = vmatpush1.bf16.msra.mxu0 %v368
      %391 = vmatprep.subr.bf16.mxu0 0
      %392 = vmatpush1.bf16.msra.mxu0 %v367
      %393 = vmatprep.subr.bf16.mxu0 0
      %394 = vmatpush1.bf16.msra.mxu0 %v366
      %395 = vmatprep.subr.bf16.mxu0 0
      %396 = vmatpush1.bf16.msra.mxu0 %v365
      %397 = vmatprep.subr.bf16.mxu0 0
      %398 = vmatpush2.bf16.msra.mxu0 0
      %399 = vmatprep.subr.bf16.mxu0 0
      %400 = vmatpush2.bf16.msra.mxu0 0
      %401 = vmatprep.subr.bf16.mxu0 0
      %402 = vmatpush2.bf16.msra.mxu0 0
      %403 = vmatprep.subr.bf16.mxu0 0
      %404 = vmatpush2.bf16.msra.mxu0 0
      %405 = vmatprep.subr.bf16.mxu0 0
      %406 = vmatpush2.bf16.msra.mxu0 0
      %407 = vmatprep.subr.bf16.mxu0 0
      %408 = vmatpush2.bf16.msra.mxu0 0
      %409 = vmatprep.subr.bf16.mxu0 0
      %410 = vmatpush2.bf16.msra.mxu0 0
      %411 = vmatprep.subr.bf16.mxu0 0
      %412 = vmatpush2.bf16.msra.mxu0 0
      %413 = vmatprep.mubr.bf16.mxu0 0
      %414 = vmatmul.mubr.bf16.gmra.mxu0 %v325
      %v415 = vpop.f32.mrf.mxu0
      %v416 = vadd.f32 0.0, %v415
      %v417 = vpop.f32.mrf.mxu0
      %v418 = vpop.f32.mrf.mxu0
      %v419 = vadd.f32 0.0, %v418
      %v420 = vpop.f32.mrf.mxu0
      %421 = vmatprep.mubr.bf16.mxu0 0
      %422 = vmatmul.mubr.bf16.gmra.mxu0 %v326
      %v423 = vpop.f32.mrf.mxu0
      %v424 = vadd.f32 0.0, %v423
      %v425 = vpop.f32.mrf.mxu0
      %v426 = vpop.f32.mrf.mxu0
      %v427 = vadd.f32 0.0, %v426
      %v428 = vpop.f32.mrf.mxu0
      %429 = vmatprep.mubr.bf16.mxu0 0
      %430 = vmatmul.mubr.bf16.gmra.mxu0 %v327
      %v431 = vpop.f32.mrf.mxu0
      %v432 = vadd.f32 0.0, %v431
      %v433 = vpop.f32.mrf.mxu0
      %v434 = vpop.f32.mrf.mxu0
      %v435 = vadd.f32 0.0, %v434
      %v436 = vpop.f32.mrf.mxu0
      %437 = vmatprep.mubr.bf16.mxu0 0
      %438 = vmatmul.mubr.bf16.gmra.mxu0 %v328
      %v439 = vpop.f32.mrf.mxu0
      %v440 = vadd.f32 0.0, %v439
      %v441 = vpop.f32.mrf.mxu0
      %v442 = vpop.f32.mrf.mxu0
      %v443 = vadd.f32 0.0, %v442
      %v444 = vpop.f32.mrf.mxu0
      %445 = vdwg.mxu0
      %v446 = vadd.f32 %v277, %v416
      %v447 = vadd.f32 %v278, %v419
      %v448 = vadd.f32 %v279, %v424
      %v449 = vadd.f32 %v280, %v427
      %v450 = vadd.f32 %v281, %v432
      %v451 = vadd.f32 %v282, %v435
      %v452 = vadd.f32 %v283, %v440
      %v453 = vadd.f32 %v284, %v443
      %454 = vst [vmem:[#allocation2] sm:$0xff] %v446
      %455 = vst [vmem:[#allocation2 + $0x8] sm:$0xff] %v447
      %456 = vst [vmem:[#allocation2 + $0x10] sm:$0xff] %v448
      %457 = vst [vmem:[#allocation2 + $0x18] sm:$0xff] %v449
      %458 = vst [vmem:[#allocation2 + $0x20] sm:$0xff] %v450
      %459 = vst [vmem:[#allocation2 + $0x28] sm:$0xff] %v451
      %460 = vst [vmem:[#allocation2 + $0x30] sm:$0xff] %v452
      %461 = vst [vmem:[#allocation2 + $0x38] sm:$0xff] %v453
      // Predicated region
      $region33: #{_lambda_.6} parent=27 // pred_check
        %p462 = pneg %p265
      $region34: #{_lambda_.6} parent=27 // pred_check_branch
        %464 = sbr.rel (%p462) target = $region36
      $region35: #{_lambda_.6} parent=27 // pred_region
        %v465 = vld [vmem:[#allocation2] sm:$0xff]
        %v466 = vld [vmem:[#allocation2 + $0x8] sm:$0xff]
        %v467 = vld [vmem:[#allocation2 + $0x10] sm:$0xff]
        %v468 = vld [vmem:[#allocation2 + $0x18] sm:$0xff]
        %v469 = vld [vmem:[#allocation2 + $0x20] sm:$0xff]
        %v470 = vld [vmem:[#allocation2 + $0x28] sm:$0xff]
        %v471 = vld [vmem:[#allocation2 + $0x30] sm:$0xff]
        %v472 = vld [vmem:[#allocation2 + $0x38] sm:$0xff]
        %v473 = vpack.c.bf16 %v466, %v465
        %v474 = vpack.c.bf16 %v468, %v467
        %v475 = vpack.c.bf16 %v470, %v469
        %v476 = vpack.c.bf16 %v472, %v471
        %v481 = vunpack.c.l.b16 %v473
        %v482 = vunpack.c.h.b16 %v473
        %v483 = vunpack.c.l.b16 %v474
        %v484 = vunpack.c.h.b16 %v474
        %v485 = vunpack.c.l.b16 %v475
        %v486 = vunpack.c.h.b16 %v475
        %v487 = vunpack.c.l.b16 %v476
        %v488 = vunpack.c.h.b16 %v476
        %v489 = vpack.c.b16 %v481, %v481
        %v490 = vpack.c.b16 %v482, %v482
        %v491 = vpack.c.b16 %v483, %v483
        %v492 = vpack.c.b16 %v484, %v484
        %v493 = vpack.c.b16 %v485, %v485
        %v494 = vpack.c.b16 %v486, %v486
        %v495 = vpack.c.b16 %v487, %v487
        %v496 = vpack.c.b16 %v488, %v488
        %505 = vst [vmem:[%s255] sm:$0xf] %v489
        %506 = vst [vmem:[%s255 + $0x4] sm:$0xf] %v490
        %507 = vst [vmem:[%s255 + $0x8] sm:$0xf] %v491
        %508 = vst [vmem:[%s255 + $0xc] sm:$0xf] %v492
        %509 = vst [vmem:[%s255 + $0x10] sm:$0xf] %v493
        %510 = vst [vmem:[%s255 + $0x14] sm:$0xf] %v494
        %511 = vst [vmem:[%s255 + $0x18] sm:$0xf] %v495
        %512 = vst [vmem:[%s255 + $0x1c] sm:$0xf] %v496
        %v513 = vadd.f32 %v465, %v466
        %v514 = vadd.f32 %v513, %v467
        %v515 = vadd.f32 %v514, %v468
        %v516 = vadd.f32 %v515, %v469
        %v517 = vadd.f32 %v516, %v470
        %v518 = vadd.f32 %v517, %v471
        %v519 = vadd.f32 %v518, %v472
        %v520 = vrot.slane %v519, 4
        %v521 = vadd.f32 %v519, %v520
        %v522 = vrot.slane %v521, 2
        %v523 = vadd.f32 %v521, %v522
        %v524 = vrot.slane %v523, 1
        %v525 = vadd.f32 %v523, %v524
        %v526 = vmul.f32 %v465, %v465
        %v527 = vmul.f32 %v466, %v466
        %v528 = vmul.f32 %v467, %v467
        %v529 = vmul.f32 %v468, %v468
        %v530 = vmul.f32 %v469, %v469
        %v531 = vmul.f32 %v470, %v470
        %v532 = vmul.f32 %v471, %v471
        %v533 = vmul.f32 %v472, %v472
        %v534 = vadd.f32 %v526, %v527
        %v535 = vadd.f32 %v534, %v528
        %v536 = vadd.f32 %v535, %v529
        %v537 = vadd.f32 %v536, %v530
        %v538 = vadd.f32 %v537, %v531
        %v539 = vadd.f32 %v538, %v532
        %v540 = vadd.f32 %v539, %v533
        %v541 = vrot.slane %v540, 4
        %v542 = vadd.f32 %v540, %v541
        %v543 = vrot.slane %v542, 2
        %v544 = vadd.f32 %v542, %v543
        %v545 = vrot.slane %v544, 1
        %v546 = vadd.f32 %v544, %v545
        %v547 = vlaneseq
        %v548 = vshrl.u32 %v547, 7
        %vm549 = vcmp.eq.s32.totalorder %v548, 0
        %vm550 = vcmp.eq.s32.totalorder %v548, 1
        %v551 = vsel %vm550, %v546, 0.0
        %v552 = vsel %vm549, %v525, %v551
        %553 = vst [vmem:[%s263] sm:$0xff] %v552
      $region36: #{_lambda_.6} parent=27 // pred_fallthru
        _
      %s554 = smul.u32 8, %s20
      %p555 = scmp.lt.s32.totalorder %s554, 15
      %s556 = scalar_select %p555, %s554, 15
      %p557 = scmp.lt.s32.totalorder %s21, 0
      %s558 = scalar_select %p557, %s21, 0
      %s559 = sadd.s32 %s558, %s556
      %s560 = smul.addr %s559, 4
      %s561 = scalar_lea.vmem %s2, %s560
      %p562 = scmp.lt.s32.totalorder %s20, 1
      %s563 = scalar_select %p562, %s20, 1
      %p564 = scmp.lt.s32.totalorder %s21, 0
      %s565 = scalar_select %p564, %s21, 0
      %s566 = sadd.s32 %s565, %s563
      %s567 = smul.addr %s566, 8
      %s568 = scalar_lea.vmem %s3, %s567
      // Predicated region
      $region37: #{_lambda_.6} parent=27 // pred_check
        %p569 = pneg %p110
      $region38: #{_lambda_.6} parent=27 // pred_check_branch
        %571 = sbr.rel (%p569) target = $region40
      $region39: #{_lambda_.6} parent=27 // pred_region
        %s572 = smul.u32 8, %s20
      $region40: #{_lambda_.6} parent=27 // pred_fallthru
        _
      // Predicated region
      $region41: #{_lambda_.6} parent=27 // pred_check
        %p573 = pneg %p138
      $region42: #{_lambda_.6} parent=27 // pred_check_branch
        %575 = sbr.rel (%p573) target = $region44
      $region43: #{_lambda_.6} parent=27 // pred_region
        _
      $region44: #{_lambda_.6} parent=27 // pred_fallthru
        _
    $region28: #{_lambda_.6} parent=5 // pred_fallthru
      _
    %p576 = scmp.le.s32.totalorder 2, %s10
    // Predicated region
    $region45: #{_lambda_.6} parent=5 // pred_check
      %p577 = pneg %p576
    $region46: #{_lambda_.6} parent=5 // pred_check_branch
      %579 = sbr.rel (%p577) target = $region48
    $region47: #{_lambda_.6} parent=5 // pred_region
      %s580 = ssub.s32 %s10, 2
      // Predicated region
      $region49: #{_lambda_.6} parent=47 // pred_check
        %p581 = pneg %p116
      $region50: #{_lambda_.6} parent=47 // pred_check_branch
        %583 = sbr.rel (%p581) target = $region52
      $region51: #{_lambda_.6} parent=47 // pred_region
        %s584 = smul.u32 8, %s23
        %p585 = scmp.lt.s32.totalorder %s584, 15
        %s586 = scalar_select %p585, %s584, 15
        %p587 = scmp.lt.s32.totalorder %s24, 0
        %s588 = scalar_select %p587, %s24, 0
        %s589 = sadd.s32 %s588, %s586
        %s590 = smul.addr %s589, 4
        %s591 = scalar_lea.vmem %s2, %s590
      $region52: #{_lambda_.6} parent=47 // pred_fallthru
        _
      // Predicated region
      $region53: #{_lambda_.6} parent=47 // pred_check
        %p592 = pneg %p144
      $region54: #{_lambda_.6} parent=47 // pred_check_branch
        %594 = sbr.rel (%p592) target = $region56
      $region55: #{_lambda_.6} parent=47 // pred_region
        %p595 = scmp.lt.s32.totalorder %s23, 1
        %s596 = scalar_select %p595, %s23, 1
        %p597 = scmp.lt.s32.totalorder %s24, 0
        %s598 = scalar_select %p597, %s24, 0
        %s599 = sadd.s32 %s598, %s596
        %s600 = smul.addr %s599, 8
        %s601 = scalar_lea.vmem %s3, %s600
      $region56: #{_lambda_.6} parent=47 // pred_fallthru
        _
    $region48: #{_lambda_.6} parent=5 // pred_fallthru
      _
  $region6: #{_lambda_.6} parent=0 // loop_footer
    %s14 = sadd.s32 1, %s10
  $region7: #{_lambda_.6} parent=0 // loop_footer_branch
    %9 = sbr.rel target = $region3
  $region8: #{_lambda_.6} parent=0 // loop_exit
    _

// kernel: _lambda_.7
$region0: #{_lambda_.7}
  #allocation0 [shape = 'u32[]', space=smem, size = 0x4, offset = 0x4, fixed_abs, tag = 'smem constant byte address 0x4 - core index']
  #allocation1 [shape = 'u32[144,128]{1,0:T(1,128)}', space=vmem, size = 0x12000, scoped, tag = 'internal scratch']
  #allocation2 [shape = 'f32[16,128]{1,0:T(8,128)}', space=vmem, size = 0x2000, scoped, tag = 'scratch operand']
  %s0 = inlined_call_operand.vmem [shape: bf16[32,256], index: 0, kind: input, shape index: {}]
  %s1 = inlined_call_operand.vmem [shape: bf16[256,128], index: 1, kind: input, shape index: {}]
  %s2 = inlined_call_operand.vmem [shape: bf16[32,128], index: 2, kind: output, shape index: {0}]
  %s3 = inlined_call_operand.vmem [shape: f32[16,128], index: 3, kind: output, shape index: {1}]
  %4 = xla_tuple %s2, %s3
  %s5 = sld [smem:[#allocation0]]
  $region57: #{_lambda_.7} parent=0
    _
  %s7 = ssub.s32 1, %s5
  %s8 = scalar_select 0, %s7, %s5
  loop: start=0, step=1, limit=4
  $region2: #{_lambda_.7} parent=0 // loop_pre_header
    _
  $region3: #{_lambda_.7} parent=0 // loop_header
    %s10 = sphi 0, %s14
    %p11 = scmp.ge.s32.totalorder %s10, 4
    %s17 = sphi 0, %s36
    %s18 = sphi 0, %s32
    %s19 = sphi 0, %s28
    %s20 = sphi 0, %s17
    %s21 = sphi 0, %s18
    %s22 = sphi 0, %s19
    %s23 = sphi 0, %s20
    %s24 = sphi 0, %s21
    %s25 = sphi 0, %s22
    %s41 = sphi 0, %s43
    %s44 = sphi 0, %s41
    %s45 = sphi 0, %s44
    %s61 = sphi 0, %s45
    %s69 = sphi 0, %s71
    %s72 = sphi 0, %s69
    %s73 = sphi 0, %s72
    %s89 = sphi 0, %s73
    %s97 = sphi 0, %s99
    %s100 = sphi 0, %s97
    %s101 = sphi 0, %s100
    %s117 = sphi 0, %s101
    %s125 = sphi 0, %s127
    %s128 = sphi 0, %s125
    %s129 = sphi 0, %s128
    %s145 = sphi 0, %s129
  $region4: #{_lambda_.7} parent=0 // loop_header_branch
    %13 = sbr.rel (%p11) target = $region8
  $region5: #{_lambda_.7} parent=0 // loop_body
    %s15 = ssub.s32 %s10, 1
    %s16 = ssub.s32 %s10, 2
    %s26 = sadd.s32 1, %s19
    %p27 = scmp.ge.s32.totalorder %s26, 1
    %s28 = scalar_select %p27, 0, %s26
    %s29 = sadd.s32 1, %s18
    %s30 = scalar_select %p27, %s29, %s18
    %p31 = scmp.ge.s32.totalorder %s30, 1
    %s32 = scalar_select %p31, 0, %s30
    %s33 = sadd.s32 1, %s17
    %s34 = scalar_select %p31, %s33, %s17
    %p35 = scmp.ge.s32.totalorder %s34, 2
    %s36 = scalar_select %p35, 0, %s34
    %s37 = ssub.s32 %s17, %s36
    %s38 = ssub.s32 %s19, %s28
    %s39 = sor.u32 %s37, %s38
    %p40 = scmp.eq.s32.totalorder %s39, 0
    %s42 = sadd.s32 %s41, 1
    %s43 = scalar_select %p40, %s41, %s42
    %p46 = pneg %p40
    %p47 = scmp.eq.s32.totalorder %s10, 1
    %p48 = por %p46, %p47
    %p49 = scmp.ne.s32.totalorder %s41, %s44
    %p50 = scmp.eq.s32.totalorder %s10, 0
    %p51 = por %p49, %p50
    %p52 = scmp.ne.s32.totalorder %s41, %s44
    %p53 = scmp.eq.s32.totalorder %s15, 1
    %p54 = por %p52, %p53
    %p55 = scmp.ne.s32.totalorder %s44, %s45
    %p56 = scmp.eq.s32.totalorder %s15, 0
    %p57 = por %p55, %p56
    %p58 = scmp.ne.s32.totalorder %s44, %s45
    %p59 = scmp.eq.s32.totalorder %s16, 1
    %p60 = por %p58, %p59
    %p62 = scmp.ne.s32.totalorder %s45, %s61
    %p63 = scmp.eq.s32.totalorder %s16, 0
    %p64 = por %p62, %p63
    %s65 = ssub.s32 %s19, %s28
    %s66 = ssub.s32 %s18, %s32
    %s67 = sor.u32 %s65, %s66
    %p68 = scmp.eq.s32.totalorder %s67, 0
    %s70 = sadd.s32 %s69, 1
    %s71 = scalar_select %p68, %s69, %s70
    %p74 = pneg %p68
    %p75 = scmp.eq.s32.totalorder %s10, 1
    %p76 = por %p74, %p75
    %p77 = scmp.ne.s32.totalorder %s69, %s72
    %p78 = scmp.eq.s32.totalorder %s10, 0
    %p79 = por %p77, %p78
    %p80 = scmp.ne.s32.totalorder %s69, %s72
    %p81 = scmp.eq.s32.totalorder %s15, 1
    %p82 = por %p80, %p81
    %p83 = scmp.ne.s32.totalorder %s72, %s73
    %p84 = scmp.eq.s32.totalorder %s15, 0
    %p85 = por %p83, %p84
    %p86 = scmp.ne.s32.totalorder %s72, %s73
    %p87 = scmp.eq.s32.totalorder %s16, 1
    %p88 = por %p86, %p87
    %p90 = scmp.ne.s32.totalorder %s73, %s89
    %p91 = scmp.eq.s32.totalorder %s16, 0
    %p92 = por %p90, %p91
    %s93 = ssub.s32 %s17, %s36
    %s94 = ssub.s32 %s18, %s32
    %s95 = sor.u32 %s93, %s94
    %p96 = scmp.eq.s32.totalorder %s95, 0
    %s98 = sadd.s32 %s97, 1
    %s99 = scalar_select %p96, %s97, %s98
    %p102 = pneg %p96
    %p103 = scmp.eq.s32.totalorder %s10, 1
    %p104 = por %p102, %p103
    %p105 = scmp.ne.s32.totalorder %s97, %s100
    %p106 = scmp.eq.s32.totalorder %s10, 0
    %p107 = por %p105, %p106
    %p108 = scmp.ne.s32.totalorder %s97, %s100
    %p109 = scmp.eq.s32.totalorder %s15, 1
    %p110 = por %p108, %p109
    %p111 = scmp.ne.s32.totalorder %s100, %s101
    %p112 = scmp.eq.s32.totalorder %s15, 0
    %p113 = por %p111, %p112
    %p114 = scmp.ne.s32.totalorder %s100, %s101
    %p115 = scmp.eq.s32.totalorder %s16, 1
    %p116 = por %p114, %p115
    %p118 = scmp.ne.s32.totalorder %s101, %s117
    %p119 = scmp.eq.s32.totalorder %s16, 0
    %p120 = por %p118, %p119
    %s121 = ssub.s32 %s17, %s36
    %s122 = ssub.s32 %s18, %s32
    %s123 = sor.u32 %s121, %s122
    %p124 = scmp.eq.s32.totalorder %s123, 0
    %s126 = sadd.s32 %s125, 1
    %s127 = scalar_select %p124, %s125, %s126
    %p130 = pneg %p124
    %p131 = scmp.eq.s32.totalorder %s10, 1
    %p132 = por %p130, %p131
    %p133 = scmp.ne.s32.totalorder %s125, %s128
    %p134 = scmp.eq.s32.totalorder %s10, 0
    %p135 = por %p133, %p134
    %p136 = scmp.ne.s32.totalorder %s125, %s128
    %p137 = scmp.eq.s32.totalorder %s15, 1
    %p138 = por %p136, %p137
    %p139 = scmp.ne.s32.totalorder %s128, %s129
    %p140 = scmp.eq.s32.totalorder %s15, 0
    %p141 = por %p139, %p140
    %p142 = scmp.ne.s32.totalorder %s128, %s129
    %p143 = scmp.eq.s32.totalorder %s16, 1
    %p144 = por %p142, %p143
    %p146 = scmp.ne.s32.totalorder %s129, %s145
    %p147 = scmp.eq.s32.totalorder %s16, 0
    %p148 = por %p146, %p147
    %p149 = scmp.le.s32.totalorder 1, %s10
    %p150 = scmp.lt.s32.totalorder %s10, 3
    %p151 = pnand %p149, %p150
    %p152 = pneg %p151
    // Predicated region
    $region9: #{_lambda_.7} parent=5 // pred_check
      _
    $region10: #{_lambda_.7} parent=5 // pred_check_branch
      %154 = sbr.rel (%p151) target = $region12
    $region11: #{_lambda_.7} parent=5 // pred_region
      %s155 = ssub.s32 %s10, 1
      // Predicated region
      $region13: #{_lambda_.7} parent=11 // pred_check
        %p156 = pneg %p85
      $region14: #{_lambda_.7} parent=11 // pred_check_branch
        %158 = sbr.rel (%p156) target = $region16
      $region15: #{_lambda_.7} parent=11 // pred_region
        %s159 = smul.u32 32, %s22
        %p160 = scmp.lt.s32.totalorder %s159, 31
        %s161 = scalar_select %p160, %s159, 31
        %p162 = scmp.lt.s32.totalorder %s21, 0
        %s163 = scalar_select %p162, %s21, 0
        %s164 = sadd.s32 %s163, %s161
        %s165 = smul.addr %s164, 4
        %s166 = scalar_lea.vmem %s1, %s165
        %s167 = smul.u32 32, %s22
      $region16: #{_lambda_.7} parent=11 // pred_fallthru
        _
    $region12: #{_lambda_.7} parent=5 // pred_fallthru
      _
    %p168 = scmp.lt.s32.totalorder %s10, 2
    // Predicated region
    $region17: #{_lambda_.7} parent=5 // pred_check
      %p169 = pneg %p168
    $region18: #{_lambda_.7} parent=5 // pred_check_branch
      %171 = sbr.rel (%p169) target = $region20
    $region19: #{_lambda_.7} parent=5 // pred_region
      // Predicated region
      $region21: #{_lambda_.7} parent=19 // pred_check
        %p172 = pneg %p51
      $region22: #{_lambda_.7} parent=19 // pred_check_branch
        %174 = sbr.rel (%p172) target = $region24
      $region23: #{_lambda_.7} parent=19 // pred_region
        %s175 = smul.u32 2, %s17
        %s176 = smul.u32 2, %s19
        %p177 = scmp.lt.s32.totalorder %s175, 3
        %s178 = scalar_select %p177, %s175, 3
        %p179 = scmp.lt.s32.totalorder %s176, 1
        %s180 = scalar_select %p179, %s176, 1
        %s181 = smul.addr %s178, 2
        %s182 = sadd.s32 %s180, %s181
        %s183 = smul.addr %s182, 4
        %s184 = scalar_lea.vmem %s0, %s183
        %s185 = smul.u32 2, %s17
        %s186 = smul.u32 2, %s19
      $region24: #{_lambda_.7} parent=19 // pred_fallthru
        _
    $region20: #{_lambda_.7} parent=5 // pred_fallthru
      _
    %p187 = scmp.le.s32.totalorder 1, %s10
    %p188 = scmp.lt.s32.totalorder %s10, 3
    %p189 = pnand %p187, %p188
    %p190 = pneg %p189
    // Predicated region
    $region25: #{_lambda_.7} parent=5 // pred_check
      _
    $region26: #{_lambda_.7} parent=5 // pred_check_branch
      %192 = sbr.rel (%p189) target = $region28
    $region27: #{_lambda_.7} parent=5 // pred_region
      %s193 = ssub.s32 %s10, 1
      %s194 = smul.u32 2, %s20
      %s195 = smul.u32 2, %s22
      %p196 = scmp.lt.s32.totalorder %s194, 3
      %s197 = scalar_select %p196, %s194, 3
      %p198 = scmp.lt.s32.totalorder %s195, 1
      %s199 = scalar_select %p198, %s195, 1
      %s200 = smul.addr %s197, 2
      %s201 = sadd.s32 %s199, %s200
      %s202 = smul.addr %s201, 4
      %s203 = scalar_lea.vmem %s0, %s202
      %p204 = pneg %p57
      %p205 = pneg %p54
      %s206 = smul.u32 32, %s22
      %p207 = scmp.lt.s32.totalorder %s206, 31
      %s208 = scalar_select %p207, %s206, 31
      %p209 = scmp.lt.s32.totalorder %s21, 0
      %s210 = scalar_select %p209, %s21, 0
      %s211 = sadd.s32 %s210, %s208
      %s212 = smul.addr %s211, 4
      %s213 = scalar_lea.vmem %s1, %s212
      %p214 = pneg %p85
      %p215 = pneg %p82
      %p216 = pneg %p113
      %p217 = pneg %p110
      %s218 = smul.u32 2, %s20
      %p219 = scmp.lt.s32.totalorder %s218, 3
      %s220 = scalar_select %p219, %s218, 3
      %p221 = scmp.lt.s32.totalorder %s21, 0
      %s222 = scalar_select %p221, %s21, 0
      %s223 = sadd.s32 %s222, %s220
      %s224 = smul.addr %s223, 4
      %s225 = scalar_lea.vmem %s2, %s224
      %p226 = pneg %p141
      %p227 = pneg %p138
      %p228 = scmp.lt.s32.totalorder %s20, 1
      %s229 = scalar_select %p228, %s20, 1
      %p230 = scmp.lt.s32.totalorder %s21, 0
      %s231 = scalar_select %p230, %s21, 0
      %s232 = sadd.s32 %s231, %s229
      %s233 = smul.addr %s232, 8
      %s234 = scalar_lea.vmem %s3, %s233
      %s235 = smul.u32 2, %s20
      %s236 = smul.u32 2, %s22
      %p237 = scmp.lt.s32.totalorder %s235, 3
      %s238 = scalar_select %p237, %s235, 3
      %p239 = scmp.lt.s32.totalorder %s236, 1
      %s240 = scalar_select %p239, %s236, 1
      %s241 = smul.addr %s238, 2
      %s242 = sadd.s32 %s240, %s241
      %s243 = smul.addr %s242, 4
      %s244 = scalar_lea.vmem %s0, %s243
      %s245 = smul.u32 2, %s20
      %s246 = smul.u32 2, %s22
      %s247 = smul.u32 32, %s22
      %p248 = scmp.lt.s32.totalorder %s247, 31
      %s249 = scalar_select %p248, %s247, 31
      %p250 = scmp.lt.s32.totalorder %s21, 0
      %s251 = scalar_select %p250, %s21, 0
      %s252 = sadd.s32 %s251, %s249
      %s253 = smul.addr %s252, 4
      %s254 = scalar_lea.vmem %s1, %s253
      %s255 = smul.u32 32, %s22
      %s256 = smul.u32 2, %s20
      %p257 = scmp.lt.s32.totalorder %s256, 3
      %s258 = scalar_select %p257, %s256, 3
      %p259 = scmp.lt.s32.totalorder %s21, 0
      %s260 = scalar_select %p259, %s21, 0
      %s261 = sadd.s32 %s260, %s258
      %s262 = smul.addr %s261, 4
      %s263 = scalar_lea.vmem %s2, %s262
      %s264 = smul.u32 2, %s20
      %p265 = scmp.lt.s32.totalorder %s20, 1
      %s266 = scalar_select %p265, %s20, 1
      %p267 = scmp.lt.s32.totalorder %s21, 0
      %s268 = scalar_select %p267, %s21, 0
      %s269 = sadd.s32 %s268, %s266
      %s270 = smul.addr %s269, 8
      %s271 = scalar_lea.vmem %s3, %s270
      %p273 = scmp.eq.s32.totalorder %s22, 0
      // Predicated region
      $region29: #{_lambda_.7} parent=27 // pred_check
        %p274 = pneg %p273
      $region30: #{_lambda_.7} parent=27 // pred_check_branch
        %276 = sbr.rel (%p274) target = $region32
      $region31: #{_lambda_.7} parent=27 // pred_region
        %277 = vst [vmem:[#allocation2] sm:$0xff] 0.0
        %278 = vst [vmem:[#allocation2 + $0x8] sm:$0xff] 0.0
      $region32: #{_lambda_.7} parent=27 // pred_fallthru
        _
      %v279 = vld [vmem:[#allocation2] sm:$0xff]
      %v280 = vld [vmem:[#allocation2 + $0x8] sm:$0xff]
      %v281 = vld [vmem:[%s244] sm:$0xff]
      %v282 = vld [vmem:[%s244 + $0x8] sm:$0xff]
      %v283 = vld [vmem:[%s254] sm:$0xf]
      %v284 = vld [vmem:[%s254 + $0x4] sm:$0xf]
      %v285 = vld [vmem:[%s254 + $0x8] sm:$0xf]
      %v286 = vld [vmem:[%s254 + $0xc] sm:$0xf]
      %v287 = vld [vmem:[%s254 + $0x10] sm:$0xf]
      %v288 = vld [vmem:[%s254 + $0x14] sm:$0xf]
      %v289 = vld [vmem:[%s254 + $0x18] sm:$0xf]
      %v290 = vld [vmem:[%s254 + $0x1c] sm:$0xf]
      %v291 = vld [vmem:[%s254 + $0x20] sm:$0xf]
      %v292 = vld [vmem:[%s254 + $0x24] sm:$0xf]
      %v293 = vld [vmem:[%s254 + $0x28] sm:$0xf]
      %v294 = vld [vmem:[%s254 + $0x2c] sm:$0xf]
      %v295 = vld [vmem:[%s254 + $0x30] sm:$0xf]
      %v296 = vld [vmem:[%s254 + $0x34] sm:$0xf]
      %v297 = vld [vmem:[%s254 + $0x38] sm:$0xf]
      %v298 = vld [vmem:[%s254 + $0x3c] sm:$0xf]
      %v299 = vld [vmem:[%s254 + $0x40] sm:$0xf]
      %v300 = vld [vmem:[%s254 + $0x44] sm:$0xf]
      %v301 = vld [vmem:[%s254 + $0x48] sm:$0xf]
      %v302 = vld [vmem:[%s254 + $0x4c] sm:$0xf]
      %v303 = vld [vmem:[%s254 + $0x50] sm:$0xf]
      %v304 = vld [vmem:[%s254 + $0x54] sm:$0xf]
      %v305 = vld [vmem:[%s254 + $0x58] sm:$0xf]
      %v306 = vld [vmem:[%s254 + $0x5c] sm:$0xf]
      %v307 = vld [vmem:[%s254 + $0x60] sm:$0xf]
      %v308 = vld [vmem:[%s254 + $0x64] sm:$0xf]
      %v309 = vld [vmem:[%s254 + $0x68] sm:$0xf]
      %v310 = vld [vmem:[%s254 + $0x6c] sm:$0xf]
      %v311 = vld [vmem:[%s254 + $0x70] sm:$0xf]
      %v312 = vld [vmem:[%s254 + $0x74] sm:$0xf]
      %v313 = vld [vmem:[%s254 + $0x78] sm:$0xf]
      %v314 = vld [vmem:[%s254 + $0x7c] sm:$0xf]
      %v317 = vunpack.c.l.b16 %v281
      %v318 = vunpack.c.h.b16 %v281
      %v319 = vunpack.c.l.b16 %v282
      %v320 = vunpack.c.h.b16 %v282
      %v321 = vpack.c.b16 %v319, %v317
      %v322 = vpack.c.b16 %v320, %v318
      %v357 = vunpack.c.l.b16 %v283
      %v358 = vunpack.c.l.b16 %v284
      %v359 = vunpack.c.l.b16 %v285
      %v360 = vunpack.c.l.b16 %v286
      %v361 = vunpack.c.l.b16 %v287
      %v362 = vunpack.c.l.b16 %v288
      %v363 = vunpack.c.l.b16 %v289
      %v364 = vunpack.c.l.b16 %v290
      %v365 = vunpack.c.l.b16 %v291
      %v366 = vunpack.c.l.b16 %v292
      %v367 = vunpack.c.l.b16 %v293
      %v368 = vunpack.c.l.b16 %v294
      %v369 = vunpack.c.l.b16 %v295
      %v370 = vunpack.c.l.b16 %v296
      %v371 = vunpack.c.l.b16 %v297
      %v372 = vunpack.c.l.b16 %v298
      %v373 = vunpack.c.l.b16 %v299
      %v374 = vunpack.c.l.b16 %v300
      %v375 = vunpack.c.l.b16 %v301
      %v376 = vunpack.c.l.b16 %v302
      %v377 = vunpack.c.l.b16 %v303
      %v378 = vunpack.c.l.b16 %v304
      %v379 = vunpack.c.l.b16 %v305
      %v380 = vunpack.c.l.b16 %v306
      %v381 = vunpack.c.l.b16 %v307
      %v382 = vunpack.c.l.b16 %v308
      %v383 = vunpack.c.l.b16 %v309
      %v384 = vunpack.c.l.b16 %v310
      %v385 = vunpack.c.l.b16 %v311
      %v386 = vunpack.c.l.b16 %v312
      %v387 = vunpack.c.l.b16 %v313
      %v388 = vunpack.c.l.b16 %v314
      %v389 = vpack.c.b16 %v358, %v357
      %v390 = vpack.c.b16 %v360, %v359
      %v391 = vpack.c.b16 %v362, %v361
      %v392 = vpack.c.b16 %v364, %v363
      %v393 = vpack.c.b16 %v366, %v365
      %v394 = vpack.c.b16 %v368, %v367
      %v395 = vpack.c.b16 %v370, %v369
      %v396 = vpack.c.b16 %v372, %v371
      %v397 = vpack.c.b16 %v374, %v373
      %v398 = vpack.c.b16 %v376, %v375
      %v399 = vpack.c.b16 %v378, %v377
      %v400 = vpack.c.b16 %v380, %v379
      %v401 = vpack.c.b16 %v382, %v381
      %v402 = vpack.c.b16 %v384, %v383
      %v403 = vpack.c.b16 %v386, %v385
      %v404 = vpack.c.b16 %v388, %v387
      %421 = vmatprep.subr.bf16.mxu0 0
      %422 = vmatpush1.bf16.msra.mxu0 %v396
      %423 = vmatprep.subr.bf16.mxu0 0
      %424 = vmatpush1.bf16.msra.mxu0 %v395
      %425 = vmatprep.subr.bf16.mxu0 0
      %426 = vmatpush1.bf16.msra.mxu0 %v394
      %427 = vmatprep.subr.bf16.mxu0 0
      %428 = vmatpush1.bf16.msra.mxu0 %v393
      %429 = vmatprep.subr.bf16.mxu0 0
      %430 = vmatpush1.bf16.msra.mxu0 %v392
      %431 = vmatprep.subr.bf16.mxu0 0
      %432 = vmatpush1.bf16.msra.mxu0 %v391
      %433 = vmatprep.subr.bf16.mxu0 0
      %434 = vmatpush1.bf16.msra.mxu0 %v390
      %435 = vmatprep.subr.bf16.mxu0 0
      %436 = vmatpush1.bf16.msra.mxu0 %v389
      %437 = vmatprep.subr.bf16.mxu0 0
      %438 = vmatpush2.bf16.msra.mxu0 %v404
      %439 = vmatprep.subr.bf16.mxu0 0
      %440 = vmatpush2.bf16.msra.mxu0 %v403
      %441 = vmatprep.subr.bf16.mxu0 0
      %442 = vmatpush2.bf16.msra.mxu0 %v402
      %443 = vmatprep.subr.bf16.mxu0 0
      %444 = vmatpush2.bf16.msra.mxu0 %v401
      %445 = vmatprep.subr.bf16.mxu0 0
      %446 = vmatpush2.bf16.msra.mxu0 %v400
      %447 = vmatprep.subr.bf16.mxu0 0
      %448 = vmatpush2.bf16.msra.mxu0 %v399
      %449 = vmatprep.subr.bf16.mxu0 0
      %450 = vmatpush2.bf16.msra.mxu0 %v398
      %451 = vmatprep.subr.bf16.mxu0 0
      %452 = vmatpush2.bf16.msra.mxu0 %v397
      %453 = vmatprep.mubr.bf16.mxu0 %v322
      %454 = vmatmul.mubr.bf16.gmra.mxu0 %v321
      %v455 = vpop.f32.mrf.mxu0
      %v456 = vadd.f32 0.0, %v455
      %v457 = vpop.f32.mrf.mxu0
      %v458 = vpop.f32.mrf.mxu0
      %v459 = vadd.f32 0.0, %v458
      %v460 = vpop.f32.mrf.mxu0
      %461 = vdwg.mxu0
      %v462 = vadd.f32 %v279, %v456
      %v463 = vadd.f32 %v280, %v459
      %464 = vst [vmem:[#allocation2] sm:$0xff] %v462
      %465 = vst [vmem:[#allocation2 + $0x8] sm:$0xff] %v463
      // Predicated region
      $region33: #{_lambda_.7} parent=27 // pred_check
        %p466 = pneg %p273
      $region34: #{_lambda_.7} parent=27 // pred_check_branch
        %468 = sbr.rel (%p466) target = $region36
      $region35: #{_lambda_.7} parent=27 // pred_region
        %v469 = vld [vmem:[#allocation2] sm:$0xff]
        %v470 = vld [vmem:[#allocation2 + $0x8] sm:$0xff]
        %v471 = vpack.c.bf16 %v470, %v469
        %v473 = vunpack.c.l.b16 %v471
        %v474 = vunpack.c.h.b16 %v471
        %v475 = vpack.c.b16 %v473, %v473
        %v476 = vpack.c.b16 %v474, %v474
        %479 = vst [vmem:[%s263] sm:$0xf] %v475
        %480 = vst [vmem:[%s263 + $0x4] sm:$0xf] %v476
        %v481 = vadd.f32 %v469, %v470
        %v482 = vrot.slane %v481, 4
        %v483 = vadd.f32 %v481, %v482
        %v484 = vrot.slane %v483, 2
        %v485 = vadd.f32 %v483, %v484
        %v486 = vrot.slane %v485, 1
        %v487 = vadd.f32 %v485, %v486
        %v488 = vmul.f32 %v469, %v469
        %v489 = vmul.f32 %v470, %v470
        %v490 = vadd.f32 %v488, %v489
        %v491 = vrot.slane %v490, 4
        %v492 = vadd.f32 %v490, %v491
        %v493 = vrot.slane %v492, 2
        %v494 = vadd.f32 %v492, %v493
        %v495 = vrot.slane %v494, 1
        %v496 = vadd.f32 %v494, %v495
        %v497 = vlaneseq
        %v498 = vshrl.u32 %v497, 7
        %vm499 = vcmp.eq.s32.totalorder %v498, 0
        %vm500 = vcmp.eq.s32.totalorder %v498, 1
        %v501 = vsel %vm500, %v496, 0.0
        %v502 = vsel %vm499, %v487, %v501
        %503 = vst [vmem:[%s271] sm:$0xff] %v502
      $region36: #{_lambda_.7} parent=27 // pred_fallthru
        _
      %s504 = smul.u32 2, %s20
      %p505 = scmp.lt.s32.totalorder %s504, 3
      %s506 = scalar_select %p505, %s504, 3
      %p507 = scmp.lt.s32.totalorder %s21, 0
      %s508 = scalar_select %p507, %s21, 0
      %s509 = sadd.s32 %s508, %s506
      %s510 = smul.addr %s509, 4
      %s511 = scalar_lea.vmem %s2, %s510
      %p512 = scmp.lt.s32.totalorder %s20, 1
      %s513 = scalar_select %p512, %s20, 1
      %p514 = scmp.lt.s32.totalorder %s21, 0
      %s515 = scalar_select %p514, %s21, 0
      %s516 = sadd.s32 %s515, %s513
      %s517 = smul.addr %s516, 8
      %s518 = scalar_lea.vmem %s3, %s517
      // Predicated region
      $region37: #{_lambda_.7} parent=27 // pred_check
        %p519 = pneg %p110
      $region38: #{_lambda_.7} parent=27 // pred_check_branch
        %521 = sbr.rel (%p519) target = $region40
      $region39: #{_lambda_.7} parent=27 // pred_region
        %s522 = smul.u32 2, %s20
      $region40: #{_lambda_.7} parent=27 // pred_fallthru
        _
      // Predicated region
      $region41: #{_lambda_.7} parent=27 // pred_check
        %p523 = pneg %p138
      $region42: #{_lambda_.7} parent=27 // pred_check_branch
        %525 = sbr.rel (%p523) target = $region44
      $region43: #{_lambda_.7} parent=27 // pred_region
        _
      $region44: #{_lambda_.7} parent=27 // pred_fallthru
        _
    $region28: #{_lambda_.7} parent=5 // pred_fallthru
      _
    %p526 = scmp.le.s32.totalorder 2, %s10
    // Predicated region
    $region45: #{_lambda_.7} parent=5 // pred_check
      %p527 = pneg %p526
    $region46: #{_lambda_.7} parent=5 // pred_check_branch
      %529 = sbr.rel (%p527) target = $region48
    $region47: #{_lambda_.7} parent=5 // pred_region
      %s530 = ssub.s32 %s10, 2
      // Predicated region
      $region49: #{_lambda_.7} parent=47 // pred_check
        %p531 = pneg %p116
      $region50: #{_lambda_.7} parent=47 // pred_check_branch
        %533 = sbr.rel (%p531) target = $region52
      $region51: #{_lambda_.7} parent=47 // pred_region
        %s534 = smul.u32 2, %s23
        %p535 = scmp.lt.s32.totalorder %s534, 3
        %s536 = scalar_select %p535, %s534, 3
        %p537 = scmp.lt.s32.totalorder %s24, 0
        %s538 = scalar_select %p537, %s24, 0
        %s539 = sadd.s32 %s538, %s536
        %s540 = smul.addr %s539, 4
        %s541 = scalar_lea.vmem %s2, %s540
      $region52: #{_lambda_.7} parent=47 // pred_fallthru
        _
      // Predicated region
      $region53: #{_lambda_.7} parent=47 // pred_check
        %p542 = pneg %p144
      $region54: #{_lambda_.7} parent=47 // pred_check_branch
        %544 = sbr.rel (%p542) target = $region56
      $region55: #{_lambda_.7} parent=47 // pred_region
        %p545 = scmp.lt.s32.totalorder %s23, 1
        %s546 = scalar_select %p545, %s23, 1
        %p547 = scmp.lt.s32.totalorder %s24, 0
        %s548 = scalar_select %p547, %s24, 0
        %s549 = sadd.s32 %s548, %s546
        %s550 = smul.addr %s549, 8
        %s551 = scalar_lea.vmem %s3, %s550
      $region56: #{_lambda_.7} parent=47 // pred_fallthru
        _
    $region48: #{_lambda_.7} parent=5 // pred_fallthru
      _
  $region6: #{_lambda_.7} parent=0 // loop_footer
    %s14 = sadd.s32 1, %s10
  $region7: #{_lambda_.7} parent=0 // loop_footer_branch
    %9 = sbr.rel target = $region3
  $region8: #{_lambda_.7} parent=0 // loop_exit
    _

// kernel: _lambda_.8
$region0: #{_lambda_.8}
  #allocation0 [shape = 'u32[]', space=smem, size = 0x4, offset = 0x4, fixed_abs, tag = 'smem constant byte address 0x4 - core index']
  #allocation1 [shape = 'u32[144,128]{1,0:T(1,128)}', space=vmem, size = 0x12000, scoped, tag = 'internal scratch']
  #allocation2 [shape = 'f32[16,128]{1,0:T(8,128)}', space=vmem, size = 0x2000, scoped, tag = 'scratch operand']
  %s0 = inlined_call_operand.vmem [shape: bf16[32,512], index: 0, kind: input, shape index: {}]
  %s1 = inlined_call_operand.vmem [shape: bf16[512,128], index: 1, kind: input, shape index: {}]
  %s2 = inlined_call_operand.vmem [shape: bf16[32,128], index: 2, kind: output, shape index: {0}]
  %s3 = inlined_call_operand.vmem [shape: f32[16,128], index: 3, kind: output, shape index: {1}]
  %4 = xla_tuple %s2, %s3
  %s5 = sld [smem:[#allocation0]]
  $region57: #{_lambda_.8} parent=0
    _
  %s7 = ssub.s32 1, %s5
  %s8 = scalar_select 0, %s7, %s5
  loop: start=0, step=1, limit=4
  $region2: #{_lambda_.8} parent=0 // loop_pre_header
    _
  $region3: #{_lambda_.8} parent=0 // loop_header
    %s10 = sphi 0, %s14
    %p11 = scmp.ge.s32.totalorder %s10, 4
    %s17 = sphi 0, %s36
    %s18 = sphi 0, %s32
    %s19 = sphi 0, %s28
    %s20 = sphi 0, %s17
    %s21 = sphi 0, %s18
    %s22 = sphi 0, %s19
    %s23 = sphi 0, %s20
    %s24 = sphi 0, %s21
    %s25 = sphi 0, %s22
    %s41 = sphi 0, %s43
    %s44 = sphi 0, %s41
    %s45 = sphi 0, %s44
    %s61 = sphi 0, %s45
    %s69 = sphi 0, %s71
    %s72 = sphi 0, %s69
    %s73 = sphi 0, %s72
    %s89 = sphi 0, %s73
    %s97 = sphi 0, %s99
    %s100 = sphi 0, %s97
    %s101 = sphi 0, %s100
    %s117 = sphi 0, %s101
    %s125 = sphi 0, %s127
    %s128 = sphi 0, %s125
    %s129 = sphi 0, %s128
    %s145 = sphi 0, %s129
  $region4: #{_lambda_.8} parent=0 // loop_header_branch
    %13 = sbr.rel (%p11) target = $region8
  $region5: #{_lambda_.8} parent=0 // loop_body
    %s15 = ssub.s32 %s10, 1
    %s16 = ssub.s32 %s10, 2
    %s26 = sadd.s32 1, %s19
    %p27 = scmp.ge.s32.totalorder %s26, 1
    %s28 = scalar_select %p27, 0, %s26
    %s29 = sadd.s32 1, %s18
    %s30 = scalar_select %p27, %s29, %s18
    %p31 = scmp.ge.s32.totalorder %s30, 1
    %s32 = scalar_select %p31, 0, %s30
    %s33 = sadd.s32 1, %s17
    %s34 = scalar_select %p31, %s33, %s17
    %p35 = scmp.ge.s32.totalorder %s34, 2
    %s36 = scalar_select %p35, 0, %s34
    %s37 = ssub.s32 %s17, %s36
    %s38 = ssub.s32 %s19, %s28
    %s39 = sor.u32 %s37, %s38
    %p40 = scmp.eq.s32.totalorder %s39, 0
    %s42 = sadd.s32 %s41, 1
    %s43 = scalar_select %p40, %s41, %s42
    %p46 = pneg %p40
    %p47 = scmp.eq.s32.totalorder %s10, 1
    %p48 = por %p46, %p47
    %p49 = scmp.ne.s32.totalorder %s41, %s44
    %p50 = scmp.eq.s32.totalorder %s10, 0
    %p51 = por %p49, %p50
    %p52 = scmp.ne.s32.totalorder %s41, %s44
    %p53 = scmp.eq.s32.totalorder %s15, 1
    %p54 = por %p52, %p53
    %p55 = scmp.ne.s32.totalorder %s44, %s45
    %p56 = scmp.eq.s32.totalorder %s15, 0
    %p57 = por %p55, %p56
    %p58 = scmp.ne.s32.totalorder %s44, %s45
    %p59 = scmp.eq.s32.totalorder %s16, 1
    %p60 = por %p58, %p59
    %p62 = scmp.ne.s32.totalorder %s45, %s61
    %p63 = scmp.eq.s32.totalorder %s16, 0
    %p64 = por %p62, %p63
    %s65 = ssub.s32 %s19, %s28
    %s66 = ssub.s32 %s18, %s32
    %s67 = sor.u32 %s65, %s66
    %p68 = scmp.eq.s32.totalorder %s67, 0
    %s70 = sadd.s32 %s69, 1
    %s71 = scalar_select %p68, %s69, %s70
    %p74 = pneg %p68
    %p75 = scmp.eq.s32.totalorder %s10, 1
    %p76 = por %p74, %p75
    %p77 = scmp.ne.s32.totalorder %s69, %s72
    %p78 = scmp.eq.s32.totalorder %s10, 0
    %p79 = por %p77, %p78
    %p80 = scmp.ne.s32.totalorder %s69, %s72
    %p81 = scmp.eq.s32.totalorder %s15, 1
    %p82 = por %p80, %p81
    %p83 = scmp.ne.s32.totalorder %s72, %s73
    %p84 = scmp.eq.s32.totalorder %s15, 0
    %p85 = por %p83, %p84
    %p86 = scmp.ne.s32.totalorder %s72, %s73
    %p87 = scmp.eq.s32.totalorder %s16, 1
    %p88 = por %p86, %p87
    %p90 = scmp.ne.s32.totalorder %s73, %s89
    %p91 = scmp.eq.s32.totalorder %s16, 0
    %p92 = por %p90, %p91
    %s93 = ssub.s32 %s17, %s36
    %s94 = ssub.s32 %s18, %s32
    %s95 = sor.u32 %s93, %s94
    %p96 = scmp.eq.s32.totalorder %s95, 0
    %s98 = sadd.s32 %s97, 1
    %s99 = scalar_select %p96, %s97, %s98
    %p102 = pneg %p96
    %p103 = scmp.eq.s32.totalorder %s10, 1
    %p104 = por %p102, %p103
    %p105 = scmp.ne.s32.totalorder %s97, %s100
    %p106 = scmp.eq.s32.totalorder %s10, 0
    %p107 = por %p105, %p106
    %p108 = scmp.ne.s32.totalorder %s97, %s100
    %p109 = scmp.eq.s32.totalorder %s15, 1
    %p110 = por %p108, %p109
    %p111 = scmp.ne.s32.totalorder %s100, %s101
    %p112 = scmp.eq.s32.totalorder %s15, 0
    %p113 = por %p111, %p112
    %p114 = scmp.ne.s32.totalorder %s100, %s101
    %p115 = scmp.eq.s32.totalorder %s16, 1
    %p116 = por %p114, %p115
    %p118 = scmp.ne.s32.totalorder %s101, %s117
    %p119 = scmp.eq.s32.totalorder %s16, 0
    %p120 = por %p118, %p119
    %s121 = ssub.s32 %s17, %s36
    %s122 = ssub.s32 %s18, %s32
    %s123 = sor.u32 %s121, %s122
    %p124 = scmp.eq.s32.totalorder %s123, 0
    %s126 = sadd.s32 %s125, 1
    %s127 = scalar_select %p124, %s125, %s126
    %p130 = pneg %p124
    %p131 = scmp.eq.s32.totalorder %s10, 1
    %p132 = por %p130, %p131
    %p133 = scmp.ne.s32.totalorder %s125, %s128
    %p134 = scmp.eq.s32.totalorder %s10, 0
    %p135 = por %p133, %p134
    %p136 = scmp.ne.s32.totalorder %s125, %s128
    %p137 = scmp.eq.s32.totalorder %s15, 1
    %p138 = por %p136, %p137
    %p139 = scmp.ne.s32.totalorder %s128, %s129
    %p140 = scmp.eq.s32.totalorder %s15, 0
    %p141 = por %p139, %p140
    %p142 = scmp.ne.s32.totalorder %s128, %s129
    %p143 = scmp.eq.s32.totalorder %s16, 1
    %p144 = por %p142, %p143
    %p146 = scmp.ne.s32.totalorder %s129, %s145
    %p147 = scmp.eq.s32.totalorder %s16, 0
    %p148 = por %p146, %p147
    %p149 = scmp.le.s32.totalorder 1, %s10
    %p150 = scmp.lt.s32.totalorder %s10, 3
    %p151 = pnand %p149, %p150
    %p152 = pneg %p151
    // Predicated region
    $region9: #{_lambda_.8} parent=5 // pred_check
      _
    $region10: #{_lambda_.8} parent=5 // pred_check_branch
      %154 = sbr.rel (%p151) target = $region12
    $region11: #{_lambda_.8} parent=5 // pred_region
      %s155 = ssub.s32 %s10, 1
      // Predicated region
      $region13: #{_lambda_.8} parent=11 // pred_check
        %p156 = pneg %p85
      $region14: #{_lambda_.8} parent=11 // pred_check_branch
        %158 = sbr.rel (%p156) target = $region16
      $region15: #{_lambda_.8} parent=11 // pred_region
        %s159 = smul.u32 64, %s22
        %p160 = scmp.lt.s32.totalorder %s159, 63
        %s161 = scalar_select %p160, %s159, 63
        %p162 = scmp.lt.s32.totalorder %s21, 0
        %s163 = scalar_select %p162, %s21, 0
        %s164 = sadd.s32 %s163, %s161
        %s165 = smul.addr %s164, 4
        %s166 = scalar_lea.vmem %s1, %s165
        %s167 = smul.u32 64, %s22
      $region16: #{_lambda_.8} parent=11 // pred_fallthru
        _
    $region12: #{_lambda_.8} parent=5 // pred_fallthru
      _
    %p168 = scmp.lt.s32.totalorder %s10, 2
    // Predicated region
    $region17: #{_lambda_.8} parent=5 // pred_check
      %p169 = pneg %p168
    $region18: #{_lambda_.8} parent=5 // pred_check_branch
      %171 = sbr.rel (%p169) target = $region20
    $region19: #{_lambda_.8} parent=5 // pred_region
      // Predicated region
      $region21: #{_lambda_.8} parent=19 // pred_check
        %p172 = pneg %p51
      $region22: #{_lambda_.8} parent=19 // pred_check_branch
        %174 = sbr.rel (%p172) target = $region24
      $region23: #{_lambda_.8} parent=19 // pred_region
        %s175 = smul.u32 2, %s17
        %s176 = smul.u32 4, %s19
        %p177 = scmp.lt.s32.totalorder %s175, 3
        %s178 = scalar_select %p177, %s175, 3
        %p179 = scmp.lt.s32.totalorder %s176, 3
        %s180 = scalar_select %p179, %s176, 3
        %s181 = smul.addr %s178, 4
        %s182 = sadd.s32 %s180, %s181
        %s183 = smul.addr %s182, 4
        %s184 = scalar_lea.vmem %s0, %s183
        %s185 = smul.u32 2, %s17
        %s186 = smul.u32 4, %s19
      $region24: #{_lambda_.8} parent=19 // pred_fallthru
        _
    $region20: #{_lambda_.8} parent=5 // pred_fallthru
      _
    %p187 = scmp.le.s32.totalorder 1, %s10
    %p188 = scmp.lt.s32.totalorder %s10, 3
    %p189 = pnand %p187, %p188
    %p190 = pneg %p189
    // Predicated region
    $region25: #{_lambda_.8} parent=5 // pred_check
      _
    $region26: #{_lambda_.8} parent=5 // pred_check_branch
      %192 = sbr.rel (%p189) target = $region28
    $region27: #{_lambda_.8} parent=5 // pred_region
      %s193 = ssub.s32 %s10, 1
      %s194 = smul.u32 2, %s20
      %s195 = smul.u32 4, %s22
      %p196 = scmp.lt.s32.totalorder %s194, 3
      %s197 = scalar_select %p196, %s194, 3
      %p198 = scmp.lt.s32.totalorder %s195, 3
      %s199 = scalar_select %p198, %s195, 3
      %s200 = smul.addr %s197, 4
      %s201 = sadd.s32 %s199, %s200
      %s202 = smul.addr %s201, 4
      %s203 = scalar_lea.vmem %s0, %s202
      %p204 = pneg %p57
      %p205 = pneg %p54
      %s206 = smul.u32 64, %s22
      %p207 = scmp.lt.s32.totalorder %s206, 63
      %s208 = scalar_select %p207, %s206, 63
      %p209 = scmp.lt.s32.totalorder %s21, 0
      %s210 = scalar_select %p209, %s21, 0
      %s211 = sadd.s32 %s210, %s208
      %s212 = smul.addr %s211, 4
      %s213 = scalar_lea.vmem %s1, %s212
      %p214 = pneg %p85
      %p215 = pneg %p82
      %p216 = pneg %p113
      %p217 = pneg %p110
      %s218 = smul.u32 2, %s20
      %p219 = scmp.lt.s32.totalorder %s218, 3
      %s220 = scalar_select %p219, %s218, 3
      %p221 = scmp.lt.s32.totalorder %s21, 0
      %s222 = scalar_select %p221, %s21, 0
      %s223 = sadd.s32 %s222, %s220
      %s224 = smul.addr %s223, 4
      %s225 = scalar_lea.vmem %s2, %s224
      %p226 = pneg %p141
      %p227 = pneg %p138
      %p228 = scmp.lt.s32.totalorder %s20, 1
      %s229 = scalar_select %p228, %s20, 1
      %p230 = scmp.lt.s32.totalorder %s21, 0
      %s231 = scalar_select %p230, %s21, 0
      %s232 = sadd.s32 %s231, %s229
      %s233 = smul.addr %s232, 8
      %s234 = scalar_lea.vmem %s3, %s233
      %s235 = smul.u32 2, %s20
      %s236 = smul.u32 4, %s22
      %p237 = scmp.lt.s32.totalorder %s235, 3
      %s238 = scalar_select %p237, %s235, 3
      %p239 = scmp.lt.s32.totalorder %s236, 3
      %s240 = scalar_select %p239, %s236, 3
      %s241 = smul.addr %s238, 4
      %s242 = sadd.s32 %s240, %s241
      %s243 = smul.addr %s242, 4
      %s244 = scalar_lea.vmem %s0, %s243
      %s245 = smul.u32 2, %s20
      %s246 = smul.u32 4, %s22
      %s247 = smul.u32 64, %s22
      %p248 = scmp.lt.s32.totalorder %s247, 63
      %s249 = scalar_select %p248, %s247, 63
      %p250 = scmp.lt.s32.totalorder %s21, 0
      %s251 = scalar_select %p250, %s21, 0
      %s252 = sadd.s32 %s251, %s249
      %s253 = smul.addr %s252, 4
      %s254 = scalar_lea.vmem %s1, %s253
      %s255 = smul.u32 64, %s22
      %s256 = smul.u32 2, %s20
      %p257 = scmp.lt.s32.totalorder %s256, 3
      %s258 = scalar_select %p257, %s256, 3
      %p259 = scmp.lt.s32.totalorder %s21, 0
      %s260 = scalar_select %p259, %s21, 0
      %s261 = sadd.s32 %s260, %s258
      %s262 = smul.addr %s261, 4
      %s263 = scalar_lea.vmem %s2, %s262
      %s264 = smul.u32 2, %s20
      %p265 = scmp.lt.s32.totalorder %s20, 1
      %s266 = scalar_select %p265, %s20, 1
      %p267 = scmp.lt.s32.totalorder %s21, 0
      %s268 = scalar_select %p267, %s21, 0
      %s269 = sadd.s32 %s268, %s266
      %s270 = smul.addr %s269, 8
      %s271 = scalar_lea.vmem %s3, %s270
      %p273 = scmp.eq.s32.totalorder %s22, 0
      // Predicated region
      $region29: #{_lambda_.8} parent=27 // pred_check
        %p274 = pneg %p273
      $region30: #{_lambda_.8} parent=27 // pred_check_branch
        %276 = sbr.rel (%p274) target = $region32
      $region31: #{_lambda_.8} parent=27 // pred_region
        %277 = vst [vmem:[#allocation2] sm:$0xff] 0.0
        %278 = vst [vmem:[#allocation2 + $0x8] sm:$0xff] 0.0
      $region32: #{_lambda_.8} parent=27 // pred_fallthru
        _
      %v279 = vld [vmem:[#allocation2] sm:$0xff]
      %v280 = vld [vmem:[#allocation2 + $0x8] sm:$0xff]
      %v281 = vld [vmem:[%s244] sm:$0xff]
      %v282 = vld [vmem:[%s244 + $0x8] sm:$0xff]
      %v283 = vld [vmem:[%s244 + $0x10] sm:$0xff]
      %v284 = vld [vmem:[%s244 + $0x18] sm:$0xff]
      %v285 = vld [vmem:[%s254] sm:$0xf]
      %v286 = vld [vmem:[%s254 + $0x4] sm:$0xf]
      %v287 = vld [vmem:[%s254 + $0x8] sm:$0xf]
      %v288 = vld [vmem:[%s254 + $0xc] sm:$0xf]
      %v289 = vld [vmem:[%s254 + $0x10] sm:$0xf]
      %v290 = vld [vmem:[%s254 + $0x14] sm:$0xf]
      %v291 = vld [vmem:[%s254 + $0x18] sm:$0xf]
      %v292 = vld [vmem:[%s254 + $0x1c] sm:$0xf]
      %v293 = vld [vmem:[%s254 + $0x20] sm:$0xf]
      %v294 = vld [vmem:[%s254 + $0x24] sm:$0xf]
      %v295 = vld [vmem:[%s254 + $0x28] sm:$0xf]
      %v296 = vld [vmem:[%s254 + $0x2c] sm:$0xf]
      %v297 = vld [vmem:[%s254 + $0x30] sm:$0xf]
      %v298 = vld [vmem:[%s254 + $0x34] sm:$0xf]
      %v299 = vld [vmem:[%s254 + $0x38] sm:$0xf]
      %v300 = vld [vmem:[%s254 + $0x3c] sm:$0xf]
      %v301 = vld [vmem:[%s254 + $0x40] sm:$0xf]
      %v302 = vld [vmem:[%s254 + $0x44] sm:$0xf]
      %v303 = vld [vmem:[%s254 + $0x48] sm:$0xf]
      %v304 = vld [vmem:[%s254 + $0x4c] sm:$0xf]
      %v305 = vld [vmem:[%s254 + $0x50] sm:$0xf]
      %v306 = vld [vmem:[%s254 + $0x54] sm:$0xf]
      %v307 = vld [vmem:[%s254 + $0x58] sm:$0xf]
      %v308 = vld [vmem:[%s254 + $0x5c] sm:$0xf]
      %v309 = vld [vmem:[%s254 + $0x60] sm:$0xf]
      %v310 = vld [vmem:[%s254 + $0x64] sm:$0xf]
      %v311 = vld [vmem:[%s254 + $0x68] sm:$0xf]
      %v312 = vld [vmem:[%s254 + $0x6c] sm:$0xf]
      %v313 = vld [vmem:[%s254 + $0x70] sm:$0xf]
      %v314 = vld [vmem:[%s254 + $0x74] sm:$0xf]
      %v315 = vld [vmem:[%s254 + $0x78] sm:$0xf]
      %v316 = vld [vmem:[%s254 + $0x7c] sm:$0xf]
      %v317 = vld [vmem:[%s254 + $0x80] sm:$0xf]
      %v318 = vld [vmem:[%s254 + $0x84] sm:$0xf]
      %v319 = vld [vmem:[%s254 + $0x88] sm:$0xf]
      %v320 = vld [vmem:[%s254 + $0x8c] sm:$0xf]
      %v321 = vld [vmem:[%s254 + $0x90] sm:$0xf]
      %v322 = vld [vmem:[%s254 + $0x94] sm:$0xf]
      %v323 = vld [vmem:[%s254 + $0x98] sm:$0xf]
      %v324 = vld [vmem:[%s254 + $0x9c] sm:$0xf]
      %v325 = vld [vmem:[%s254 + $0xa0] sm:$0xf]
      %v326 = vld [vmem:[%s254 + $0xa4] sm:$0xf]
      %v327 = vld [vmem:[%s254 + $0xa8] sm:$0xf]
      %v328 = vld [vmem:[%s254 + $0xac] sm:$0xf]
      %v329 = vld [vmem:[%s254 + $0xb0] sm:$0xf]
      %v330 = vld [vmem:[%s254 + $0xb4] sm:$0xf]
      %v331 = vld [vmem:[%s254 + $0xb8] sm:$0xf]
      %v332 = vld [vmem:[%s254 + $0xbc] sm:$0xf]
      %v333 = vld [vmem:[%s254 + $0xc0] sm:$0xf]
      %v334 = vld [vmem:[%s254 + $0xc4] sm:$0xf]
      %v335 = vld [vmem:[%s254 + $0xc8] sm:$0xf]
      %v336 = vld [vmem:[%s254 + $0xcc] sm:$0xf]
      %v337 = vld [vmem:[%s254 + $0xd0] sm:$0xf]
      %v338 = vld [vmem:[%s254 + $0xd4] sm:$0xf]
      %v339 = vld [vmem:[%s254 + $0xd8] sm:$0xf]
      %v340 = vld [vmem:[%s254 + $0xdc] sm:$0xf]
      %v341 = vld [vmem:[%s254 + $0xe0] sm:$0xf]
      %v342 = vld [vmem:[%s254 + $0xe4] sm:$0xf]
      %v343 = vld [vmem:[%s254 + $0xe8] sm:$0xf]
      %v344 = vld [vmem:[%s254 + $0xec] sm:$0xf]
      %v345 = vld [vmem:[%s254 + $0xf0] sm:$0xf]
      %v346 = vld [vmem:[%s254 + $0xf4] sm:$0xf]
      %v347 = vld [vmem:[%s254 + $0xf8] sm:$0xf]
      %v348 = vld [vmem:[%s254 + $0xfc] sm:$0xf]
      %v353 = vunpack.c.l.b16 %v281
      %v354 = vunpack.c.h.b16 %v281
      %v355 = vunpack.c.l.b16 %v282
      %v356 = vunpack.c.h.b16 %v282
      %v357 = vunpack.c.l.b16 %v283
      %v358 = vunpack.c.h.b16 %v283
      %v359 = vunpack.c.l.b16 %v284
      %v360 = vunpack.c.h.b16 %v284
      %v361 = vpack.c.b16 %v357, %v353
      %v362 = vpack.c.b16 %v358, %v354
      %v363 = vpack.c.b16 %v359, %v355
      %v364 = vpack.c.b16 %v360, %v356
      %v433 = vunpack.c.l.b16 %v285
      %v434 = vunpack.c.l.b16 %v286
      %v435 = vunpack.c.l.b16 %v287
      %v436 = vunpack.c.l.b16 %v288
      %v437 = vunpack.c.l.b16 %v289
      %v438 = vunpack.c.l.b16 %v290
      %v439 = vunpack.c.l.b16 %v291
      %v440 = vunpack.c.l.b16 %v292
      %v441 = vunpack.c.l.b16 %v293
      %v442 = vunpack.c.l.b16 %v294
      %v443 = vunpack.c.l.b16 %v295
      %v444 = vunpack.c.l.b16 %v296
      %v445 = vunpack.c.l.b16 %v297
      %v446 = vunpack.c.l.b16 %v298
      %v447 = vunpack.c.l.b16 %v299
      %v448 = vunpack.c.l.b16 %v300
      %v449 = vunpack.c.l.b16 %v301
      %v450 = vunpack.c.l.b16 %v302
      %v451 = vunpack.c.l.b16 %v303
      %v452 = vunpack.c.l.b16 %v304
      %v453 = vunpack.c.l.b16 %v305
      %v454 = vunpack.c.l.b16 %v306
      %v455 = vunpack.c.l.b16 %v307
      %v456 = vunpack.c.l.b16 %v308
      %v457 = vunpack.c.l.b16 %v309
      %v458 = vunpack.c.l.b16 %v310
      %v459 = vunpack.c.l.b16 %v311
      %v460 = vunpack.c.l.b16 %v312
      %v461 = vunpack.c.l.b16 %v313
      %v462 = vunpack.c.l.b16 %v314
      %v463 = vunpack.c.l.b16 %v315
      %v464 = vunpack.c.l.b16 %v316
      %v465 = vunpack.c.l.b16 %v317
      %v466 = vunpack.c.l.b16 %v318
      %v467 = vunpack.c.l.b16 %v319
      %v468 = vunpack.c.l.b16 %v320
      %v469 = vunpack.c.l.b16 %v321
      %v470 = vunpack.c.l.b16 %v322
      %v471 = vunpack.c.l.b16 %v323
      %v472 = vunpack.c.l.b16 %v324
      %v473 = vunpack.c.l.b16 %v325
      %v474 = vunpack.c.l.b16 %v326
      %v475 = vunpack.c.l.b16 %v327
      %v476 = vunpack.c.l.b16 %v328
      %v477 = vunpack.c.l.b16 %v329
      %v478 = vunpack.c.l.b16 %v330
      %v479 = vunpack.c.l.b16 %v331
      %v480 = vunpack.c.l.b16 %v332
      %v481 = vunpack.c.l.b16 %v333
      %v482 = vunpack.c.l.b16 %v334
      %v483 = vunpack.c.l.b16 %v335
      %v484 = vunpack.c.l.b16 %v336
      %v485 = vunpack.c.l.b16 %v337
      %v486 = vunpack.c.l.b16 %v338
      %v487 = vunpack.c.l.b16 %v339
      %v488 = vunpack.c.l.b16 %v340
      %v489 = vunpack.c.l.b16 %v341
      %v490 = vunpack.c.l.b16 %v342
      %v491 = vunpack.c.l.b16 %v343
      %v492 = vunpack.c.l.b16 %v344
      %v493 = vunpack.c.l.b16 %v345
      %v494 = vunpack.c.l.b16 %v346
      %v495 = vunpack.c.l.b16 %v347
      %v496 = vunpack.c.l.b16 %v348
      %v497 = vpack.c.b16 %v434, %v433
      %v498 = vpack.c.b16 %v436, %v435
      %v499 = vpack.c.b16 %v438, %v437
      %v500 = vpack.c.b16 %v440, %v439
      %v501 = vpack.c.b16 %v442, %v441
      %v502 = vpack.c.b16 %v444, %v443
      %v503 = vpack.c.b16 %v446, %v445
      %v504 = vpack.c.b16 %v448, %v447
      %v505 = vpack.c.b16 %v450, %v449
      %v506 = vpack.c.b16 %v452, %v451
      %v507 = vpack.c.b16 %v454, %v453
      %v508 = vpack.c.b16 %v456, %v455
      %v509 = vpack.c.b16 %v458, %v457
      %v510 = vpack.c.b16 %v460, %v459
      %v511 = vpack.c.b16 %v462, %v461
      %v512 = vpack.c.b16 %v464, %v463
      %v513 = vpack.c.b16 %v466, %v465
      %v514 = vpack.c.b16 %v468, %v467
      %v515 = vpack.c.b16 %v470, %v469
      %v516 = vpack.c.b16 %v472, %v471
      %v517 = vpack.c.b16 %v474, %v473
      %v518 = vpack.c.b16 %v476, %v475
      %v519 = vpack.c.b16 %v478, %v477
      %v520 = vpack.c.b16 %v480, %v479
      %v521 = vpack.c.b16 %v482, %v481
      %v522 = vpack.c.b16 %v484, %v483
      %v523 = vpack.c.b16 %v486, %v485
      %v524 = vpack.c.b16 %v488, %v487
      %v525 = vpack.c.b16 %v490, %v489
      %v526 = vpack.c.b16 %v492, %v491
      %v527 = vpack.c.b16 %v494, %v493
      %v528 = vpack.c.b16 %v496, %v495
      %561 = vmatprep.subr.bf16.mxu0 0
      %562 = vmatpush1.bf16.msra.mxu0 %v504
      %563 = vmatprep.subr.bf16.mxu0 0
      %564 = vmatpush1.bf16.msra.mxu0 %v503
      %565 = vmatprep.subr.bf16.mxu0 0
      %566 = vmatpush1.bf16.msra.mxu0 %v502
      %567 = vmatprep.subr.bf16.mxu0 0
      %568 = vmatpush1.bf16.msra.mxu0 %v501
      %569 = vmatprep.subr.bf16.mxu0 0
      %570 = vmatpush1.bf16.msra.mxu0 %v500
      %571 = vmatprep.subr.bf16.mxu0 0
      %572 = vmatpush1.bf16.msra.mxu0 %v499
      %573 = vmatprep.subr.bf16.mxu0 0
      %574 = vmatpush1.bf16.msra.mxu0 %v498
      %575 = vmatprep.subr.bf16.mxu0 0
      %576 = vmatpush1.bf16.msra.mxu0 %v497
      %577 = vmatprep.subr.bf16.mxu0 0
      %578 = vmatpush2.bf16.msra.mxu0 %v512
      %579 = vmatprep.subr.bf16.mxu0 0
      %580 = vmatpush2.bf16.msra.mxu0 %v511
      %581 = vmatprep.subr.bf16.mxu0 0
      %582 = vmatpush2.bf16.msra.mxu0 %v510
      %583 = vmatprep.subr.bf16.mxu0 0
      %584 = vmatpush2.bf16.msra.mxu0 %v509
      %585 = vmatprep.subr.bf16.mxu0 0
      %586 = vmatpush2.bf16.msra.mxu0 %v508
      %587 = vmatprep.subr.bf16.mxu0 0
      %588 = vmatpush2.bf16.msra.mxu0 %v507
      %589 = vmatprep.subr.bf16.mxu0 0
      %590 = vmatpush2.bf16.msra.mxu0 %v506
      %591 = vmatprep.subr.bf16.mxu0 0
      %592 = vmatpush2.bf16.msra.mxu0 %v505
      %593 = vmatprep.mubr.bf16.mxu0 %v362
      %594 = vmatmul.mubr.bf16.gmra.mxu0 %v361
      %v595 = vpop.f32.mrf.mxu0
      %v596 = vadd.f32 0.0, %v595
      %v597 = vpop.f32.mrf.mxu0
      %v598 = vpop.f32.mrf.mxu0
      %v599 = vadd.f32 0.0, %v598
      %v600 = vpop.f32.mrf.mxu0
      %601 = vdwg.mxu0
      %602 = vmatprep.subr.bf16.mxu0 0
      %603 = vmatpush1.bf16.msra.mxu0 %v520
      %604 = vmatprep.subr.bf16.mxu0 0
      %605 = vmatpush1.bf16.msra.mxu0 %v519
      %606 = vmatprep.subr.bf16.mxu0 0
      %607 = vmatpush1.bf16.msra.mxu0 %v518
      %608 = vmatprep.subr.bf16.mxu0 0
      %609 = vmatpush1.bf16.msra.mxu0 %v517
      %610 = vmatprep.subr.bf16.mxu0 0
      %611 = vmatpush1.bf16.msra.mxu0 %v516
      %612 = vmatprep.subr.bf16.mxu0 0
      %613 = vmatpush1.bf16.msra.mxu0 %v515
      %614 = vmatprep.subr.bf16.mxu0 0
      %615 = vmatpush1.bf16.msra.mxu0 %v514
      %616 = vmatprep.subr.bf16.mxu0 0
      %617 = vmatpush1.bf16.msra.mxu0 %v513
      %618 = vmatprep.subr.bf16.mxu0 0
      %619 = vmatpush2.bf16.msra.mxu0 %v528
      %620 = vmatprep.subr.bf16.mxu0 0
      %621 = vmatpush2.bf16.msra.mxu0 %v527
      %622 = vmatprep.subr.bf16.mxu0 0
      %623 = vmatpush2.bf16.msra.mxu0 %v526
      %624 = vmatprep.subr.bf16.mxu0 0
      %625 = vmatpush2.bf16.msra.mxu0 %v525
      %626 = vmatprep.subr.bf16.mxu0 0
      %627 = vmatpush2.bf16.msra.mxu0 %v524
      %628 = vmatprep.subr.bf16.mxu0 0
      %629 = vmatpush2.bf16.msra.mxu0 %v523
      %630 = vmatprep.subr.bf16.mxu0 0
      %631 = vmatpush2.bf16.msra.mxu0 %v522
      %632 = vmatprep.subr.bf16.mxu0 0
      %633 = vmatpush2.bf16.msra.mxu0 %v521
      %634 = vmatprep.mubr.bf16.mxu0 %v364
      %635 = vmatmul.mubr.bf16.gmra.mxu0 %v363
      %v636 = vpop.f32.mrf.mxu0
      %v637 = vadd.f32 %v596, %v636
      %v638 = vpop.f32.mrf.mxu0
      %v639 = vpop.f32.mrf.mxu0
      %v640 = vadd.f32 %v599, %v639
      %v641 = vpop.f32.mrf.mxu0
      %642 = vdwg.mxu0
      %v643 = vadd.f32 %v279, %v637
      %v644 = vadd.f32 %v280, %v640
      %645 = vst [vmem:[#allocation2] sm:$0xff] %v643
      %646 = vst [vmem:[#allocation2 + $0x8] sm:$0xff] %v644
      // Predicated region
      $region33: #{_lambda_.8} parent=27 // pred_check
        %p647 = pneg %p273
      $region34: #{_lambda_.8} parent=27 // pred_check_branch
        %649 = sbr.rel (%p647) target = $region36
      $region35: #{_lambda_.8} parent=27 // pred_region
        %v650 = vld [vmem:[#allocation2] sm:$0xff]
        %v651 = vld [vmem:[#allocation2 + $0x8] sm:$0xff]
        %v652 = vpack.c.bf16 %v651, %v650
        %v654 = vunpack.c.l.b16 %v652
        %v655 = vunpack.c.h.b16 %v652
        %v656 = vpack.c.b16 %v654, %v654
        %v657 = vpack.c.b16 %v655, %v655
        %660 = vst [vmem:[%s263] sm:$0xf] %v656
        %661 = vst [vmem:[%s263 + $0x4] sm:$0xf] %v657
        %v662 = vadd.f32 %v650, %v651
        %v663 = vrot.slane %v662, 4
        %v664 = vadd.f32 %v662, %v663
        %v665 = vrot.slane %v664, 2
        %v666 = vadd.f32 %v664, %v665
        %v667 = vrot.slane %v666, 1
        %v668 = vadd.f32 %v666, %v667
        %v669 = vmul.f32 %v650, %v650
        %v670 = vmul.f32 %v651, %v651
        %v671 = vadd.f32 %v669, %v670
        %v672 = vrot.slane %v671, 4
        %v673 = vadd.f32 %v671, %v672
        %v674 = vrot.slane %v673, 2
        %v675 = vadd.f32 %v673, %v674
        %v676 = vrot.slane %v675, 1
        %v677 = vadd.f32 %v675, %v676
        %v678 = vlaneseq
        %v679 = vshrl.u32 %v678, 7
        %vm680 = vcmp.eq.s32.totalorder %v679, 0
        %vm681 = vcmp.eq.s32.totalorder %v679, 1
        %v682 = vsel %vm681, %v677, 0.0
        %v683 = vsel %vm680, %v668, %v682
        %684 = vst [vmem:[%s271] sm:$0xff] %v683
      $region36: #{_lambda_.8} parent=27 // pred_fallthru
        _
      %s685 = smul.u32 2, %s20
      %p686 = scmp.lt.s32.totalorder %s685, 3
      %s687 = scalar_select %p686, %s685, 3
      %p688 = scmp.lt.s32.totalorder %s21, 0
      %s689 = scalar_select %p688, %s21, 0
      %s690 = sadd.s32 %s689, %s687
      %s691 = smul.addr %s690, 4
      %s692 = scalar_lea.vmem %s2, %s691
      %p693 = scmp.lt.s32.totalorder %s20, 1
      %s694 = scalar_select %p693, %s20, 1
      %p695 = scmp.lt.s32.totalorder %s21, 0
      %s696 = scalar_select %p695, %s21, 0
      %s697 = sadd.s32 %s696, %s694
      %s698 = smul.addr %s697, 8
      %s699 = scalar_lea.vmem %s3, %s698
      // Predicated region
      $region37: #{_lambda_.8} parent=27 // pred_check
        %p700 = pneg %p110
      $region38: #{_lambda_.8} parent=27 // pred_check_branch
        %702 = sbr.rel (%p700) target = $region40
      $region39: #{_lambda_.8} parent=27 // pred_region
        %s703 = smul.u32 2, %s20
      $region40: #{_lambda_.8} parent=27 // pred_fallthru
        _
      // Predicated region
      $region41: #{_lambda_.8} parent=27 // pred_check
        %p704 = pneg %p138
      $region42: #{_lambda_.8} parent=27 // pred_check_branch
        %706 = sbr.rel (%p704) target = $region44
      $region43: #{_lambda_.8} parent=27 // pred_region
        _
      $region44: #{_lambda_.8} parent=27 // pred_fallthru
        _
    $region28: #{_lambda_.8} parent=5 // pred_fallthru
      _
    %p707 = scmp.le.s32.totalorder 2, %s10
    // Predicated region
    $region45: #{_lambda_.8} parent=5 // pred_check
      %p708 = pneg %p707
    $region46: #{_lambda_.8} parent=5 // pred_check_branch
      %710 = sbr.rel (%p708) target = $region48
    $region47: #{_lambda_.8} parent=5 // pred_region
      %s711 = ssub.s32 %s10, 2
      // Predicated region
      $region49: #{_lambda_.8} parent=47 // pred_check
        %p712 = pneg %p116
      $region50: #{_lambda_.8} parent=47 // pred_check_branch
        %714 = sbr.rel (%p712) target = $region52
      $region51: #{_lambda_.8} parent=47 // pred_region
        %s715 = smul.u32 2, %s23
        %p716 = scmp.lt.s32.totalorder %s715, 3
        %s717 = scalar_select %p716, %s715, 3
        %p718 = scmp.lt.s32.totalorder %s24, 0
        %s719 = scalar_select %p718, %s24, 0
        %s720 = sadd.s32 %s719, %s717
        %s721 = smul.addr %s720, 4
        %s722 = scalar_lea.vmem %s2, %s721
      $region52: #{_lambda_.8} parent=47 // pred_fallthru
        _
      // Predicated region
      $region53: #{_lambda_.8} parent=47 // pred_check
        %p723 = pneg %p144
      $region54: #{_lambda_.8} parent=47 // pred_check_branch
        %725 = sbr.rel (%p723) target = $region56
      $region55: #{_lambda_.8} parent=47 // pred_region
        %p726 = scmp.lt.s32.totalorder %s23, 1
        %s727 = scalar_select %p726, %s23, 1
        %p728 = scmp.lt.s32.totalorder %s24, 0
        %s729 = scalar_select %p728, %s24, 0
        %s730 = sadd.s32 %s729, %s727
        %s731 = smul.addr %s730, 8
        %s732 = scalar_lea.vmem %s3, %s731
      $region56: #{_lambda_.8} parent=47 // pred_fallthru
        _
    $region48: #{_lambda_.8} parent=5 // pred_fallthru
      _
  $region6: #{_lambda_.8} parent=0 // loop_footer
    %s14 = sadd.s32 1, %s10
  $region7: #{_lambda_.8} parent=0 // loop_footer_branch
    %9 = sbr.rel target = $region3
  $region8: #{_lambda_.8} parent=0 // loop_exit
    _

// kernel: _lambda_.9
$region0: #{_lambda_.9}
  #allocation0 [shape = 'u32[]', space=smem, size = 0x4, offset = 0x4, fixed_abs, tag = 'smem constant byte address 0x4 - core index']
  #allocation1 [shape = 'u32[144,128]{1,0:T(1,128)}', space=vmem, size = 0x12000, scoped, tag = 'internal scratch']
  #allocation2 [shape = 'f32[8,1]{1,0:T(8,128)}', space=vmem, size = 0x1000, scoped, tag = 'scratch operand']
  %s0 = inlined_call_operand.vmem [shape: bf16[8,1024], index: 0, kind: input, shape index: {}]
  %s1 = inlined_call_operand.vmem [shape: bf16[1,1024], index: 1, kind: input, shape index: {}]
  %s2 = inlined_call_operand.vmem [shape: f32[8,1], index: 2, kind: output, shape index: {}]
  %s3 = sld [smem:[#allocation0]]
  $region49: #{_lambda_.9} parent=0
    _
  %s5 = ssub.s32 1, %s3
  %s6 = scalar_select 0, %s5, %s3
  loop: start=0, step=1, limit=4
  $region2: #{_lambda_.9} parent=0 // loop_pre_header
    _
  $region3: #{_lambda_.9} parent=0 // loop_header
    %s8 = sphi 0, %s12
    %p9 = scmp.ge.s32.totalorder %s8, 4
    %s15 = sphi 0, %s27
    %s16 = sphi 0, %s23
    %s17 = sphi 0, %s15
    %s18 = sphi 0, %s16
    %s19 = sphi 0, %s17
    %s20 = sphi 0, %s18
    %s32 = sphi 0, %s34
    %s35 = sphi 0, %s32
    %s36 = sphi 0, %s35
    %s52 = sphi 0, %s36
    %s58 = sphi 0, %s60
    %s61 = sphi 0, %s58
    %s62 = sphi 0, %s61
    %s78 = sphi 0, %s62
    %s84 = sphi 0, %s86
    %s87 = sphi 0, %s84
    %s88 = sphi 0, %s87
    %s104 = sphi 0, %s88
  $region4: #{_lambda_.9} parent=0 // loop_header_branch
    %11 = sbr.rel (%p9) target = $region8
  $region5: #{_lambda_.9} parent=0 // loop_body
    %s13 = ssub.s32 %s8, 1
    %s14 = ssub.s32 %s8, 2
    %s21 = sadd.s32 1, %s16
    %p22 = scmp.ge.s32.totalorder %s21, 2
    %s23 = scalar_select %p22, 0, %s21
    %s24 = sadd.s32 1, %s15
    %s25 = scalar_select %p22, %s24, %s15
    %p26 = scmp.ge.s32.totalorder %s25, 1
    %s27 = scalar_select %p26, 0, %s25
    %s28 = ssub.s32 %s15, %s27
    %s29 = ssub.s32 %s16, %s23
    %s30 = sor.u32 %s28, %s29
    %p31 = scmp.eq.s32.totalorder %s30, 0
    %s33 = sadd.s32 %s32, 1
    %s34 = scalar_select %p31, %s32, %s33
    %p37 = pneg %p31
    %p38 = scmp.eq.s32.totalorder %s8, 1
    %p39 = por %p37, %p38
    %p40 = scmp.ne.s32.totalorder %s32, %s35
    %p41 = scmp.eq.s32.totalorder %s8, 0
    %p42 = por %p40, %p41
    %p43 = scmp.ne.s32.totalorder %s32, %s35
    %p44 = scmp.eq.s32.totalorder %s13, 1
    %p45 = por %p43, %p44
    %p46 = scmp.ne.s32.totalorder %s35, %s36
    %p47 = scmp.eq.s32.totalorder %s13, 0
    %p48 = por %p46, %p47
    %p49 = scmp.ne.s32.totalorder %s35, %s36
    %p50 = scmp.eq.s32.totalorder %s14, 1
    %p51 = por %p49, %p50
    %p53 = scmp.ne.s32.totalorder %s36, %s52
    %p54 = scmp.eq.s32.totalorder %s14, 0
    %p55 = por %p53, %p54
    %s56 = ssub.s32 %s16, %s23
    %p57 = scmp.eq.s32.totalorder %s56, 0
    %s59 = sadd.s32 %s58, 1
    %s60 = scalar_select %p57, %s58, %s59
    %p63 = pneg %p57
    %p64 = scmp.eq.s32.totalorder %s8, 1
    %p65 = por %p63, %p64
    %p66 = scmp.ne.s32.totalorder %s58, %s61
    %p67 = scmp.eq.s32.totalorder %s8, 0
    %p68 = por %p66, %p67
    %p69 = scmp.ne.s32.totalorder %s58, %s61
    %p70 = scmp.eq.s32.totalorder %s13, 1
    %p71 = por %p69, %p70
    %p72 = scmp.ne.s32.totalorder %s61, %s62
    %p73 = scmp.eq.s32.totalorder %s13, 0
    %p74 = por %p72, %p73
    %p75 = scmp.ne.s32.totalorder %s61, %s62
    %p76 = scmp.eq.s32.totalorder %s14, 1
    %p77 = por %p75, %p76
    %p79 = scmp.ne.s32.totalorder %s62, %s78
    %p80 = scmp.eq.s32.totalorder %s14, 0
    %p81 = por %p79, %p80
    %s82 = ssub.s32 %s15, %s27
    %p83 = scmp.eq.s32.totalorder %s82, 0
    %s85 = sadd.s32 %s84, 1
    %s86 = scalar_select %p83, %s84, %s85
    %p89 = pneg %p83
    %p90 = scmp.eq.s32.totalorder %s8, 1
    %p91 = por %p89, %p90
    %p92 = scmp.ne.s32.totalorder %s84, %s87
    %p93 = scmp.eq.s32.totalorder %s8, 0
    %p94 = por %p92, %p93
    %p95 = scmp.ne.s32.totalorder %s84, %s87
    %p96 = scmp.eq.s32.totalorder %s13, 1
    %p97 = por %p95, %p96
    %p98 = scmp.ne.s32.totalorder %s87, %s88
    %p99 = scmp.eq.s32.totalorder %s13, 0
    %p100 = por %p98, %p99
    %p101 = scmp.ne.s32.totalorder %s87, %s88
    %p102 = scmp.eq.s32.totalorder %s14, 1
    %p103 = por %p101, %p102
    %p105 = scmp.ne.s32.totalorder %s88, %s104
    %p106 = scmp.eq.s32.totalorder %s14, 0
    %p107 = por %p105, %p106
    %p108 = scmp.le.s32.totalorder 1, %s8
    %p109 = scmp.lt.s32.totalorder %s8, 3
    %p110 = pnand %p108, %p109
    %p111 = pneg %p110
    // Predicated region
    $region9: #{_lambda_.9} parent=5 // pred_check
      _
    $region10: #{_lambda_.9} parent=5 // pred_check_branch
      %113 = sbr.rel (%p110) target = $region12
    $region11: #{_lambda_.9} parent=5 // pred_region
      %s114 = ssub.s32 %s8, 1
    $region12: #{_lambda_.9} parent=5 // pred_fallthru
      _
    %p115 = scmp.lt.s32.totalorder %s8, 2
    // Predicated region
    $region13: #{_lambda_.9} parent=5 // pred_check
      %p116 = pneg %p115
    $region14: #{_lambda_.9} parent=5 // pred_check_branch
      %118 = sbr.rel (%p116) target = $region16
    $region15: #{_lambda_.9} parent=5 // pred_region
      // Predicated region
      $region17: #{_lambda_.9} parent=15 // pred_check
        %p119 = pneg %p42
      $region18: #{_lambda_.9} parent=15 // pred_check_branch
        %121 = sbr.rel (%p119) target = $region20
      $region19: #{_lambda_.9} parent=15 // pred_region
        %s122 = smul.u32 4, %s16
        %p123 = scmp.lt.s32.totalorder %s15, 0
        %s124 = scalar_select %p123, %s15, 0
        %p125 = scmp.lt.s32.totalorder %s122, 7
        %s126 = scalar_select %p125, %s122, 7
        %s127 = smul.addr %s124, 8
        %s128 = sadd.s32 %s126, %s127
        %s129 = smul.addr %s128, 4
        %s130 = scalar_lea.vmem %s0, %s129
        %s131 = smul.u32 4, %s16
      $region20: #{_lambda_.9} parent=15 // pred_fallthru
        _
      // Predicated region
      $region21: #{_lambda_.9} parent=15 // pred_check
        %p132 = pneg %p68
      $region22: #{_lambda_.9} parent=15 // pred_check_branch
        %134 = sbr.rel (%p132) target = $region24
      $region23: #{_lambda_.9} parent=15 // pred_region
        %s135 = smul.u32 4, %s16
        %p136 = scmp.lt.s32.totalorder %s135, 7
        %s137 = scalar_select %p136, %s135, 7
        %s138 = scalar_lea.vmem %s1, %s137
        %s139 = smul.u32 4, %s16
      $region24: #{_lambda_.9} parent=15 // pred_fallthru
        _
    $region16: #{_lambda_.9} parent=5 // pred_fallthru
      _
    %p140 = scmp.le.s32.totalorder 1, %s8
    %p141 = scmp.lt.s32.totalorder %s8, 3
    %p142 = pnand %p140, %p141
    %p143 = pneg %p142
    // Predicated region
    $region25: #{_lambda_.9} parent=5 // pred_check
      _
    $region26: #{_lambda_.9} parent=5 // pred_check_branch
      %145 = sbr.rel (%p142) target = $region28
    $region27: #{_lambda_.9} parent=5 // pred_region
      %s146 = ssub.s32 %s8, 1
      %s147 = smul.u32 4, %s18
      %p148 = scmp.lt.s32.totalorder %s17, 0
      %s149 = scalar_select %p148, %s17, 0
      %p150 = scmp.lt.s32.totalorder %s147, 7
      %s151 = scalar_select %p150, %s147, 7
      %s152 = smul.addr %s149, 8
      %s153 = sadd.s32 %s151, %s152
      %s154 = smul.addr %s153, 4
      %s155 = scalar_lea.vmem %s0, %s154
      %p156 = pneg %p48
      %p157 = pneg %p45
      %s158 = smul.u32 4, %s18
      %p159 = scmp.lt.s32.totalorder %s158, 7
      %s160 = scalar_select %p159, %s158, 7
      %s161 = scalar_lea.vmem %s1, %s160
      %p162 = pneg %p74
      %p163 = pneg %p71
      %p164 = pneg %p100
      %p165 = pneg %p97
      %p166 = scmp.lt.s32.totalorder %s17, 0
      %s167 = scalar_select %p166, %s17, 0
      %s168 = smul.addr %s167, 8
      %s169 = scalar_lea.vmem %s2, %s168
      %s170 = smul.u32 4, %s18
      %p171 = scmp.lt.s32.totalorder %s17, 0
      %s172 = scalar_select %p171, %s17, 0
      %p173 = scmp.lt.s32.totalorder %s170, 7
      %s174 = scalar_select %p173, %s170, 7
      %s175 = smul.addr %s172, 8
      %s176 = sadd.s32 %s174, %s175
      %s177 = smul.addr %s176, 4
      %s178 = scalar_lea.vmem %s0, %s177
      %s179 = smul.u32 4, %s18
      %s180 = smul.u32 4, %s18
      %p181 = scmp.lt.s32.totalorder %s180, 7
      %s182 = scalar_select %p181, %s180, 7
      %s183 = scalar_lea.vmem %s1, %s182
      %s184 = smul.u32 4, %s18
      %p185 = scmp.lt.s32.totalorder %s17, 0
      %s186 = scalar_select %p185, %s17, 0
      %s187 = smul.addr %s186, 8
      %s188 = scalar_lea.vmem %s2, %s187
      %p189 = scmp.eq.s32.totalorder %s18, 0
      // Predicated region
      $region29: #{_lambda_.9} parent=27 // pred_check
        %p190 = pneg %p189
      $region30: #{_lambda_.9} parent=27 // pred_check_branch
        %192 = sbr.rel (%p190) target = $region32
      $region31: #{_lambda_.9} parent=27 // pred_region
        %vm193 = vcmask 7168
        %194 = vst.msk [vmem:[#allocation2] sm:$0xff] %vm193, 0.0
      $region32: #{_lambda_.9} parent=27 // pred_fallthru
        _
      %v195 = vld [vmem:[%s178] sm:$0xff]
      %v196 = vld [vmem:[%s178 + $0x8] sm:$0xff]
      %v197 = vunpack.c.l.bf16 %v195
      %v198 = vunpack.c.h.bf16 %v195
      %v199 = vunpack.c.l.bf16 %v196
      %v200 = vunpack.c.h.bf16 %v196
      %v201 = vld [vmem:[%s183] sm:$0xf]
      %v202 = vunpack.c.l.bf16 %v201
      %v204 = vlaneseq
      %v205 = vshrl.u32 %v204, 7
      %v206 = vsub.s32 0, %v205
      %v207 = vrot.slane %v202, %v206
      %v208 = vlaneseq
      %v209 = vshrl.u32 %v208, 7
      %v210 = vsub.s32 2, %v209
      %v211 = vrot.slane %v202, %v210
      %v212 = vlaneseq
      %v213 = vshrl.u32 %v212, 7
      %v214 = vsub.s32 4, %v213
      %v215 = vrot.slane %v202, %v214
      %v216 = vlaneseq
      %v217 = vshrl.u32 %v216, 7
      %v218 = vsub.s32 6, %v217
      %v219 = vrot.slane %v202, %v218
      %v224 = vlaneseq
      %v225 = vshrl.u32 %v224, 7
      %v226 = vsub.s32 0, %v225
      %v227 = vrot.slane %v207, %v226
      %v228 = vlaneseq
      %v229 = vshrl.u32 %v228, 7
      %v230 = vsub.s32 0, %v229
      %v231 = vrot.slane %v211, %v230
      %v232 = vlaneseq
      %v233 = vshrl.u32 %v232, 7
      %v234 = vsub.s32 0, %v233
      %v235 = vrot.slane %v215, %v234
      %v236 = vlaneseq
      %v237 = vshrl.u32 %v236, 7
      %v238 = vsub.s32 0, %v237
      %v239 = vrot.slane %v219, %v238
      %v240 = vmul.f32 %v197, %v227
      %v241 = vmul.f32 %v198, %v231
      %v242 = vmul.f32 %v199, %v235
      %v243 = vmul.f32 %v200, %v239
      %v244 = vld [vmem:[#allocation2] sm:$0xff]
      %v245 = vadd.f32 %v240, %v241
      %v246 = vadd.f32 %v245, %v242
      %v247 = vadd.f32 %v246, %v243
      %248 = vadd.xlane.f32.xlu0 %v247
      %v249 = vpop.xlane.xlu0 %248
      %v250 = vadd.f32 %v244, %v249
      %vm251 = vcmask 7168
      %252 = vst.msk [vmem:[#allocation2] sm:$0xff] %vm251, %v250
      %p253 = scmp.eq.s32.totalorder %s18, 1
      // Predicated region
      $region33: #{_lambda_.9} parent=27 // pred_check
        %p254 = pneg %p253
      $region34: #{_lambda_.9} parent=27 // pred_check_branch
        %256 = sbr.rel (%p254) target = $region36
      $region35: #{_lambda_.9} parent=27 // pred_region
        %v257 = vld [vmem:[#allocation2] sm:$0xff]
        %258 = vst.msk [vmem:[%s188] sm:$0xff] %vm251, %v257
      $region36: #{_lambda_.9} parent=27 // pred_fallthru
        _
      %p259 = scmp.lt.s32.totalorder %s17, 0
      %s260 = scalar_select %p259, %s17, 0
      %s261 = smul.addr %s260, 8
      %s262 = scalar_lea.vmem %s2, %s261
      // Predicated region
      $region37: #{_lambda_.9} parent=27 // pred_check
        %p263 = pneg %p97
      $region38: #{_lambda_.9} parent=27 // pred_check_branch
        %265 = sbr.rel (%p263) target = $region40
      $region39: #{_lambda_.9} parent=27 // pred_region
        _
      $region40: #{_lambda_.9} parent=27 // pred_fallthru
        _
      // Predicated region
      $region41: #{_lambda_.9} parent=27 // pred_check
        %p266 = pneg %p97
      $region42: #{_lambda_.9} parent=27 // pred_check_branch
        %268 = sbr.rel (%p266) target = $region44
      $region43: #{_lambda_.9} parent=27 // pred_region
        %p269 = scmp.lt.s32.totalorder %s17, 0
        %s270 = scalar_select %p269, %s17, 0
        %s271 = smul.addr %s270, 8
        %s272 = scalar_lea.vmem %s2, %s271
      $region44: #{_lambda_.9} parent=27 // pred_fallthru
        _
    $region28: #{_lambda_.9} parent=5 // pred_fallthru
      _
    %p273 = scmp.le.s32.totalorder 2, %s8
    // Predicated region
    $region45: #{_lambda_.9} parent=5 // pred_check
      %p274 = pneg %p273
    $region46: #{_lambda_.9} parent=5 // pred_check_branch
      %276 = sbr.rel (%p274) target = $region48
    $region47: #{_lambda_.9} parent=5 // pred_region
      %s277 = ssub.s32 %s8, 2
    $region48: #{_lambda_.9} parent=5 // pred_fallthru
      _
  $region6: #{_lambda_.9} parent=0 // loop_footer
    %s12 = sadd.s32 1, %s8
  $region7: #{_lambda_.9} parent=0 // loop_footer_branch
    %7 = sbr.rel target = $region3
  $region8: #{_lambda_.9} parent=0 // loop_exit
    _

</llo_original>
